<compile_context>
chip_gen: v7x
topology: tpu7x:2x2x1
jax: 0.10.0
libtpu: 0.0.40
codegen_flags: <defaults>
</compile_context>

<pallas_src>
import functools

import jax
import jax.numpy as jnp
from jax import lax
from jax.experimental import pallas as pl
from jax.experimental.pallas import tpu as pltpu

EPS = 1e-5                   # both norms use eps=1e-05 in the PyTorch module
LANE = 128                   # lane-dense channel padding
HIDDEN_CHUNK = 512           # pwconv hidden-dim chunk (bounds the (TN, Hp) temp)
MODE_BLOCK_MAX = 32          # max Fourier modes per grid step (spectral kernel)
SPECTRAL_PALLAS_MIN_C = 64   # below this the Pallas spectral matmul is overhead


def _round_up(n, m):
    return (n + m - 1) // m * m


def _tpu_budget():
    """Pick (vmem_limit_bytes, row_tile) from the local chip's VMEM capacity."""
    try:
        cap = pltpu.get_tpu_info().vmem_capacity_bytes
    except Exception:                      # conservative fallback, runs everywhere
        return 32 * 1024 * 1024, 512
    if cap >= 96 * 1024 * 1024:            # v5e / v6e: 128 MiB physical VMEM
        return 100 * 1024 * 1024, 1024
    if cap >= 48 * 1024 * 1024:            # v7x: 64 MiB physical VMEM
        return 48 * 1024 * 1024, 512
    return 32 * 1024 * 1024, 512


VMEM_LIMIT, TN = _tpu_budget()


def _pick_mode_block(m, max_mb=MODE_BLOCK_MAX):
    """Largest divisor of m that is <= max_mb, so no mode padding is needed."""
    mb = min(max_mb, m)
    while m % mb:
        mb -= 1
    return mb


# ---------------------------------------------------------------------------
# Kernel 1: LayerNorm over the channel axis (ConvNeXt "channels_first" norm,
# applied on channels-last rows so the reduction is over the last dim).
# Padding channels carry zero weight/bias so they stay exactly zero.
# Feeds the FFT path only (the fused kernel below recomputes it in-kernel).
# ---------------------------------------------------------------------------
def _ln_kernel(x_ref, g_ref, b_ref, o_ref, *, c_real):
    x = x_ref[...].astype(jnp.float32)
    cp = x.shape[-1]
    col = lax.broadcasted_iota(jnp.int32, (1, cp), 1)
    mask = (col < c_real).astype(jnp.float32)
    inv_c = 1.0 / c_real
    mu = jnp.sum(x, axis=-1, keepdims=True) * inv_c          # pad cols are zero
    diff = (x - mu) * mask
    var = jnp.sum(diff * diff, axis=-1, keepdims=True) * inv_c
    xn = diff * lax.rsqrt(var + EPS)
    o_ref[...] = (xn * g_ref[...] + b_ref[...]).astype(o_ref.dtype)


def layernorm_rows(x, gamma, beta, c_real):
    Np, Cp = x.shape
    kern = functools.partial(_ln_kernel, c_real=c_real)
    return pl.pallas_call(
        kern,
        out_shape=jax.ShapeDtypeStruct((Np, Cp), x.dtype),
        grid=(Np // TN,),
        in_specs=[
            pl.BlockSpec((TN, Cp), lambda i: (i, 0)),
            pl.BlockSpec((1, Cp), lambda i: (0, 0)),
            pl.BlockSpec((1, Cp), lambda i: (0, 0)),
        ],
        out_specs=pl.BlockSpec((TN, Cp), lambda i: (i, 0)),
        compiler_params=pltpu.CompilerParams(
            dimension_semantics=("parallel",),
            vmem_limit_bytes=VMEM_LIMIT,
        ),
    )(x, gamma.reshape(1, Cp), beta.reshape(1, Cp))


# ---------------------------------------------------------------------------
# Kernel 2: spectral mode mixing on the MXU.  The 4 real matmuls of a complex
# product are merged into ONE wider matmul per mode block:
#   rows  = [xr ; xi]        (mb, 2*Bp, Cip)     (bf16)
#   cols  = [wr | wi]        (mb, Cip, 2*Cop)    (bf16)
#   y     = rows @ cols      (f32 accumulation)
#   out_r = y[:, :B, :Co] - y[:, Bp:Bp+B, Cop:Cop+Co]
#   out_i = y[:, :B, Cop:Cop+Co] + y[:, Bp:Bp+B, :Co]
# Only used when C is large enough to fill the MXU (see SPECTRAL_PALLAS_MIN_C).
# ---------------------------------------------------------------------------
def _spectral_kernel(xs_ref, ws_ref, y_ref):
    y_ref[...] = jnp.einsum("mbi,mio->mbo", xs_ref[...], ws_ref[...],
                            preferred_element_type=jnp.float32)


def spectral_mix_pallas(xr, xi, wr, wi):
    M, B, Ci = xr.shape
    Co = wr.shape[2]
    Bp = _round_up(B, 8)
    Cip = _round_up(Ci, LANE)
    Cop = _round_up(Co, LANE)

    def padx(a):
        return jnp.pad(a, ((0, 0), (0, Bp - B), (0, Cip - Ci)))

    def padw(a):
        return jnp.pad(a, ((0, 0), (0, Cip - Ci), (0, Cop - Co)))

    xs = jnp.concatenate([padx(xr), padx(xi)], axis=1).astype(jnp.bfloat16)
    ws = jnp.concatenate([padw(wr), padw(wi)], axis=2).astype(jnp.bfloat16)

    mb = _pick_mode_block(M)                      # divisor of M -> no mode padding
    y = pl.pallas_call(
        _spectral_kernel,
        out_shape=jax.ShapeDtypeStruct((M, 2 * Bp, 2 * Cop), jnp.float32),
        grid=(M // mb,),
        in_specs=[
            pl.BlockSpec((mb, 2 * Bp, Cip), lambda m: (m, 0, 0)),
            pl.BlockSpec((mb, Cip, 2 * Cop), lambda m: (m, 0, 0)),
        ],
        out_specs=pl.BlockSpec((mb, 2 * Bp, 2 * Cop), lambda m: (m, 0, 0)),
        compiler_params=pltpu.CompilerParams(
            dimension_semantics=("parallel",),
            vmem_limit_bytes=VMEM_LIMIT,
        ),
    )(xs, ws)

    out_r = y[:, :B, :Co] - y[:, Bp:Bp + B, Cop:Cop + Co]
    out_i = y[:, :B, Cop:Cop + Co] + y[:, Bp:Bp + B, :Co]
    return out_r, out_i


# ---------------------------------------------------------------------------
# Kernel 3 (fused): norm1 recompute + IO_layer combine + residual + norm2 +
# pwconv1 + ReLU + pwconv2 + residual:
#   xn  = LN_cf(x)
#   x1  = x + relu( f + xn @ Wc^T + bc )            (f = spectral branch)
#   out = x1 + ( relu( LN_cl(x1) @ W1^T + b1 ) @ W2^T + b2 )
# Keeps x1 in vregs/VMEM (no HBM round trip).  MXU operands are bf16, all
# VPU/LayerNorm math stays f32 (v5e has no bf16 VALU/EUP).  The hidden dim is
# processed in HIDDEN_CHUNK-wide column chunks to bound the live (TN, Hc) temp.
# Output aliases the x input buffer (pure residual update in place).
# ---------------------------------------------------------------------------
def _io_mlp_kernel(x_ref, f_ref, g1_ref, b1_ref, wc_ref, bc_ref, g2_ref, be2_ref,
                   w1_ref, b1b_ref, w2_ref, b2_ref, o_ref, *, c_real, hidden_chunk):
    x = x_ref[...].astype(jnp.float32)
    f = f_ref[...].astype(jnp.float32)
    cp = x.shape[-1]
    col = lax.broadcasted_iota(jnp.int32, (1, cp), 1)
    mask = (col < c_real).astype(jnp.float32)
    inv_c = 1.0 / c_real

    # norm1 recomputed in-kernel (drops the xn HBM input stream)
    mu1 = jnp.sum(x, axis=-1, keepdims=True) * inv_c          # pad cols are zero
    d1 = (x - mu1) * mask
    v1 = jnp.sum(d1 * d1, axis=-1, keepdims=True) * inv_c
    xn = d1 * lax.rsqrt(v1 + EPS) * g1_ref[...] + b1_ref[...]

    # IO_layer: 1x1 conv (bf16 MXU operands, f32 acc) + spectral add + ReLU,
    # then the outer residual.
    conv = jnp.dot(xn.astype(jnp.bfloat16), wc_ref[...],
                   preferred_element_type=jnp.float32)
    x1 = x + jnp.maximum(f + conv + bc_ref[...], 0.0)

    # norm2 (channels_last LayerNorm over the real C columns)
    mu2 = jnp.sum(x1, axis=-1, keepdims=True) * inv_c         # pad cols are zero
    d2 = (x1 - mu2) * mask
    v2 = jnp.sum(d2 * d2, axis=-1, keepdims=True) * inv_c
    xn2 = d2 * lax.rsqrt(v2 + EPS) * g2_ref[...] + be2_ref[...]
    xn2_b = xn2.astype(jnp.bfloat16)

    # pwconv1 -> ReLU -> pwconv2, chunked over the 4C hidden dim
    hp = w1_ref.shape[1]
    y = jnp.zeros_like(x1)
    for h0 in range(0, hp, hidden_chunk):
        h1 = min(hp, h0 + hidden_chunk)
        h = jnp.maximum(
            jnp.dot(xn2_b, w1_ref[:, h0:h1], preferred_element_type=jnp.float32)
            + b1b_ref[:, h0:h1],
            0.0,
        )
        y = y + jnp.dot(h.astype(jnp.bfloat16), w2_ref[h0:h1, :],
                        preferred_element_type=jnp.float32)

    o_ref[...] = (x1 + y + b2_ref[...]).astype(o_ref.dtype)


def io_mlp_block(x, f, g1, b1, wc_t, bc, g2, be2, w1_t, bias1, w2_t, bias2, c_real):
    Np, Cp = x.shape
    Hp = w1_t.shape[1]
    kern = functools.partial(_io_mlp_kernel, c_real=c_real,
                             hidden_chunk=HIDDEN_CHUNK)
    row = lambda i: (i, 0)
    full = lambda i: (0, 0)
    return pl.pallas_call(
        kern,
        out_shape=jax.ShapeDtypeStruct((Np, Cp), x.dtype),
        grid=(Np // TN,),
        in_specs=[
            pl.BlockSpec((TN, Cp), row),    # x (residual input, aliased to out)
            pl.BlockSpec((TN, Cp), row),    # f  = spectral branch
            pl.BlockSpec((1, Cp), full),    # norm1 gamma
            pl.BlockSpec((1, Cp), full),    # norm1 beta
            pl.BlockSpec((Cp, Cp), full),   # Wc^T   (bf16)
            pl.BlockSpec((1, Cp), full),    # bc
            pl.BlockSpec((1, Cp), full),    # norm2 gamma
            pl.BlockSpec((1, Cp), full),    # norm2 beta
            pl.BlockSpec((Cp, Hp), full),   # W1^T   (bf16)
            pl.BlockSpec((1, Hp), full),    # b1
            pl.BlockSpec((Hp, Cp), full),   # W2^T   (bf16)
            pl.BlockSpec((1, Cp), full),    # b2
        ],
        out_specs=pl.BlockSpec((TN, Cp), row),
        input_output_aliases={0: 0},
        compiler_params=pltpu.CompilerParams(
            dimension_semantics=("parallel",),
            vmem_limit_bytes=VMEM_LIMIT,
        ),
    )(x, f, g1.reshape(1, Cp), b1.reshape(1, Cp), wc_t, bc.reshape(1, Cp),
      g2.reshape(1, Cp), be2.reshape(1, Cp), w1_t, bias1.reshape(1, Hp),
      w2_t, bias2.reshape(1, Cp))


# ---------------------------------------------------------------------------
# Full MetaFormerNO_Block forward (NCHW in / NCHW out, like the PyTorch module)
# ---------------------------------------------------------------------------
def metaformer_no_block(x_nchw, params):
    B, C, H, W = x_nchw.shape
    m1, m2 = params["modes"]
    Wf = W // 2 + 1
    assert H >= 2 * m1 and m2 <= Wf, "mode config must fit the spatial grid"
    N = B * H * W
    Cp = _round_up(C, LANE)
    Hd = 4 * C
    Hp = _round_up(Hd, LANE)
    Np = _round_up(N, TN)

    x_flat = jnp.transpose(x_nchw, (0, 2, 3, 1)).reshape(N, C)
    x_p = jnp.pad(x_flat.astype(jnp.float32), ((0, Np - N), (0, Cp - C)))

    # zero-padded parameters (padding channels contribute exactly zero);
    # matmul weights are stored bf16 (f32 accumulation in-kernel).
    def padc(v, n):
        return jnp.pad(v, (0, n - v.shape[0]))

    g1 = padc(params["g1"], Cp)
    b1 = padc(params["b1"], Cp)
    g2 = padc(params["g2"], Cp)
    be2 = padc(params["b2"], Cp)
    wc_t = jnp.pad(params["wc_t"], ((0, Cp - C), (0, Cp - C))).astype(jnp.bfloat16)
    bc = padc(params["bc"], Cp)
    w1_t = jnp.pad(params["w1_t"], ((0, Cp - C), (0, Hp - Hd))).astype(jnp.bfloat16)
    bias1 = padc(params["bias1"], Hp)
    w2_t = jnp.pad(params["w2_t"], ((0, Hp - Hd), (0, Cp - C))).astype(jnp.bfloat16)
    bias2 = padc(params["bias2"], Cp)

    # ---- norm1 (channels_first LayerNorm), feeds the FFT path ----
    xn_p = layernorm_rows(x_p, g1, b1, C)

    # ---- fourier_conv_2d: FFT stays in plain JAX (NHWC, no big transposes) ----
    # TODO(synk): rfft2/irfft2 have no Pallas equivalent; computed in plain JAX.
    xn_nhwc = xn_p[:N, :C].reshape(B, H, W, C)
    x_ft = jnp.fft.rfft2(xn_nhwc, axes=(1, 2))           # (B, H, Wf, C) complex64
    top = x_ft[:, :m1, :m2, :]
    bot = x_ft[:, H - m1:, :m2, :]
    sel = jnp.concatenate([top, bot], axis=1)            # (B, 2*m1, m2, C)
    M = 2 * m1 * m2
    sel = jnp.transpose(sel, (1, 2, 0, 3)).reshape(M, B, C)

    wgt = jnp.concatenate([params["fw1"], params["fw2"]], axis=2)  # (Ci,Co,2m1,m2)
    wgt = jnp.transpose(wgt, (2, 3, 0, 1)).reshape(M, C, C)

    if C >= SPECTRAL_PALLAS_MIN_C:
        out_r, out_i = spectral_mix_pallas(
            jnp.real(sel).astype(jnp.float32), jnp.imag(sel).astype(jnp.float32),
            jnp.real(wgt).astype(jnp.float32), jnp.imag(wgt).astype(jnp.float32))
        mixed = out_r + 1j * out_i
    else:
        # At tiny C the (8,128)-padded Pallas matmul is pure overhead: let XLA
        # do the complex mode mixing directly.
        mixed = jnp.einsum("mbi,mio->mbo", sel, wgt)

    out_modes = jnp.transpose(mixed.reshape(2 * m1, m2, B, C), (2, 0, 1, 3))
    zc = Wf - m2
    top_f = jnp.pad(out_modes[:, :m1], ((0, 0), (0, 0), (0, zc), (0, 0)))
    bot_f = jnp.pad(out_modes[:, m1:], ((0, 0), (0, 0), (0, zc), (0, 0)))
    mid = jnp.zeros((B, H - 2 * m1, Wf, C), dtype=out_modes.dtype)
    out_ft = jnp.concatenate([top_f, mid, bot_f], axis=1)   # (B, H, Wf, C)
    f_flat = jnp.fft.irfft2(out_ft, s=(H, W), axes=(1, 2)).reshape(N, C)
    f_p = jnp.pad(f_flat.astype(jnp.float32), ((0, Np - N), (0, Cp - C)))

    # ---- fused: norm1 + IO combine + residual + norm2 + MLP + residual ----
    out_p = io_mlp_block(x_p, f_p, g1, b1, wc_t, bc, g2, be2,
                         w1_t, bias1, w2_t, bias2, C)

    out = out_p[:N, :C].reshape(B, H, W, C)
    return jnp.transpose(out, (0, 3, 1, 2)).astype(x_nchw.dtype)


# ---------------------------------------------------------------------------
# Pure-JAX reference of the PyTorch forward (for a numerical sanity check)
# ---------------------------------------------------------------------------
def reference_block(x, params):
    B, C, H, W = x.shape
    m1, m2 = params["modes"]
    u = jnp.mean(x, axis=1, keepdims=True)
    s = jnp.mean((x - u) ** 2, axis=1, keepdims=True)
    xn = ((x - u) / jnp.sqrt(s + EPS) * params["g1"][None, :, None, None]
          + params["b1"][None, :, None, None])
    x_ft = jnp.fft.rfft2(xn)
    mul = lambda a, w: jnp.einsum("bixy,ioxy->boxy", a, w)
    out_ft = jnp.zeros_like(x_ft)
    out_ft = out_ft.at[:, :, :m1, :m2].set(mul(x_ft[:, :, :m1, :m2], params["fw1"]))
    out_ft = out_ft.at[:, :, -m1:, :m2].set(mul(x_ft[:, :, -m1:, :m2], params["fw2"]))
    io = jnp.fft.irfft2(out_ft, s=(H, W))
    wc = params["wc_t"].T
    conv = jnp.einsum("oi,bihw->bohw", wc, xn) + params["bc"][None, :, None, None]
    x1 = x + jnp.maximum(io + conv, 0.0)
    xl = jnp.transpose(x1, (0, 2, 3, 1))
    u2 = jnp.mean(xl, axis=-1, keepdims=True)
    s2 = jnp.mean((xl - u2) ** 2, axis=-1, keepdims=True)
    xn2 = (xl - u2) / jnp.sqrt(s2 + EPS) * params["g2"] + params["b2"]
    h = jnp.maximum(xn2 @ params["w1_t"] + params["bias1"], 0.0)
    y = h @ params["w2_t"] + params["bias2"]
    return x1 + jnp.transpose(y, (0, 3, 1, 2))


# ---------------------------------------------------------------------------
# Deterministic parameter construction (synthetic, mirrors __init__ shapes)
# ---------------------------------------------------------------------------
def make_params(key, C, m1, m2):
    ks = jax.random.split(key, 16)
    hidden = 4 * C
    scale = 1.0 / (C * C)
    fw1 = (scale * jax.random.uniform(ks[0], (C, C, m1, m2))
           + 1j * scale * jax.random.uniform(ks[1], (C, C, m1, m2))).astype(jnp.complex64)
    fw2 = (scale * jax.random.uniform(ks[2], (C, C, m1, m2))
           + 1j * scale * jax.random.uniform(ks[3], (C, C, m1, m2))).astype(jnp.complex64)
    wc = 0.2 * jax.random.normal(ks[4], (C, C), jnp.float32)       # Conv2d 1x1 (Co, Ci)
    bc = 0.1 * jax.random.normal(ks[5], (C,), jnp.float32)
    g1 = 1.0 + 0.1 * jax.random.normal(ks[6], (C,), jnp.float32)   # norm1 weight
    b1 = 0.1 * jax.random.normal(ks[7], (C,), jnp.float32)
    g2 = 1.0 + 0.1 * jax.random.normal(ks[8], (C,), jnp.float32)   # norm2 weight
    b2 = 0.1 * jax.random.normal(ks[9], (C,), jnp.float32)
    w1 = 0.2 * jax.random.normal(ks[10], (hidden, C), jnp.float32)  # pwconv1 weight
    bias1 = 0.1 * jax.random.normal(ks[11], (hidden,), jnp.float32)
    w2 = 0.2 * jax.random.normal(ks[12], (C, hidden), jnp.float32)  # pwconv2 weight
    bias2 = 0.1 * jax.random.normal(ks[13], (C,), jnp.float32)
    return dict(
        modes=(m1, m2),
        fw1=fw1, fw2=fw2,
        wc_t=wc.T, bc=bc,
        g1=g1, b1=b1, g2=g2, b2=b2,
        w1_t=w1.T, bias1=bias1, w2_t=w2.T, bias2=bias2,
    )


if __name__ == "__main__":
    B, C, H, W = 2, 4, 16, 16
    m1, m2 = 4, 4  # wavenumber

    key = jax.random.PRNGKey(0)
    kp, kx, ks = jax.random.split(key, 3)
    params = make_params(kp, C, m1, m2)
    x = jax.random.normal(kx, (B, C, H, W), jnp.float32)

    fwd = jax.jit(functools.partial(metaformer_no_block, params=params))
    out = jax.block_until_ready(fwd(x))
    assert out.shape == (B, C, H, W)
    assert out.dtype == jnp.float32
    assert bool(jnp.all(jnp.isfinite(out)))

    # numerical check against a pure-JAX reference of the PyTorch forward
    # (tolerance accounts for bf16 MXU operands with f32 accumulation)
    ref = jax.block_until_ready(
        jax.jit(functools.partial(reference_block, params=params))(x))
    err = jnp.max(jnp.abs(out - ref))
    assert bool(err < 0.3), float(err)

    # exercise + check the merged bf16 spectral Pallas kernel at a size where
    # the forward path would actually select it (C >= SPECTRAL_PALLAS_MIN_C)
    Mt, Bt, Ct = 16, 4, 128
    k0, k1, k2, k3 = jax.random.split(ks, 4)
    sxr = jax.random.normal(k0, (Mt, Bt, Ct), jnp.float32)
    sxi = jax.random.normal(k1, (Mt, Bt, Ct), jnp.float32)
    swr = 0.1 * jax.random.normal(k2, (Mt, Ct, Ct), jnp.float32)
    swi = 0.1 * jax.random.normal(k3, (Mt, Ct, Ct), jnp.float32)
    pr, pi = jax.block_until_ready(jax.jit(spectral_mix_pallas)(sxr, sxi, swr, swi))
    sref = jnp.einsum("mbi,mio->mbo", sxr + 1j * sxi, swr + 1j * swi)
    serr = jnp.maximum(jnp.max(jnp.abs(pr - jnp.real(sref))),
                       jnp.max(jnp.abs(pi - jnp.imag(sref))))
    assert bool(serr < 0.25), float(serr)

    print("KERNEL_OK")
</pallas_src>

<mosaic_0001>
module attributes {stable_mosaic.version = 11 : i64} {
  func.func @_ln_kernel(%arg0: i32, %arg1: memref<512x128xf32, #tpu.memory_space<vmem>>, %arg2: memref<1x128xf32, #tpu.memory_space<vmem>>, %arg3: memref<1x128xf32, #tpu.memory_space<vmem>>, %arg4: memref<512x128xf32, #tpu.memory_space<vmem>>) attributes {dimension_semantics = [#tpu.dimension_semantics<parallel>], iteration_bounds = array<i64: 1>, scalar_prefetch = 0 : i64, scratch_operands = 0 : i64, tpu.core_type = #tpu.core_type<tc>, window_params = [{transform_indices = @transform_0, window_bounds = array<i64: 512, 128>}, {pipeline_mode = #tpu.pipeline_mode<synchronous>, transform_indices = @transform_1, window_bounds = array<i64: 1, 128>}, {pipeline_mode = #tpu.pipeline_mode<synchronous>, transform_indices = @transform_2, window_bounds = array<i64: 1, 128>}, {transform_indices = @transform_3, window_bounds = array<i64: 512, 128>}]} {
    %c0 = arith.constant 0 : index
    %c0_0 = arith.constant 0 : index
    %0 = vector.load %arg1[%c0, %c0_0] : memref<512x128xf32, #tpu.memory_space<vmem>>, vector<512x128xf32>
    %1 = tpu.iota {dimensions = array<i32: 1>} : vector<1x128xi32>
    %c4_i32 = arith.constant 4 : i32
    %2 = vector.broadcast %c4_i32 : i32 to vector<1x128xi32>
    %3 = arith.cmpi slt, %1, %2 : vector<1x128xi32>
    %4 = arith.extui %3 : vector<1x128xi1> to vector<1x128xi32>
    %5 = arith.sitofp %4 : vector<1x128xi32> to vector<1x128xf32>
    %cst = arith.constant dense<0.000000e+00> : vector<512xf32>
    %6 = vector.multi_reduction <add>, %0, %cst [1] : vector<512x128xf32> to vector<512xf32>
    %7 = vector.shape_cast %6 : vector<512xf32> to vector<512x1xf32>
    %cst_1 = arith.constant 2.500000e-01 : f32
    %8 = vector.broadcast %cst_1 : f32 to vector<512x1xf32>
    %9 = arith.mulf %7, %8 : vector<512x1xf32>
    %10 = vector.broadcast %9 : vector<512x1xf32> to vector<512x128xf32>
    %11 = arith.subf %0, %10 : vector<512x128xf32>
    %12 = vector.broadcast %5 : vector<1x128xf32> to vector<512x128xf32>
    %13 = arith.mulf %11, %12 : vector<512x128xf32>
    %14 = arith.mulf %13, %13 : vector<512x128xf32>
    %cst_2 = arith.constant dense<0.000000e+00> : vector<512xf32>
    %15 = vector.multi_reduction <add>, %14, %cst_2 [1] : vector<512x128xf32> to vector<512xf32>
    %16 = vector.shape_cast %15 : vector<512xf32> to vector<512x1xf32>
    %cst_3 = arith.constant 2.500000e-01 : f32
    %17 = vector.broadcast %cst_3 : f32 to vector<512x1xf32>
    %18 = arith.mulf %16, %17 : vector<512x1xf32>
    %cst_4 = arith.constant 9.99999974E-6 : f32
    %19 = vector.broadcast %cst_4 : f32 to vector<512x1xf32>
    %20 = arith.addf %18, %19 : vector<512x1xf32>
    %21 = math.rsqrt %20 : vector<512x1xf32>
    %22 = vector.broadcast %21 : vector<512x1xf32> to vector<512x128xf32>
    %23 = arith.mulf %13, %22 : vector<512x128xf32>
    %c0_5 = arith.constant 0 : index
    %c0_6 = arith.constant 0 : index
    %24 = vector.load %arg2[%c0_5, %c0_6] : memref<1x128xf32, #tpu.memory_space<vmem>>, vector<1x128xf32>
    %25 = vector.broadcast %24 : vector<1x128xf32> to vector<512x128xf32>
    %26 = arith.mulf %23, %25 : vector<512x128xf32>
    %c0_7 = arith.constant 0 : index
    %c0_8 = arith.constant 0 : index
    %27 = vector.load %arg3[%c0_7, %c0_8] : memref<1x128xf32, #tpu.memory_space<vmem>>, vector<1x128xf32>
    %28 = vector.broadcast %27 : vector<1x128xf32> to vector<512x128xf32>
    %29 = arith.addf %26, %28 : vector<512x128xf32>
    %c0_9 = arith.constant 0 : index
    %c0_10 = arith.constant 0 : index
    %30 = vector.load %arg4[%c0_9, %c0_10] : memref<512x128xf32, #tpu.memory_space<vmem>>, vector<512x128xf32>
    tpu.vector_store %arg4[%c0_9, %c0_10], %29 {strides = array<i32>} : memref<512x128xf32, #tpu.memory_space<vmem>>, vector<512x128xf32>,
    return
  }
  func.func @transform_0(%arg0: i32) -> (i32, i32) {
    %c0_i32 = arith.constant 0 : i32
    %c0_i32_0 = arith.constant 0 : i32
    return %arg0, %c0_i32 : i32, i32
  }
  func.func @transform_1(%arg0: i32) -> (i32, i32) {
    %c0_i32 = arith.constant 0 : i32
    %c0_i32_0 = arith.constant 0 : i32
    %c0_i32_1 = arith.constant 0 : i32
    return %c0_i32, %c0_i32_0 : i32, i32
  }
  func.func @transform_2(%arg0: i32) -> (i32, i32) {
    %c0_i32 = arith.constant 0 : i32
    %c0_i32_0 = arith.constant 0 : i32
    %c0_i32_1 = arith.constant 0 : i32
    return %c0_i32, %c0_i32_0 : i32, i32
  }
  func.func @transform_3(%arg0: i32) -> (i32, i32) {
    %c0_i32 = arith.constant 0 : i32
    %c0_i32_0 = arith.constant 0 : i32
    return %arg0, %c0_i32 : i32, i32
  }
}

module attributes {stable_mosaic.version = 11 : i64} {
  func.func @_io_mlp_kernel(%arg0: i32, %arg1: memref<512x128xf32, #tpu.memory_space<vmem>>, %arg2: memref<512x128xf32, #tpu.memory_space<vmem>>, %arg3: memref<1x128xf32, #tpu.memory_space<vmem>>, %arg4: memref<1x128xf32, #tpu.memory_space<vmem>>, %arg5: memref<128x128xbf16, #tpu.memory_space<vmem>>, %arg6: memref<1x128xf32, #tpu.memory_space<vmem>>, %arg7: memref<1x128xf32, #tpu.memory_space<vmem>>, %arg8: memref<1x128xf32, #tpu.memory_space<vmem>>, %arg9: memref<128x128xbf16, #tpu.memory_space<vmem>>, %arg10: memref<1x128xf32, #tpu.memory_space<vmem>>, %arg11: memref<128x128xbf16, #tpu.memory_space<vmem>>, %arg12: memref<1x128xf32, #tpu.memory_space<vmem>>, %arg13: memref<512x128xf32, #tpu.memory_space<vmem>>) attributes {dimension_semantics = [#tpu.dimension_semantics<parallel>], iteration_bounds = array<i64: 1>, scalar_prefetch = 0 : i64, scratch_operands = 0 : i64, tpu.core_type = #tpu.core_type<tc>, window_params = [{transform_indices = @transform_0, window_bounds = array<i64: 512, 128>}, {transform_indices = @transform_1, window_bounds = array<i64: 512, 128>}, {pipeline_mode = #tpu.pipeline_mode<synchronous>, transform_indices = @transform_2, window_bounds = array<i64: 1, 128>}, {pipeline_mode = #tpu.pipeline_mode<synchronous>, transform_indices = @transform_3, window_bounds = array<i64: 1, 128>}, {pipeline_mode = #tpu.pipeline_mode<synchronous>, transform_indices = @transform_4, window_bounds = array<i64: 128, 128>}, {pipeline_mode = #tpu.pipeline_mode<synchronous>, transform_indices = @transform_5, window_bounds = array<i64: 1, 128>}, {pipeline_mode = #tpu.pipeline_mode<synchronous>, transform_indices = @transform_6, window_bounds = array<i64: 1, 128>}, {pipeline_mode = #tpu.pipeline_mode<synchronous>, transform_indices = @transform_7, window_bounds = array<i64: 1, 128>}, {pipeline_mode = #tpu.pipeline_mode<synchronous>, transform_indices = @transform_8, window_bounds = array<i64: 128, 128>}, {pipeline_mode = #tpu.pipeline_mode<synchronous>, transform_indices = @transform_9, window_bounds = array<i64: 1, 128>}, {pipeline_mode = #tpu.pipeline_mode<synchronous>, transform_indices = @transform_10, window_bounds = array<i64: 128, 128>}, {pipeline_mode = #tpu.pipeline_mode<synchronous>, transform_indices = @transform_11, window_bounds = array<i64: 1, 128>}, {transform_indices = @transform_12, window_bounds = array<i64: 512, 128>}]} {
    %c0 = arith.constant 0 : index
    %c0_0 = arith.constant 0 : index
    %0 = vector.load %arg1[%c0, %c0_0] : memref<512x128xf32, #tpu.memory_space<vmem>>, vector<512x128xf32>
    %c0_1 = arith.constant 0 : index
    %c0_2 = arith.constant 0 : index
    %1 = vector.load %arg2[%c0_1, %c0_2] : memref<512x128xf32, #tpu.memory_space<vmem>>, vector<512x128xf32>
    %2 = tpu.iota {dimensions = array<i32: 1>} : vector<1x128xi32>
    %c4_i32 = arith.constant 4 : i32
    %3 = vector.broadcast %c4_i32 : i32 to vector<1x128xi32>
    %4 = arith.cmpi slt, %2, %3 : vector<1x128xi32>
    %5 = arith.extui %4 : vector<1x128xi1> to vector<1x128xi32>
    %6 = arith.sitofp %5 : vector<1x128xi32> to vector<1x128xf32>
    %cst = arith.constant dense<0.000000e+00> : vector<512xf32>
    %7 = vector.multi_reduction <add>, %0, %cst [1] : vector<512x128xf32> to vector<512xf32>
    %8 = vector.shape_cast %7 : vector<512xf32> to vector<512x1xf32>
    %cst_3 = arith.constant 2.500000e-01 : f32
    %9 = vector.broadcast %cst_3 : f32 to vector<512x1xf32>
    %10 = arith.mulf %8, %9 : vector<512x1xf32>
    %11 = vector.broadcast %10 : vector<512x1xf32> to vector<512x128xf32>
    %12 = arith.subf %0, %11 : vector<512x128xf32>
    %13 = vector.broadcast %6 : vector<1x128xf32> to vector<512x128xf32>
    %14 = arith.mulf %12, %13 : vector<512x128xf32>
    %15 = arith.mulf %14, %14 : vector<512x128xf32>
    %cst_4 = arith.constant dense<0.000000e+00> : vector<512xf32>
    %16 = vector.multi_reduction <add>, %15, %cst_4 [1] : vector<512x128xf32> to vector<512xf32>
    %17 = vector.shape_cast %16 : vector<512xf32> to vector<512x1xf32>
    %cst_5 = arith.constant 2.500000e-01 : f32
    %18 = vector.broadcast %cst_5 : f32 to vector<512x1xf32>
    %19 = arith.mulf %17, %18 : vector<512x1xf32>
    %cst_6 = arith.constant 9.99999974E-6 : f32
    %20 = vector.broadcast %cst_6 : f32 to vector<512x1xf32>
    %21 = arith.addf %19, %20 : vector<512x1xf32>
    %22 = math.rsqrt %21 : vector<512x1xf32>
    %23 = vector.broadcast %22 : vector<512x1xf32> to vector<512x128xf32>
    %24 = arith.mulf %14, %23 : vector<512x128xf32>
    %c0_7 = arith.constant 0 : index
    %c0_8 = arith.constant 0 : index
    %25 = vector.load %arg3[%c0_7, %c0_8] : memref<1x128xf32, #tpu.memory_space<vmem>>, vector<1x128xf32>
    %26 = vector.broadcast %25 : vector<1x128xf32> to vector<512x128xf32>
    %27 = arith.mulf %24, %26 : vector<512x128xf32>
    %c0_9 = arith.constant 0 : index
    %c0_10 = arith.constant 0 : index
    %28 = vector.load %arg4[%c0_9, %c0_10] : memref<1x128xf32, #tpu.memory_space<vmem>>, vector<1x128xf32>
    %29 = vector.broadcast %28 : vector<1x128xf32> to vector<512x128xf32>
    %30 = arith.addf %27, %29 : vector<512x128xf32>
    %31 = arith.truncf %30 : vector<512x128xf32> to vector<512x128xbf16>
    %c0_11 = arith.constant 0 : index
    %c0_12 = arith.constant 0 : index
    %32 = vector.load %arg5[%c0_11, %c0_12] : memref<128x128xbf16, #tpu.memory_space<vmem>>, vector<128x128xbf16>
    %cst_13 = arith.constant dense<0.000000e+00> : vector<512x128xf32>
    %33 = tpu.matmul %31, %32, %cst_13 {dimension_numbers = #tpu.dot_dimension_numbers<[1], [0], [0], [1], [0, 0, 1, 1], [], []>} : vector<512x128xbf16>, vector<128x128xbf16>, vector<512x128xf32> -> vector<512x128xf32>
    %34 = arith.addf %1, %33 : vector<512x128xf32>
    %c0_14 = arith.constant 0 : index
    %c0_15 = arith.constant 0 : index
    %35 = vector.load %arg6[%c0_14, %c0_15] : memref<1x128xf32, #tpu.memory_space<vmem>>, vector<1x128xf32>
    %36 = vector.broadcast %35 : vector<1x128xf32> to vector<512x128xf32>
    %37 = arith.addf %34, %36 : vector<512x128xf32>
    %cst_16 = arith.constant 0.000000e+00 : f32
    %38 = vector.broadcast %cst_16 : f32 to vector<512x128xf32>
    %39 = arith.maximumf %37, %38 : vector<512x128xf32>
    %40 = arith.addf %0, %39 : vector<512x128xf32>
    %cst_17 = arith.constant dense<0.000000e+00> : vector<512xf32>
    %41 = vector.multi_reduction <add>, %40, %cst_17 [1] : vector<512x128xf32> to vector<512xf32>
    %42 = vector.shape_cast %41 : vector<512xf32> to vector<512x1xf32>
    %cst_18 = arith.constant 2.500000e-01 : f32
    %43 = vector.broadcast %cst_18 : f32 to vector<512x1xf32>
    %44 = arith.mulf %42, %43 : vector<512x1xf32>
    %45 = vector.broadcast %44 : vector<512x1xf32> to vector<512x128xf32>
    %46 = arith.subf %40, %45 : vector<512x128xf32>
    %47 = vector.broadcast %6 : vector<1x128xf32> to vector<512x128xf32>
    %48 = arith.mulf %46, %47 : vector<512x128xf32>
    %49 = arith.mulf %48, %48 : vector<512x128xf32>
    %cst_19 = arith.constant dense<0.000000e+00> : vector<512xf32>
    %50 = vector.multi_reduction <add>, %49, %cst_19 [1] : vector<512x128xf32> to vector<512xf32>
    %51 = vector.shape_cast %50 : vector<512xf32> to vector<512x1xf32>
    %cst_20 = arith.constant 2.500000e-01 : f32
    %52 = vector.broadcast %cst_20 : f32 to vector<512x1xf32>
    %53 = arith.mulf %51, %52 : vector<512x1xf32>
    %cst_21 = arith.constant 9.99999974E-6 : f32
    %54 = vector.broadcast %cst_21 : f32 to vector<512x1xf32>
    %55 = arith.addf %53, %54 : vector<512x1xf32>
    %56 = math.rsqrt %55 : vector<512x1xf32>
    %57 = vector.broadcast %56 : vector<512x1xf32> to vector<512x128xf32>
    %58 = arith.mulf %48, %57 : vector<512x128xf32>
    %c0_22 = arith.constant 0 : index
    %c0_23 = arith.constant 0 : index
    %59 = vector.load %arg7[%c0_22, %c0_23] : memref<1x128xf32, #tpu.memory_space<vmem>>, vector<1x128xf32>
    %60 = vector.broadcast %59 : vector<1x128xf32> to vector<512x128xf32>
    %61 = arith.mulf %58, %60 : vector<512x128xf32>
    %c0_24 = arith.constant 0 : index
    %c0_25 = arith.constant 0 : index
    %62 = vector.load %arg8[%c0_24, %c0_25] : memref<1x128xf32, #tpu.memory_space<vmem>>, vector<1x128xf32>
    %63 = vector.broadcast %62 : vector<1x128xf32> to vector<512x128xf32>
    %64 = arith.addf %61, %63 : vector<512x128xf32>
    %65 = arith.truncf %64 : vector<512x128xf32> to vector<512x128xbf16>
    %cst_26 = arith.constant 0.000000e+00 : f32
    %66 = vector.broadcast %cst_26 : f32 to vector<512x128xf32>
    %c0_27 = arith.constant 0 : index
    %c0_28 = arith.constant 0 : index
    %67 = vector.load %arg9[%c0_27, %c0_28] : memref<128x128xbf16, #tpu.memory_space<vmem>>, vector<128x128xbf16>
    %cst_29 = arith.constant dense<0.000000e+00> : vector<512x128xf32>
    %68 = tpu.matmul %65, %67, %cst_29 {dimension_numbers = #tpu.dot_dimension_numbers<[1], [0], [0], [1], [0, 0, 1, 1], [], []>} : vector<512x128xbf16>, vector<128x128xbf16>, vector<512x128xf32> -> vector<512x128xf32>
    %c0_30 = arith.constant 0 : index
    %c0_31 = arith.constant 0 : index
    %69 = vector.load %arg10[%c0_30, %c0_31] : memref<1x128xf32, #tpu.memory_space<vmem>>, vector<1x128xf32>
    %70 = vector.broadcast %69 : vector<1x128xf32> to vector<512x128xf32>
    %71 = arith.addf %68, %70 : vector<512x128xf32>
    %cst_32 = arith.constant 0.000000e+00 : f32
    %72 = vector.broadcast %cst_32 : f32 to vector<512x128xf32>
    %73 = arith.maximumf %71, %72 : vector<512x128xf32>
    %74 = arith.truncf %73 : vector<512x128xf32> to vector<512x128xbf16>
    %c0_33 = arith.constant 0 : index
    %c0_34 = arith.constant 0 : index
    %75 = vector.load %arg11[%c0_33, %c0_34] : memref<128x128xbf16, #tpu.memory_space<vmem>>, vector<128x128xbf16>
    %cst_35 = arith.constant dense<0.000000e+00> : vector<512x128xf32>
    %76 = tpu.matmul %74, %75, %cst_35 {dimension_numbers = #tpu.dot_dimension_numbers<[1], [0], [0], [1], [0, 0, 1, 1], [], []>} : vector<512x128xbf16>, vector<128x128xbf16>, vector<512x128xf32> -> vector<512x128xf32>
    %77 = arith.addf %66, %76 : vector<512x128xf32>
    %78 = arith.addf %40, %77 : vector<512x128xf32>
    %c0_36 = arith.constant 0 : index
    %c0_37 = arith.constant 0 : index
    %79 = vector.load %arg12[%c0_36, %c0_37] : memref<1x128xf32, #tpu.memory_space<vmem>>, vector<1x128xf32>
    %80 = vector.broadcast %79 : vector<1x128xf32> to vector<512x128xf32>
    %81 = arith.addf %78, %80 : vector<512x128xf32>
    %c0_38 = arith.constant 0 : index
    %c0_39 = arith.constant 0 : index
    %82 = vector.load %arg13[%c0_38, %c0_39] : memref<512x128xf32, #tpu.memory_space<vmem>>, vector<512x128xf32>
    tpu.vector_store %arg13[%c0_38, %c0_39], %81 {strides = array<i32>} : memref<512x128xf32, #tpu.memory_space<vmem>>, vector<512x128xf32>,
    return
  }
  func.func @transform_0(%arg0: i32) -> (i32, i32) {
    %c0_i32 = arith.constant 0 : i32
    %c0_i32_0 = arith.constant 0 : i32
    return %arg0, %c0_i32 : i32, i32
  }
  func.func @transform_1(%arg0: i32) -> (i32, i32) {
    %c0_i32 = arith.constant 0 : i32
    %c0_i32_0 = arith.constant 0 : i32
    return %arg0, %c0_i32 : i32, i32
  }
  func.func @transform_2(%arg0: i32) -> (i32, i32) {
    %c0_i32 = arith.constant 0 : i32
    %c0_i32_0 = arith.constant 0 : i32
    %c0_i32_1 = arith.constant 0 : i32
    return %c0_i32, %c0_i32_0 : i32, i32
  }
  func.func @transform_3(%arg0: i32) -> (i32, i32) {
    %c0_i32 = arith.constant 0 : i32
    %c0_i32_0 = arith.constant 0 : i32
    %c0_i32_1 = arith.constant 0 : i32
    return %c0_i32, %c0_i32_0 : i32, i32
  }
  func.func @transform_4(%arg0: i32) -> (i32, i32) {
    %c0_i32 = arith.constant 0 : i32
    %c0_i32_0 = arith.constant 0 : i32
    %c0_i32_1 = arith.constant 0 : i32
    return %c0_i32, %c0_i32_0 : i32, i32
  }
  func.func @transform_5(%arg0: i32) -> (i32, i32) {
    %c0_i32 = arith.constant 0 : i32
    %c0_i32_0 = arith.constant 0 : i32
    %c0_i32_1 = arith.constant 0 : i32
    return %c0_i32, %c0_i32_0 : i32, i32
  }
  func.func @transform_6(%arg0: i32) -> (i32, i32) {
    %c0_i32 = arith.constant 0 : i32
    %c0_i32_0 = arith.constant 0 : i32
    %c0_i32_1 = arith.constant 0 : i32
    return %c0_i32, %c0_i32_0 : i32, i32
  }
  func.func @transform_7(%arg0: i32) -> (i32, i32) {
    %c0_i32 = arith.constant 0 : i32
    %c0_i32_0 = arith.constant 0 : i32
    %c0_i32_1 = arith.constant 0 : i32
    return %c0_i32, %c0_i32_0 : i32, i32
  }
  func.func @transform_8(%arg0: i32) -> (i32, i32) {
    %c0_i32 = arith.constant 0 : i32
    %c0_i32_0 = arith.constant 0 : i32
    %c0_i32_1 = arith.constant 0 : i32
    return %c0_i32, %c0_i32_0 : i32, i32
  }
  func.func @transform_9(%arg0: i32) -> (i32, i32) {
    %c0_i32 = arith.constant 0 : i32
    %c0_i32_0 = arith.constant 0 : i32
    %c0_i32_1 = arith.constant 0 : i32
    return %c0_i32, %c0_i32_0 : i32, i32
  }
  func.func @transform_10(%arg0: i32) -> (i32, i32) {
    %c0_i32 = arith.constant 0 : i32
    %c0_i32_0 = arith.constant 0 : i32
    %c0_i32_1 = arith.constant 0 : i32
    return %c0_i32, %c0_i32_0 : i32, i32
  }
  func.func @transform_11(%arg0: i32) -> (i32, i32) {
    %c0_i32 = arith.constant 0 : i32
    %c0_i32_0 = arith.constant 0 : i32
    %c0_i32_1 = arith.constant 0 : i32
    return %c0_i32, %c0_i32_0 : i32, i32
  }
  func.func @transform_12(%arg0: i32) -> (i32, i32) {
    %c0_i32 = arith.constant 0 : i32
    %c0_i32_0 = arith.constant 0 : i32
    return %arg0, %c0_i32 : i32, i32
  }
}

</mosaic_0001>

<llo_original>
// kernel: metaformer_no_block.2
$region0: #{metaformer_no_block.2}
  #allocation0 [shape = 'u32[]', space=smem, size = 0x4, offset = 0x4, fixed_abs, tag = 'smem constant byte address 0x4 - core index']
  #allocation1 [shape = 'u32[144,128]{1,0:T(1,128)}', space=vmem, size = 0x12000, scoped, tag = 'internal scratch']
  %s0 = inlined_call_operand.vmem [shape: f32[512,128], index: 0, kind: input, shape index: {}]
  %s1 = inlined_call_operand.vmem [shape: f32[1,128], index: 1, kind: input, shape index: {}]
  %s2 = inlined_call_operand.vmem [shape: f32[1,128], index: 2, kind: input, shape index: {}]
  %s3 = inlined_call_operand.vmem [shape: f32[512,128], index: 3, kind: output, shape index: {}]
  %s4 = sld [smem:[#allocation0]]
  $region22: #{metaformer_no_block.2} parent=0
    _
  %s6 = ssub.s32 1, %s4
  %s7 = scalar_select 0, %s6, %s4
  // Predicated region
  $region2: #{metaformer_no_block.2} parent=0 // pred_check
    _
  $region3: #{metaformer_no_block.2} parent=0 // pred_check_branch
    %9 = sbr.rel (0) target = $region5
  $region4: #{metaformer_no_block.2} parent=0 // pred_region
    _
  $region5: #{metaformer_no_block.2} parent=0 // pred_fallthru
    _
  // Predicated region
  $region6: #{metaformer_no_block.2} parent=0 // pred_check
    _
  $region7: #{metaformer_no_block.2} parent=0 // pred_check_branch
    %11 = sbr.rel (0) target = $region9
  $region8: #{metaformer_no_block.2} parent=0 // pred_region
    _
  $region9: #{metaformer_no_block.2} parent=0 // pred_fallthru
    _
  // Predicated region
  $region10: #{metaformer_no_block.2} parent=0 // pred_check
    _
  $region11: #{metaformer_no_block.2} parent=0 // pred_check_branch
    %13 = sbr.rel (0) target = $region13
  $region12: #{metaformer_no_block.2} parent=0 // pred_region
    _
  $region13: #{metaformer_no_block.2} parent=0 // pred_fallthru
    _
  %v14 = vld [vmem:[%s0] sm:$0xff]
  %v15 = vld [vmem:[%s0 + $0x8] sm:$0xff]
  %v16 = vld [vmem:[%s0 + $0x10] sm:$0xff]
  %v17 = vld [vmem:[%s0 + $0x18] sm:$0xff]
  %v18 = vld [vmem:[%s0 + $0x20] sm:$0xff]
  %v19 = vld [vmem:[%s0 + $0x28] sm:$0xff]
  %v20 = vld [vmem:[%s0 + $0x30] sm:$0xff]
  %v21 = vld [vmem:[%s0 + $0x38] sm:$0xff]
  %v22 = vld [vmem:[%s0 + $0x40] sm:$0xff]
  %v23 = vld [vmem:[%s0 + $0x48] sm:$0xff]
  %v24 = vld [vmem:[%s0 + $0x50] sm:$0xff]
  %v25 = vld [vmem:[%s0 + $0x58] sm:$0xff]
  %v26 = vld [vmem:[%s0 + $0x60] sm:$0xff]
  %v27 = vld [vmem:[%s0 + $0x68] sm:$0xff]
  %v28 = vld [vmem:[%s0 + $0x70] sm:$0xff]
  %v29 = vld [vmem:[%s0 + $0x78] sm:$0xff]
  %v30 = vld [vmem:[%s0 + $0x80] sm:$0xff]
  %v31 = vld [vmem:[%s0 + $0x88] sm:$0xff]
  %v32 = vld [vmem:[%s0 + $0x90] sm:$0xff]
  %v33 = vld [vmem:[%s0 + $0x98] sm:$0xff]
  %v34 = vld [vmem:[%s0 + $0xa0] sm:$0xff]
  %v35 = vld [vmem:[%s0 + $0xa8] sm:$0xff]
  %v36 = vld [vmem:[%s0 + $0xb0] sm:$0xff]
  %v37 = vld [vmem:[%s0 + $0xb8] sm:$0xff]
  %v38 = vld [vmem:[%s0 + $0xc0] sm:$0xff]
  %v39 = vld [vmem:[%s0 + $0xc8] sm:$0xff]
  %v40 = vld [vmem:[%s0 + $0xd0] sm:$0xff]
  %v41 = vld [vmem:[%s0 + $0xd8] sm:$0xff]
  %v42 = vld [vmem:[%s0 + $0xe0] sm:$0xff]
  %v43 = vld [vmem:[%s0 + $0xe8] sm:$0xff]
  %v44 = vld [vmem:[%s0 + $0xf0] sm:$0xff]
  %v45 = vld [vmem:[%s0 + $0xf8] sm:$0xff]
  %v46 = vld [vmem:[%s0 + $0x100] sm:$0xff]
  %v47 = vld [vmem:[%s0 + $0x108] sm:$0xff]
  %v48 = vld [vmem:[%s0 + $0x110] sm:$0xff]
  %v49 = vld [vmem:[%s0 + $0x118] sm:$0xff]
  %v50 = vld [vmem:[%s0 + $0x120] sm:$0xff]
  %v51 = vld [vmem:[%s0 + $0x128] sm:$0xff]
  %v52 = vld [vmem:[%s0 + $0x130] sm:$0xff]
  %v53 = vld [vmem:[%s0 + $0x138] sm:$0xff]
  %v54 = vld [vmem:[%s0 + $0x140] sm:$0xff]
  %v55 = vld [vmem:[%s0 + $0x148] sm:$0xff]
  %v56 = vld [vmem:[%s0 + $0x150] sm:$0xff]
  %v57 = vld [vmem:[%s0 + $0x158] sm:$0xff]
  %v58 = vld [vmem:[%s0 + $0x160] sm:$0xff]
  %v59 = vld [vmem:[%s0 + $0x168] sm:$0xff]
  %v60 = vld [vmem:[%s0 + $0x170] sm:$0xff]
  %v61 = vld [vmem:[%s0 + $0x178] sm:$0xff]
  %v62 = vld [vmem:[%s0 + $0x180] sm:$0xff]
  %v63 = vld [vmem:[%s0 + $0x188] sm:$0xff]
  %v64 = vld [vmem:[%s0 + $0x190] sm:$0xff]
  %v65 = vld [vmem:[%s0 + $0x198] sm:$0xff]
  %v66 = vld [vmem:[%s0 + $0x1a0] sm:$0xff]
  %v67 = vld [vmem:[%s0 + $0x1a8] sm:$0xff]
  %v68 = vld [vmem:[%s0 + $0x1b0] sm:$0xff]
  %v69 = vld [vmem:[%s0 + $0x1b8] sm:$0xff]
  %v70 = vld [vmem:[%s0 + $0x1c0] sm:$0xff]
  %v71 = vld [vmem:[%s0 + $0x1c8] sm:$0xff]
  %v72 = vld [vmem:[%s0 + $0x1d0] sm:$0xff]
  %v73 = vld [vmem:[%s0 + $0x1d8] sm:$0xff]
  %v74 = vld [vmem:[%s0 + $0x1e0] sm:$0xff]
  %v75 = vld [vmem:[%s0 + $0x1e8] sm:$0xff]
  %v76 = vld [vmem:[%s0 + $0x1f0] sm:$0xff]
  %v77 = vld [vmem:[%s0 + $0x1f8] sm:$0xff]
  %v78 = vlaneseq
  %v79 = vand.u32 %v78, 127
  %vm80 = vcmp.lt.s32.totalorder %v79, 4
  %v81 = vsel %vm80, 1, 0
  %v82 = vcvt.s32.f32 %v81
  %83 = vadd.xlane.f32.xlu0 %v14
  %v84 = vpop.xlane.xlu0 %83
  %85 = vadd.xlane.f32.xlu0 %v15
  %v86 = vpop.xlane.xlu0 %85
  %87 = vadd.xlane.f32.xlu0 %v16
  %v88 = vpop.xlane.xlu0 %87
  %89 = vadd.xlane.f32.xlu0 %v17
  %v90 = vpop.xlane.xlu0 %89
  %91 = vadd.xlane.f32.xlu0 %v18
  %v92 = vpop.xlane.xlu0 %91
  %93 = vadd.xlane.f32.xlu0 %v19
  %v94 = vpop.xlane.xlu0 %93
  %95 = vadd.xlane.f32.xlu0 %v20
  %v96 = vpop.xlane.xlu0 %95
  %97 = vadd.xlane.f32.xlu0 %v21
  %v98 = vpop.xlane.xlu0 %97
  %99 = vadd.xlane.f32.xlu0 %v22
  %v100 = vpop.xlane.xlu0 %99
  %101 = vadd.xlane.f32.xlu0 %v23
  %v102 = vpop.xlane.xlu0 %101
  %103 = vadd.xlane.f32.xlu0 %v24
  %v104 = vpop.xlane.xlu0 %103
  %105 = vadd.xlane.f32.xlu0 %v25
  %v106 = vpop.xlane.xlu0 %105
  %107 = vadd.xlane.f32.xlu0 %v26
  %v108 = vpop.xlane.xlu0 %107
  %109 = vadd.xlane.f32.xlu0 %v27
  %v110 = vpop.xlane.xlu0 %109
  %111 = vadd.xlane.f32.xlu0 %v28
  %v112 = vpop.xlane.xlu0 %111
  %113 = vadd.xlane.f32.xlu0 %v29
  %v114 = vpop.xlane.xlu0 %113
  %115 = vadd.xlane.f32.xlu0 %v30
  %v116 = vpop.xlane.xlu0 %115
  %117 = vadd.xlane.f32.xlu0 %v31
  %v118 = vpop.xlane.xlu0 %117
  %119 = vadd.xlane.f32.xlu0 %v32
  %v120 = vpop.xlane.xlu0 %119
  %121 = vadd.xlane.f32.xlu0 %v33
  %v122 = vpop.xlane.xlu0 %121
  %123 = vadd.xlane.f32.xlu0 %v34
  %v124 = vpop.xlane.xlu0 %123
  %125 = vadd.xlane.f32.xlu0 %v35
  %v126 = vpop.xlane.xlu0 %125
  %127 = vadd.xlane.f32.xlu0 %v36
  %v128 = vpop.xlane.xlu0 %127
  %129 = vadd.xlane.f32.xlu0 %v37
  %v130 = vpop.xlane.xlu0 %129
  %131 = vadd.xlane.f32.xlu0 %v38
  %v132 = vpop.xlane.xlu0 %131
  %133 = vadd.xlane.f32.xlu0 %v39
  %v134 = vpop.xlane.xlu0 %133
  %135 = vadd.xlane.f32.xlu0 %v40
  %v136 = vpop.xlane.xlu0 %135
  %137 = vadd.xlane.f32.xlu0 %v41
  %v138 = vpop.xlane.xlu0 %137
  %139 = vadd.xlane.f32.xlu0 %v42
  %v140 = vpop.xlane.xlu0 %139
  %141 = vadd.xlane.f32.xlu0 %v43
  %v142 = vpop.xlane.xlu0 %141
  %143 = vadd.xlane.f32.xlu0 %v44
  %v144 = vpop.xlane.xlu0 %143
  %145 = vadd.xlane.f32.xlu0 %v45
  %v146 = vpop.xlane.xlu0 %145
  %147 = vadd.xlane.f32.xlu0 %v46
  %v148 = vpop.xlane.xlu0 %147
  %149 = vadd.xlane.f32.xlu0 %v47
  %v150 = vpop.xlane.xlu0 %149
  %151 = vadd.xlane.f32.xlu0 %v48
  %v152 = vpop.xlane.xlu0 %151
  %153 = vadd.xlane.f32.xlu0 %v49
  %v154 = vpop.xlane.xlu0 %153
  %155 = vadd.xlane.f32.xlu0 %v50
  %v156 = vpop.xlane.xlu0 %155
  %157 = vadd.xlane.f32.xlu0 %v51
  %v158 = vpop.xlane.xlu0 %157
  %159 = vadd.xlane.f32.xlu0 %v52
  %v160 = vpop.xlane.xlu0 %159
  %161 = vadd.xlane.f32.xlu0 %v53
  %v162 = vpop.xlane.xlu0 %161
  %163 = vadd.xlane.f32.xlu0 %v54
  %v164 = vpop.xlane.xlu0 %163
  %165 = vadd.xlane.f32.xlu0 %v55
  %v166 = vpop.xlane.xlu0 %165
  %167 = vadd.xlane.f32.xlu0 %v56
  %v168 = vpop.xlane.xlu0 %167
  %169 = vadd.xlane.f32.xlu0 %v57
  %v170 = vpop.xlane.xlu0 %169
  %171 = vadd.xlane.f32.xlu0 %v58
  %v172 = vpop.xlane.xlu0 %171
  %173 = vadd.xlane.f32.xlu0 %v59
  %v174 = vpop.xlane.xlu0 %173
  %175 = vadd.xlane.f32.xlu0 %v60
  %v176 = vpop.xlane.xlu0 %175
  %177 = vadd.xlane.f32.xlu0 %v61
  %v178 = vpop.xlane.xlu0 %177
  %179 = vadd.xlane.f32.xlu0 %v62
  %v180 = vpop.xlane.xlu0 %179
  %181 = vadd.xlane.f32.xlu0 %v63
  %v182 = vpop.xlane.xlu0 %181
  %183 = vadd.xlane.f32.xlu0 %v64
  %v184 = vpop.xlane.xlu0 %183
  %185 = vadd.xlane.f32.xlu0 %v65
  %v186 = vpop.xlane.xlu0 %185
  %187 = vadd.xlane.f32.xlu0 %v66
  %v188 = vpop.xlane.xlu0 %187
  %189 = vadd.xlane.f32.xlu0 %v67
  %v190 = vpop.xlane.xlu0 %189
  %191 = vadd.xlane.f32.xlu0 %v68
  %v192 = vpop.xlane.xlu0 %191
  %193 = vadd.xlane.f32.xlu0 %v69
  %v194 = vpop.xlane.xlu0 %193
  %195 = vadd.xlane.f32.xlu0 %v70
  %v196 = vpop.xlane.xlu0 %195
  %197 = vadd.xlane.f32.xlu0 %v71
  %v198 = vpop.xlane.xlu0 %197
  %199 = vadd.xlane.f32.xlu0 %v72
  %v200 = vpop.xlane.xlu0 %199
  %201 = vadd.xlane.f32.xlu0 %v73
  %v202 = vpop.xlane.xlu0 %201
  %203 = vadd.xlane.f32.xlu0 %v74
  %v204 = vpop.xlane.xlu0 %203
  %205 = vadd.xlane.f32.xlu0 %v75
  %v206 = vpop.xlane.xlu0 %205
  %207 = vadd.xlane.f32.xlu0 %v76
  %v208 = vpop.xlane.xlu0 %207
  %209 = vadd.xlane.f32.xlu0 %v77
  %v210 = vpop.xlane.xlu0 %209
  %v211 = vmul.f32 %v84, 0.25
  %v212 = vmul.f32 %v86, 0.25
  %v213 = vmul.f32 %v88, 0.25
  %v214 = vmul.f32 %v90, 0.25
  %v215 = vmul.f32 %v92, 0.25
  %v216 = vmul.f32 %v94, 0.25
  %v217 = vmul.f32 %v96, 0.25
  %v218 = vmul.f32 %v98, 0.25
  %v219 = vmul.f32 %v100, 0.25
  %v220 = vmul.f32 %v102, 0.25
  %v221 = vmul.f32 %v104, 0.25
  %v222 = vmul.f32 %v106, 0.25
  %v223 = vmul.f32 %v108, 0.25
  %v224 = vmul.f32 %v110, 0.25
  %v225 = vmul.f32 %v112, 0.25
  %v226 = vmul.f32 %v114, 0.25
  %v227 = vmul.f32 %v116, 0.25
  %v228 = vmul.f32 %v118, 0.25
  %v229 = vmul.f32 %v120, 0.25
  %v230 = vmul.f32 %v122, 0.25
  %v231 = vmul.f32 %v124, 0.25
  %v232 = vmul.f32 %v126, 0.25
  %v233 = vmul.f32 %v128, 0.25
  %v234 = vmul.f32 %v130, 0.25
  %v235 = vmul.f32 %v132, 0.25
  %v236 = vmul.f32 %v134, 0.25
  %v237 = vmul.f32 %v136, 0.25
  %v238 = vmul.f32 %v138, 0.25
  %v239 = vmul.f32 %v140, 0.25
  %v240 = vmul.f32 %v142, 0.25
  %v241 = vmul.f32 %v144, 0.25
  %v242 = vmul.f32 %v146, 0.25
  %v243 = vmul.f32 %v148, 0.25
  %v244 = vmul.f32 %v150, 0.25
  %v245 = vmul.f32 %v152, 0.25
  %v246 = vmul.f32 %v154, 0.25
  %v247 = vmul.f32 %v156, 0.25
  %v248 = vmul.f32 %v158, 0.25
  %v249 = vmul.f32 %v160, 0.25
  %v250 = vmul.f32 %v162, 0.25
  %v251 = vmul.f32 %v164, 0.25
  %v252 = vmul.f32 %v166, 0.25
  %v253 = vmul.f32 %v168, 0.25
  %v254 = vmul.f32 %v170, 0.25
  %v255 = vmul.f32 %v172, 0.25
  %v256 = vmul.f32 %v174, 0.25
  %v257 = vmul.f32 %v176, 0.25
  %v258 = vmul.f32 %v178, 0.25
  %v259 = vmul.f32 %v180, 0.25
  %v260 = vmul.f32 %v182, 0.25
  %v261 = vmul.f32 %v184, 0.25
  %v262 = vmul.f32 %v186, 0.25
  %v263 = vmul.f32 %v188, 0.25
  %v264 = vmul.f32 %v190, 0.25
  %v265 = vmul.f32 %v192, 0.25
  %v266 = vmul.f32 %v194, 0.25
  %v267 = vmul.f32 %v196, 0.25
  %v268 = vmul.f32 %v198, 0.25
  %v269 = vmul.f32 %v200, 0.25
  %v270 = vmul.f32 %v202, 0.25
  %v271 = vmul.f32 %v204, 0.25
  %v272 = vmul.f32 %v206, 0.25
  %v273 = vmul.f32 %v208, 0.25
  %v274 = vmul.f32 %v210, 0.25
  %v275 = vsub.f32 %v14, %v211
  %v276 = vsub.f32 %v15, %v212
  %v277 = vsub.f32 %v16, %v213
  %v278 = vsub.f32 %v17, %v214
  %v279 = vsub.f32 %v18, %v215
  %v280 = vsub.f32 %v19, %v216
  %v281 = vsub.f32 %v20, %v217
  %v282 = vsub.f32 %v21, %v218
  %v283 = vsub.f32 %v22, %v219
  %v284 = vsub.f32 %v23, %v220
  %v285 = vsub.f32 %v24, %v221
  %v286 = vsub.f32 %v25, %v222
  %v287 = vsub.f32 %v26, %v223
  %v288 = vsub.f32 %v27, %v224
  %v289 = vsub.f32 %v28, %v225
  %v290 = vsub.f32 %v29, %v226
  %v291 = vsub.f32 %v30, %v227
  %v292 = vsub.f32 %v31, %v228
  %v293 = vsub.f32 %v32, %v229
  %v294 = vsub.f32 %v33, %v230
  %v295 = vsub.f32 %v34, %v231
  %v296 = vsub.f32 %v35, %v232
  %v297 = vsub.f32 %v36, %v233
  %v298 = vsub.f32 %v37, %v234
  %v299 = vsub.f32 %v38, %v235
  %v300 = vsub.f32 %v39, %v236
  %v301 = vsub.f32 %v40, %v237
  %v302 = vsub.f32 %v41, %v238
  %v303 = vsub.f32 %v42, %v239
  %v304 = vsub.f32 %v43, %v240
  %v305 = vsub.f32 %v44, %v241
  %v306 = vsub.f32 %v45, %v242
  %v307 = vsub.f32 %v46, %v243
  %v308 = vsub.f32 %v47, %v244
  %v309 = vsub.f32 %v48, %v245
  %v310 = vsub.f32 %v49, %v246
  %v311 = vsub.f32 %v50, %v247
  %v312 = vsub.f32 %v51, %v248
  %v313 = vsub.f32 %v52, %v249
  %v314 = vsub.f32 %v53, %v250
  %v315 = vsub.f32 %v54, %v251
  %v316 = vsub.f32 %v55, %v252
  %v317 = vsub.f32 %v56, %v253
  %v318 = vsub.f32 %v57, %v254
  %v319 = vsub.f32 %v58, %v255
  %v320 = vsub.f32 %v59, %v256
  %v321 = vsub.f32 %v60, %v257
  %v322 = vsub.f32 %v61, %v258
  %v323 = vsub.f32 %v62, %v259
  %v324 = vsub.f32 %v63, %v260
  %v325 = vsub.f32 %v64, %v261
  %v326 = vsub.f32 %v65, %v262
  %v327 = vsub.f32 %v66, %v263
  %v328 = vsub.f32 %v67, %v264
  %v329 = vsub.f32 %v68, %v265
  %v330 = vsub.f32 %v69, %v266
  %v331 = vsub.f32 %v70, %v267
  %v332 = vsub.f32 %v71, %v268
  %v333 = vsub.f32 %v72, %v269
  %v334 = vsub.f32 %v73, %v270
  %v335 = vsub.f32 %v74, %v271
  %v336 = vsub.f32 %v75, %v272
  %v337 = vsub.f32 %v76, %v273
  %v338 = vsub.f32 %v77, %v274
  %v339 = vmul.f32 %v275, %v82
  %v340 = vmul.f32 %v276, %v82
  %v341 = vmul.f32 %v277, %v82
  %v342 = vmul.f32 %v278, %v82
  %v343 = vmul.f32 %v279, %v82
  %v344 = vmul.f32 %v280, %v82
  %v345 = vmul.f32 %v281, %v82
  %v346 = vmul.f32 %v282, %v82
  %v347 = vmul.f32 %v283, %v82
  %v348 = vmul.f32 %v284, %v82
  %v349 = vmul.f32 %v285, %v82
  %v350 = vmul.f32 %v286, %v82
  %v351 = vmul.f32 %v287, %v82
  %v352 = vmul.f32 %v288, %v82
  %v353 = vmul.f32 %v289, %v82
  %v354 = vmul.f32 %v290, %v82
  %v355 = vmul.f32 %v291, %v82
  %v356 = vmul.f32 %v292, %v82
  %v357 = vmul.f32 %v293, %v82
  %v358 = vmul.f32 %v294, %v82
  %v359 = vmul.f32 %v295, %v82
  %v360 = vmul.f32 %v296, %v82
  %v361 = vmul.f32 %v297, %v82
  %v362 = vmul.f32 %v298, %v82
  %v363 = vmul.f32 %v299, %v82
  %v364 = vmul.f32 %v300, %v82
  %v365 = vmul.f32 %v301, %v82
  %v366 = vmul.f32 %v302, %v82
  %v367 = vmul.f32 %v303, %v82
  %v368 = vmul.f32 %v304, %v82
  %v369 = vmul.f32 %v305, %v82
  %v370 = vmul.f32 %v306, %v82
  %v371 = vmul.f32 %v307, %v82
  %v372 = vmul.f32 %v308, %v82
  %v373 = vmul.f32 %v309, %v82
  %v374 = vmul.f32 %v310, %v82
  %v375 = vmul.f32 %v311, %v82
  %v376 = vmul.f32 %v312, %v82
  %v377 = vmul.f32 %v313, %v82
  %v378 = vmul.f32 %v314, %v82
  %v379 = vmul.f32 %v315, %v82
  %v380 = vmul.f32 %v316, %v82
  %v381 = vmul.f32 %v317, %v82
  %v382 = vmul.f32 %v318, %v82
  %v383 = vmul.f32 %v319, %v82
  %v384 = vmul.f32 %v320, %v82
  %v385 = vmul.f32 %v321, %v82
  %v386 = vmul.f32 %v322, %v82
  %v387 = vmul.f32 %v323, %v82
  %v388 = vmul.f32 %v324, %v82
  %v389 = vmul.f32 %v325, %v82
  %v390 = vmul.f32 %v326, %v82
  %v391 = vmul.f32 %v327, %v82
  %v392 = vmul.f32 %v328, %v82
  %v393 = vmul.f32 %v329, %v82
  %v394 = vmul.f32 %v330, %v82
  %v395 = vmul.f32 %v331, %v82
  %v396 = vmul.f32 %v332, %v82
  %v397 = vmul.f32 %v333, %v82
  %v398 = vmul.f32 %v334, %v82
  %v399 = vmul.f32 %v335, %v82
  %v400 = vmul.f32 %v336, %v82
  %v401 = vmul.f32 %v337, %v82
  %v402 = vmul.f32 %v338, %v82
  %v403 = vmul.f32 %v339, %v339
  %v404 = vmul.f32 %v340, %v340
  %v405 = vmul.f32 %v341, %v341
  %v406 = vmul.f32 %v342, %v342
  %v407 = vmul.f32 %v343, %v343
  %v408 = vmul.f32 %v344, %v344
  %v409 = vmul.f32 %v345, %v345
  %v410 = vmul.f32 %v346, %v346
  %v411 = vmul.f32 %v347, %v347
  %v412 = vmul.f32 %v348, %v348
  %v413 = vmul.f32 %v349, %v349
  %v414 = vmul.f32 %v350, %v350
  %v415 = vmul.f32 %v351, %v351
  %v416 = vmul.f32 %v352, %v352
  %v417 = vmul.f32 %v353, %v353
  %v418 = vmul.f32 %v354, %v354
  %v419 = vmul.f32 %v355, %v355
  %v420 = vmul.f32 %v356, %v356
  %v421 = vmul.f32 %v357, %v357
  %v422 = vmul.f32 %v358, %v358
  %v423 = vmul.f32 %v359, %v359
  %v424 = vmul.f32 %v360, %v360
  %v425 = vmul.f32 %v361, %v361
  %v426 = vmul.f32 %v362, %v362
  %v427 = vmul.f32 %v363, %v363
  %v428 = vmul.f32 %v364, %v364
  %v429 = vmul.f32 %v365, %v365
  %v430 = vmul.f32 %v366, %v366
  %v431 = vmul.f32 %v367, %v367
  %v432 = vmul.f32 %v368, %v368
  %v433 = vmul.f32 %v369, %v369
  %v434 = vmul.f32 %v370, %v370
  %v435 = vmul.f32 %v371, %v371
  %v436 = vmul.f32 %v372, %v372
  %v437 = vmul.f32 %v373, %v373
  %v438 = vmul.f32 %v374, %v374
  %v439 = vmul.f32 %v375, %v375
  %v440 = vmul.f32 %v376, %v376
  %v441 = vmul.f32 %v377, %v377
  %v442 = vmul.f32 %v378, %v378
  %v443 = vmul.f32 %v379, %v379
  %v444 = vmul.f32 %v380, %v380
  %v445 = vmul.f32 %v381, %v381
  %v446 = vmul.f32 %v382, %v382
  %v447 = vmul.f32 %v383, %v383
  %v448 = vmul.f32 %v384, %v384
  %v449 = vmul.f32 %v385, %v385
  %v450 = vmul.f32 %v386, %v386
  %v451 = vmul.f32 %v387, %v387
  %v452 = vmul.f32 %v388, %v388
  %v453 = vmul.f32 %v389, %v389
  %v454 = vmul.f32 %v390, %v390
  %v455 = vmul.f32 %v391, %v391
  %v456 = vmul.f32 %v392, %v392
  %v457 = vmul.f32 %v393, %v393
  %v458 = vmul.f32 %v394, %v394
  %v459 = vmul.f32 %v395, %v395
  %v460 = vmul.f32 %v396, %v396
  %v461 = vmul.f32 %v397, %v397
  %v462 = vmul.f32 %v398, %v398
  %v463 = vmul.f32 %v399, %v399
  %v464 = vmul.f32 %v400, %v400
  %v465 = vmul.f32 %v401, %v401
  %v466 = vmul.f32 %v402, %v402
  %467 = vadd.xlane.f32.xlu0 %v403
  %v468 = vpop.xlane.xlu0 %467
  %469 = vadd.xlane.f32.xlu0 %v404
  %v470 = vpop.xlane.xlu0 %469
  %471 = vadd.xlane.f32.xlu0 %v405
  %v472 = vpop.xlane.xlu0 %471
  %473 = vadd.xlane.f32.xlu0 %v406
  %v474 = vpop.xlane.xlu0 %473
  %475 = vadd.xlane.f32.xlu0 %v407
  %v476 = vpop.xlane.xlu0 %475
  %477 = vadd.xlane.f32.xlu0 %v408
  %v478 = vpop.xlane.xlu0 %477
  %479 = vadd.xlane.f32.xlu0 %v409
  %v480 = vpop.xlane.xlu0 %479
  %481 = vadd.xlane.f32.xlu0 %v410
  %v482 = vpop.xlane.xlu0 %481
  %483 = vadd.xlane.f32.xlu0 %v411
  %v484 = vpop.xlane.xlu0 %483
  %485 = vadd.xlane.f32.xlu0 %v412
  %v486 = vpop.xlane.xlu0 %485
  %487 = vadd.xlane.f32.xlu0 %v413
  %v488 = vpop.xlane.xlu0 %487
  %489 = vadd.xlane.f32.xlu0 %v414
  %v490 = vpop.xlane.xlu0 %489
  %491 = vadd.xlane.f32.xlu0 %v415
  %v492 = vpop.xlane.xlu0 %491
  %493 = vadd.xlane.f32.xlu0 %v416
  %v494 = vpop.xlane.xlu0 %493
  %495 = vadd.xlane.f32.xlu0 %v417
  %v496 = vpop.xlane.xlu0 %495
  %497 = vadd.xlane.f32.xlu0 %v418
  %v498 = vpop.xlane.xlu0 %497
  %499 = vadd.xlane.f32.xlu0 %v419
  %v500 = vpop.xlane.xlu0 %499
  %501 = vadd.xlane.f32.xlu0 %v420
  %v502 = vpop.xlane.xlu0 %501
  %503 = vadd.xlane.f32.xlu0 %v421
  %v504 = vpop.xlane.xlu0 %503
  %505 = vadd.xlane.f32.xlu0 %v422
  %v506 = vpop.xlane.xlu0 %505
  %507 = vadd.xlane.f32.xlu0 %v423
  %v508 = vpop.xlane.xlu0 %507
  %509 = vadd.xlane.f32.xlu0 %v424
  %v510 = vpop.xlane.xlu0 %509
  %511 = vadd.xlane.f32.xlu0 %v425
  %v512 = vpop.xlane.xlu0 %511
  %513 = vadd.xlane.f32.xlu0 %v426
  %v514 = vpop.xlane.xlu0 %513
  %515 = vadd.xlane.f32.xlu0 %v427
  %v516 = vpop.xlane.xlu0 %515
  %517 = vadd.xlane.f32.xlu0 %v428
  %v518 = vpop.xlane.xlu0 %517
  %519 = vadd.xlane.f32.xlu0 %v429
  %v520 = vpop.xlane.xlu0 %519
  %521 = vadd.xlane.f32.xlu0 %v430
  %v522 = vpop.xlane.xlu0 %521
  %523 = vadd.xlane.f32.xlu0 %v431
  %v524 = vpop.xlane.xlu0 %523
  %525 = vadd.xlane.f32.xlu0 %v432
  %v526 = vpop.xlane.xlu0 %525
  %527 = vadd.xlane.f32.xlu0 %v433
  %v528 = vpop.xlane.xlu0 %527
  %529 = vadd.xlane.f32.xlu0 %v434
  %v530 = vpop.xlane.xlu0 %529
  %531 = vadd.xlane.f32.xlu0 %v435
  %v532 = vpop.xlane.xlu0 %531
  %533 = vadd.xlane.f32.xlu0 %v436
  %v534 = vpop.xlane.xlu0 %533
  %535 = vadd.xlane.f32.xlu0 %v437
  %v536 = vpop.xlane.xlu0 %535
  %537 = vadd.xlane.f32.xlu0 %v438
  %v538 = vpop.xlane.xlu0 %537
  %539 = vadd.xlane.f32.xlu0 %v439
  %v540 = vpop.xlane.xlu0 %539
  %541 = vadd.xlane.f32.xlu0 %v440
  %v542 = vpop.xlane.xlu0 %541
  %543 = vadd.xlane.f32.xlu0 %v441
  %v544 = vpop.xlane.xlu0 %543
  %545 = vadd.xlane.f32.xlu0 %v442
  %v546 = vpop.xlane.xlu0 %545
  %547 = vadd.xlane.f32.xlu0 %v443
  %v548 = vpop.xlane.xlu0 %547
  %549 = vadd.xlane.f32.xlu0 %v444
  %v550 = vpop.xlane.xlu0 %549
  %551 = vadd.xlane.f32.xlu0 %v445
  %v552 = vpop.xlane.xlu0 %551
  %553 = vadd.xlane.f32.xlu0 %v446
  %v554 = vpop.xlane.xlu0 %553
  %555 = vadd.xlane.f32.xlu0 %v447
  %v556 = vpop.xlane.xlu0 %555
  %557 = vadd.xlane.f32.xlu0 %v448
  %v558 = vpop.xlane.xlu0 %557
  %559 = vadd.xlane.f32.xlu0 %v449
  %v560 = vpop.xlane.xlu0 %559
  %561 = vadd.xlane.f32.xlu0 %v450
  %v562 = vpop.xlane.xlu0 %561
  %563 = vadd.xlane.f32.xlu0 %v451
  %v564 = vpop.xlane.xlu0 %563
  %565 = vadd.xlane.f32.xlu0 %v452
  %v566 = vpop.xlane.xlu0 %565
  %567 = vadd.xlane.f32.xlu0 %v453
  %v568 = vpop.xlane.xlu0 %567
  %569 = vadd.xlane.f32.xlu0 %v454
  %v570 = vpop.xlane.xlu0 %569
  %571 = vadd.xlane.f32.xlu0 %v455
  %v572 = vpop.xlane.xlu0 %571
  %573 = vadd.xlane.f32.xlu0 %v456
  %v574 = vpop.xlane.xlu0 %573
  %575 = vadd.xlane.f32.xlu0 %v457
  %v576 = vpop.xlane.xlu0 %575
  %577 = vadd.xlane.f32.xlu0 %v458
  %v578 = vpop.xlane.xlu0 %577
  %579 = vadd.xlane.f32.xlu0 %v459
  %v580 = vpop.xlane.xlu0 %579
  %581 = vadd.xlane.f32.xlu0 %v460
  %v582 = vpop.xlane.xlu0 %581
  %583 = vadd.xlane.f32.xlu0 %v461
  %v584 = vpop.xlane.xlu0 %583
  %585 = vadd.xlane.f32.xlu0 %v462
  %v586 = vpop.xlane.xlu0 %585
  %587 = vadd.xlane.f32.xlu0 %v463
  %v588 = vpop.xlane.xlu0 %587
  %589 = vadd.xlane.f32.xlu0 %v464
  %v590 = vpop.xlane.xlu0 %589
  %591 = vadd.xlane.f32.xlu0 %v465
  %v592 = vpop.xlane.xlu0 %591
  %593 = vadd.xlane.f32.xlu0 %v466
  %v594 = vpop.xlane.xlu0 %593
  %v595 = vmul.f32 %v468, 0.25
  %v596 = vmul.f32 %v470, 0.25
  %v597 = vmul.f32 %v472, 0.25
  %v598 = vmul.f32 %v474, 0.25
  %v599 = vmul.f32 %v476, 0.25
  %v600 = vmul.f32 %v478, 0.25
  %v601 = vmul.f32 %v480, 0.25
  %v602 = vmul.f32 %v482, 0.25
  %v603 = vmul.f32 %v484, 0.25
  %v604 = vmul.f32 %v486, 0.25
  %v605 = vmul.f32 %v488, 0.25
  %v606 = vmul.f32 %v490, 0.25
  %v607 = vmul.f32 %v492, 0.25
  %v608 = vmul.f32 %v494, 0.25
  %v609 = vmul.f32 %v496, 0.25
  %v610 = vmul.f32 %v498, 0.25
  %v611 = vmul.f32 %v500, 0.25
  %v612 = vmul.f32 %v502, 0.25
  %v613 = vmul.f32 %v504, 0.25
  %v614 = vmul.f32 %v506, 0.25
  %v615 = vmul.f32 %v508, 0.25
  %v616 = vmul.f32 %v510, 0.25
  %v617 = vmul.f32 %v512, 0.25
  %v618 = vmul.f32 %v514, 0.25
  %v619 = vmul.f32 %v516, 0.25
  %v620 = vmul.f32 %v518, 0.25
  %v621 = vmul.f32 %v520, 0.25
  %v622 = vmul.f32 %v522, 0.25
  %v623 = vmul.f32 %v524, 0.25
  %v624 = vmul.f32 %v526, 0.25
  %v625 = vmul.f32 %v528, 0.25
  %v626 = vmul.f32 %v530, 0.25
  %v627 = vmul.f32 %v532, 0.25
  %v628 = vmul.f32 %v534, 0.25
  %v629 = vmul.f32 %v536, 0.25
  %v630 = vmul.f32 %v538, 0.25
  %v631 = vmul.f32 %v540, 0.25
  %v632 = vmul.f32 %v542, 0.25
  %v633 = vmul.f32 %v544, 0.25
  %v634 = vmul.f32 %v546, 0.25
  %v635 = vmul.f32 %v548, 0.25
  %v636 = vmul.f32 %v550, 0.25
  %v637 = vmul.f32 %v552, 0.25
  %v638 = vmul.f32 %v554, 0.25
  %v639 = vmul.f32 %v556, 0.25
  %v640 = vmul.f32 %v558, 0.25
  %v641 = vmul.f32 %v560, 0.25
  %v642 = vmul.f32 %v562, 0.25
  %v643 = vmul.f32 %v564, 0.25
  %v644 = vmul.f32 %v566, 0.25
  %v645 = vmul.f32 %v568, 0.25
  %v646 = vmul.f32 %v570, 0.25
  %v647 = vmul.f32 %v572, 0.25
  %v648 = vmul.f32 %v574, 0.25
  %v649 = vmul.f32 %v576, 0.25
  %v650 = vmul.f32 %v578, 0.25
  %v651 = vmul.f32 %v580, 0.25
  %v652 = vmul.f32 %v582, 0.25
  %v653 = vmul.f32 %v584, 0.25
  %v654 = vmul.f32 %v586, 0.25
  %v655 = vmul.f32 %v588, 0.25
  %v656 = vmul.f32 %v590, 0.25
  %v657 = vmul.f32 %v592, 0.25
  %v658 = vmul.f32 %v594, 0.25
  %v659 = vadd.f32 %v595, 1e-05
  %v660 = vadd.f32 %v596, 1e-05
  %v661 = vadd.f32 %v597, 1e-05
  %v662 = vadd.f32 %v598, 1e-05
  %v663 = vadd.f32 %v599, 1e-05
  %v664 = vadd.f32 %v600, 1e-05
  %v665 = vadd.f32 %v601, 1e-05
  %v666 = vadd.f32 %v602, 1e-05
  %v667 = vadd.f32 %v603, 1e-05
  %v668 = vadd.f32 %v604, 1e-05
  %v669 = vadd.f32 %v605, 1e-05
  %v670 = vadd.f32 %v606, 1e-05
  %v671 = vadd.f32 %v607, 1e-05
  %v672 = vadd.f32 %v608, 1e-05
  %v673 = vadd.f32 %v609, 1e-05
  %v674 = vadd.f32 %v610, 1e-05
  %v675 = vadd.f32 %v611, 1e-05
  %v676 = vadd.f32 %v612, 1e-05
  %v677 = vadd.f32 %v613, 1e-05
  %v678 = vadd.f32 %v614, 1e-05
  %v679 = vadd.f32 %v615, 1e-05
  %v680 = vadd.f32 %v616, 1e-05
  %v681 = vadd.f32 %v617, 1e-05
  %v682 = vadd.f32 %v618, 1e-05
  %v683 = vadd.f32 %v619, 1e-05
  %v684 = vadd.f32 %v620, 1e-05
  %v685 = vadd.f32 %v621, 1e-05
  %v686 = vadd.f32 %v622, 1e-05
  %v687 = vadd.f32 %v623, 1e-05
  %v688 = vadd.f32 %v624, 1e-05
  %v689 = vadd.f32 %v625, 1e-05
  %v690 = vadd.f32 %v626, 1e-05
  %v691 = vadd.f32 %v627, 1e-05
  %v692 = vadd.f32 %v628, 1e-05
  %v693 = vadd.f32 %v629, 1e-05
  %v694 = vadd.f32 %v630, 1e-05
  %v695 = vadd.f32 %v631, 1e-05
  %v696 = vadd.f32 %v632, 1e-05
  %v697 = vadd.f32 %v633, 1e-05
  %v698 = vadd.f32 %v634, 1e-05
  %v699 = vadd.f32 %v635, 1e-05
  %v700 = vadd.f32 %v636, 1e-05
  %v701 = vadd.f32 %v637, 1e-05
  %v702 = vadd.f32 %v638, 1e-05
  %v703 = vadd.f32 %v639, 1e-05
  %v704 = vadd.f32 %v640, 1e-05
  %v705 = vadd.f32 %v641, 1e-05
  %v706 = vadd.f32 %v642, 1e-05
  %v707 = vadd.f32 %v643, 1e-05
  %v708 = vadd.f32 %v644, 1e-05
  %v709 = vadd.f32 %v645, 1e-05
  %v710 = vadd.f32 %v646, 1e-05
  %v711 = vadd.f32 %v647, 1e-05
  %v712 = vadd.f32 %v648, 1e-05
  %v713 = vadd.f32 %v649, 1e-05
  %v714 = vadd.f32 %v650, 1e-05
  %v715 = vadd.f32 %v651, 1e-05
  %v716 = vadd.f32 %v652, 1e-05
  %v717 = vadd.f32 %v653, 1e-05
  %v718 = vadd.f32 %v654, 1e-05
  %v719 = vadd.f32 %v655, 1e-05
  %v720 = vadd.f32 %v656, 1e-05
  %v721 = vadd.f32 %v657, 1e-05
  %v722 = vadd.f32 %v658, 1e-05
  %v723 = vrsqrt.pop %v659
  %v724 = vrsqrt.pop %v660
  %v725 = vrsqrt.pop %v661
  %v726 = vrsqrt.pop %v662
  %v727 = vrsqrt.pop %v663
  %v728 = vrsqrt.pop %v664
  %v729 = vrsqrt.pop %v665
  %v730 = vrsqrt.pop %v666
  %v731 = vrsqrt.pop %v667
  %v732 = vrsqrt.pop %v668
  %v733 = vrsqrt.pop %v669
  %v734 = vrsqrt.pop %v670
  %v735 = vrsqrt.pop %v671
  %v736 = vrsqrt.pop %v672
  %v737 = vrsqrt.pop %v673
  %v738 = vrsqrt.pop %v674
  %v739 = vrsqrt.pop %v675
  %v740 = vrsqrt.pop %v676
  %v741 = vrsqrt.pop %v677
  %v742 = vrsqrt.pop %v678
  %v743 = vrsqrt.pop %v679
  %v744 = vrsqrt.pop %v680
  %v745 = vrsqrt.pop %v681
  %v746 = vrsqrt.pop %v682
  %v747 = vrsqrt.pop %v683
  %v748 = vrsqrt.pop %v684
  %v749 = vrsqrt.pop %v685
  %v750 = vrsqrt.pop %v686
  %v751 = vrsqrt.pop %v687
  %v752 = vrsqrt.pop %v688
  %v753 = vrsqrt.pop %v689
  %v754 = vrsqrt.pop %v690
  %v755 = vrsqrt.pop %v691
  %v756 = vrsqrt.pop %v692
  %v757 = vrsqrt.pop %v693
  %v758 = vrsqrt.pop %v694
  %v759 = vrsqrt.pop %v695
  %v760 = vrsqrt.pop %v696
  %v761 = vrsqrt.pop %v697
  %v762 = vrsqrt.pop %v698
  %v763 = vrsqrt.pop %v699
  %v764 = vrsqrt.pop %v700
  %v765 = vrsqrt.pop %v701
  %v766 = vrsqrt.pop %v702
  %v767 = vrsqrt.pop %v703
  %v768 = vrsqrt.pop %v704
  %v769 = vrsqrt.pop %v705
  %v770 = vrsqrt.pop %v706
  %v771 = vrsqrt.pop %v707
  %v772 = vrsqrt.pop %v708
  %v773 = vrsqrt.pop %v709
  %v774 = vrsqrt.pop %v710
  %v775 = vrsqrt.pop %v711
  %v776 = vrsqrt.pop %v712
  %v777 = vrsqrt.pop %v713
  %v778 = vrsqrt.pop %v714
  %v779 = vrsqrt.pop %v715
  %v780 = vrsqrt.pop %v716
  %v781 = vrsqrt.pop %v717
  %v782 = vrsqrt.pop %v718
  %v783 = vrsqrt.pop %v719
  %v784 = vrsqrt.pop %v720
  %v785 = vrsqrt.pop %v721
  %v786 = vrsqrt.pop %v722
  %v787 = vmul.f32 %v339, %v723
  %v788 = vmul.f32 %v340, %v724
  %v789 = vmul.f32 %v341, %v725
  %v790 = vmul.f32 %v342, %v726
  %v791 = vmul.f32 %v343, %v727
  %v792 = vmul.f32 %v344, %v728
  %v793 = vmul.f32 %v345, %v729
  %v794 = vmul.f32 %v346, %v730
  %v795 = vmul.f32 %v347, %v731
  %v796 = vmul.f32 %v348, %v732
  %v797 = vmul.f32 %v349, %v733
  %v798 = vmul.f32 %v350, %v734
  %v799 = vmul.f32 %v351, %v735
  %v800 = vmul.f32 %v352, %v736
  %v801 = vmul.f32 %v353, %v737
  %v802 = vmul.f32 %v354, %v738
  %v803 = vmul.f32 %v355, %v739
  %v804 = vmul.f32 %v356, %v740
  %v805 = vmul.f32 %v357, %v741
  %v806 = vmul.f32 %v358, %v742
  %v807 = vmul.f32 %v359, %v743
  %v808 = vmul.f32 %v360, %v744
  %v809 = vmul.f32 %v361, %v745
  %v810 = vmul.f32 %v362, %v746
  %v811 = vmul.f32 %v363, %v747
  %v812 = vmul.f32 %v364, %v748
  %v813 = vmul.f32 %v365, %v749
  %v814 = vmul.f32 %v366, %v750
  %v815 = vmul.f32 %v367, %v751
  %v816 = vmul.f32 %v368, %v752
  %v817 = vmul.f32 %v369, %v753
  %v818 = vmul.f32 %v370, %v754
  %v819 = vmul.f32 %v371, %v755
  %v820 = vmul.f32 %v372, %v756
  %v821 = vmul.f32 %v373, %v757
  %v822 = vmul.f32 %v374, %v758
  %v823 = vmul.f32 %v375, %v759
  %v824 = vmul.f32 %v376, %v760
  %v825 = vmul.f32 %v377, %v761
  %v826 = vmul.f32 %v378, %v762
  %v827 = vmul.f32 %v379, %v763
  %v828 = vmul.f32 %v380, %v764
  %v829 = vmul.f32 %v381, %v765
  %v830 = vmul.f32 %v382, %v766
  %v831 = vmul.f32 %v383, %v767
  %v832 = vmul.f32 %v384, %v768
  %v833 = vmul.f32 %v385, %v769
  %v834 = vmul.f32 %v386, %v770
  %v835 = vmul.f32 %v387, %v771
  %v836 = vmul.f32 %v388, %v772
  %v837 = vmul.f32 %v389, %v773
  %v838 = vmul.f32 %v390, %v774
  %v839 = vmul.f32 %v391, %v775
  %v840 = vmul.f32 %v392, %v776
  %v841 = vmul.f32 %v393, %v777
  %v842 = vmul.f32 %v394, %v778
  %v843 = vmul.f32 %v395, %v779
  %v844 = vmul.f32 %v396, %v780
  %v845 = vmul.f32 %v397, %v781
  %v846 = vmul.f32 %v398, %v782
  %v847 = vmul.f32 %v399, %v783
  %v848 = vmul.f32 %v400, %v784
  %v849 = vmul.f32 %v401, %v785
  %v850 = vmul.f32 %v402, %v786
  %v851 = vld [vmem:[%s1] sm:$0x1]
  %v853 = vlaneseq
  %v854 = vshrl.u32 %v853, 7
  %v855 = vsub.s32 0, %v854
  %v856 = vrot.slane %v851, %v855
  %v858 = vmul.f32 %v787, %v856
  %v859 = vmul.f32 %v788, %v856
  %v860 = vmul.f32 %v789, %v856
  %v861 = vmul.f32 %v790, %v856
  %v862 = vmul.f32 %v791, %v856
  %v863 = vmul.f32 %v792, %v856
  %v864 = vmul.f32 %v793, %v856
  %v865 = vmul.f32 %v794, %v856
  %v866 = vmul.f32 %v795, %v856
  %v867 = vmul.f32 %v796, %v856
  %v868 = vmul.f32 %v797, %v856
  %v869 = vmul.f32 %v798, %v856
  %v870 = vmul.f32 %v799, %v856
  %v871 = vmul.f32 %v800, %v856
  %v872 = vmul.f32 %v801, %v856
  %v873 = vmul.f32 %v802, %v856
  %v874 = vmul.f32 %v803, %v856
  %v875 = vmul.f32 %v804, %v856
  %v876 = vmul.f32 %v805, %v856
  %v877 = vmul.f32 %v806, %v856
  %v878 = vmul.f32 %v807, %v856
  %v879 = vmul.f32 %v808, %v856
  %v880 = vmul.f32 %v809, %v856
  %v881 = vmul.f32 %v810, %v856
  %v882 = vmul.f32 %v811, %v856
  %v883 = vmul.f32 %v812, %v856
  %v884 = vmul.f32 %v813, %v856
  %v885 = vmul.f32 %v814, %v856
  %v886 = vmul.f32 %v815, %v856
  %v887 = vmul.f32 %v816, %v856
  %v888 = vmul.f32 %v817, %v856
  %v889 = vmul.f32 %v818, %v856
  %v890 = vmul.f32 %v819, %v856
  %v891 = vmul.f32 %v820, %v856
  %v892 = vmul.f32 %v821, %v856
  %v893 = vmul.f32 %v822, %v856
  %v894 = vmul.f32 %v823, %v856
  %v895 = vmul.f32 %v824, %v856
  %v896 = vmul.f32 %v825, %v856
  %v897 = vmul.f32 %v826, %v856
  %v898 = vmul.f32 %v827, %v856
  %v899 = vmul.f32 %v828, %v856
  %v900 = vmul.f32 %v829, %v856
  %v901 = vmul.f32 %v830, %v856
  %v902 = vmul.f32 %v831, %v856
  %v903 = vmul.f32 %v832, %v856
  %v904 = vmul.f32 %v833, %v856
  %v905 = vmul.f32 %v834, %v856
  %v906 = vmul.f32 %v835, %v856
  %v907 = vmul.f32 %v836, %v856
  %v908 = vmul.f32 %v837, %v856
  %v909 = vmul.f32 %v838, %v856
  %v910 = vmul.f32 %v839, %v856
  %v911 = vmul.f32 %v840, %v856
  %v912 = vmul.f32 %v841, %v856
  %v913 = vmul.f32 %v842, %v856
  %v914 = vmul.f32 %v843, %v856
  %v915 = vmul.f32 %v844, %v856
  %v916 = vmul.f32 %v845, %v856
  %v917 = vmul.f32 %v846, %v856
  %v918 = vmul.f32 %v847, %v856
  %v919 = vmul.f32 %v848, %v856
  %v920 = vmul.f32 %v849, %v856
  %v921 = vmul.f32 %v850, %v856
  %v922 = vld [vmem:[%s2] sm:$0x1]
  %v924 = vlaneseq
  %v925 = vshrl.u32 %v924, 7
  %v926 = vsub.s32 0, %v925
  %v927 = vrot.slane %v922, %v926
  %v929 = vadd.f32 %v858, %v927
  %v930 = vadd.f32 %v859, %v927
  %v931 = vadd.f32 %v860, %v927
  %v932 = vadd.f32 %v861, %v927
  %v933 = vadd.f32 %v862, %v927
  %v934 = vadd.f32 %v863, %v927
  %v935 = vadd.f32 %v864, %v927
  %v936 = vadd.f32 %v865, %v927
  %v937 = vadd.f32 %v866, %v927
  %v938 = vadd.f32 %v867, %v927
  %v939 = vadd.f32 %v868, %v927
  %v940 = vadd.f32 %v869, %v927
  %v941 = vadd.f32 %v870, %v927
  %v942 = vadd.f32 %v871, %v927
  %v943 = vadd.f32 %v872, %v927
  %v944 = vadd.f32 %v873, %v927
  %v945 = vadd.f32 %v874, %v927
  %v946 = vadd.f32 %v875, %v927
  %v947 = vadd.f32 %v876, %v927
  %v948 = vadd.f32 %v877, %v927
  %v949 = vadd.f32 %v878, %v927
  %v950 = vadd.f32 %v879, %v927
  %v951 = vadd.f32 %v880, %v927
  %v952 = vadd.f32 %v881, %v927
  %v953 = vadd.f32 %v882, %v927
  %v954 = vadd.f32 %v883, %v927
  %v955 = vadd.f32 %v884, %v927
  %v956 = vadd.f32 %v885, %v927
  %v957 = vadd.f32 %v886, %v927
  %v958 = vadd.f32 %v887, %v927
  %v959 = vadd.f32 %v888, %v927
  %v960 = vadd.f32 %v889, %v927
  %v961 = vadd.f32 %v890, %v927
  %v962 = vadd.f32 %v891, %v927
  %v963 = vadd.f32 %v892, %v927
  %v964 = vadd.f32 %v893, %v927
  %v965 = vadd.f32 %v894, %v927
  %v966 = vadd.f32 %v895, %v927
  %v967 = vadd.f32 %v896, %v927
  %v968 = vadd.f32 %v897, %v927
  %v969 = vadd.f32 %v898, %v927
  %v970 = vadd.f32 %v899, %v927
  %v971 = vadd.f32 %v900, %v927
  %v972 = vadd.f32 %v901, %v927
  %v973 = vadd.f32 %v902, %v927
  %v974 = vadd.f32 %v903, %v927
  %v975 = vadd.f32 %v904, %v927
  %v976 = vadd.f32 %v905, %v927
  %v977 = vadd.f32 %v906, %v927
  %v978 = vadd.f32 %v907, %v927
  %v979 = vadd.f32 %v908, %v927
  %v980 = vadd.f32 %v909, %v927
  %v981 = vadd.f32 %v910, %v927
  %v982 = vadd.f32 %v911, %v927
  %v983 = vadd.f32 %v912, %v927
  %v984 = vadd.f32 %v913, %v927
  %v985 = vadd.f32 %v914, %v927
  %v986 = vadd.f32 %v915, %v927
  %v987 = vadd.f32 %v916, %v927
  %v988 = vadd.f32 %v917, %v927
  %v989 = vadd.f32 %v918, %v927
  %v990 = vadd.f32 %v919, %v927
  %v991 = vadd.f32 %v920, %v927
  %v992 = vadd.f32 %v921, %v927
  %993 = vst [vmem:[%s3] sm:$0xff] %v929
  %994 = vst [vmem:[%s3 + $0x8] sm:$0xff] %v930
  %995 = vst [vmem:[%s3 + $0x10] sm:$0xff] %v931
  %996 = vst [vmem:[%s3 + $0x18] sm:$0xff] %v932
  %997 = vst [vmem:[%s3 + $0x20] sm:$0xff] %v933
  %998 = vst [vmem:[%s3 + $0x28] sm:$0xff] %v934
  %999 = vst [vmem:[%s3 + $0x30] sm:$0xff] %v935
  %1000 = vst [vmem:[%s3 + $0x38] sm:$0xff] %v936
  %1001 = vst [vmem:[%s3 + $0x40] sm:$0xff] %v937
  %1002 = vst [vmem:[%s3 + $0x48] sm:$0xff] %v938
  %1003 = vst [vmem:[%s3 + $0x50] sm:$0xff] %v939
  %1004 = vst [vmem:[%s3 + $0x58] sm:$0xff] %v940
  %1005 = vst [vmem:[%s3 + $0x60] sm:$0xff] %v941
  %1006 = vst [vmem:[%s3 + $0x68] sm:$0xff] %v942
  %1007 = vst [vmem:[%s3 + $0x70] sm:$0xff] %v943
  %1008 = vst [vmem:[%s3 + $0x78] sm:$0xff] %v944
  %1009 = vst [vmem:[%s3 + $0x80] sm:$0xff] %v945
  %1010 = vst [vmem:[%s3 + $0x88] sm:$0xff] %v946
  %1011 = vst [vmem:[%s3 + $0x90] sm:$0xff] %v947
  %1012 = vst [vmem:[%s3 + $0x98] sm:$0xff] %v948
  %1013 = vst [vmem:[%s3 + $0xa0] sm:$0xff] %v949
  %1014 = vst [vmem:[%s3 + $0xa8] sm:$0xff] %v950
  %1015 = vst [vmem:[%s3 + $0xb0] sm:$0xff] %v951
  %1016 = vst [vmem:[%s3 + $0xb8] sm:$0xff] %v952
  %1017 = vst [vmem:[%s3 + $0xc0] sm:$0xff] %v953
  %1018 = vst [vmem:[%s3 + $0xc8] sm:$0xff] %v954
  %1019 = vst [vmem:[%s3 + $0xd0] sm:$0xff] %v955
  %1020 = vst [vmem:[%s3 + $0xd8] sm:$0xff] %v956
  %1021 = vst [vmem:[%s3 + $0xe0] sm:$0xff] %v957
  %1022 = vst [vmem:[%s3 + $0xe8] sm:$0xff] %v958
  %1023 = vst [vmem:[%s3 + $0xf0] sm:$0xff] %v959
  %1024 = vst [vmem:[%s3 + $0xf8] sm:$0xff] %v960
  %1025 = vst [vmem:[%s3 + $0x100] sm:$0xff] %v961
  %1026 = vst [vmem:[%s3 + $0x108] sm:$0xff] %v962
  %1027 = vst [vmem:[%s3 + $0x110] sm:$0xff] %v963
  %1028 = vst [vmem:[%s3 + $0x118] sm:$0xff] %v964
  %1029 = vst [vmem:[%s3 + $0x120] sm:$0xff] %v965
  %1030 = vst [vmem:[%s3 + $0x128] sm:$0xff] %v966
  %1031 = vst [vmem:[%s3 + $0x130] sm:$0xff] %v967
  %1032 = vst [vmem:[%s3 + $0x138] sm:$0xff] %v968
  %1033 = vst [vmem:[%s3 + $0x140] sm:$0xff] %v969
  %1034 = vst [vmem:[%s3 + $0x148] sm:$0xff] %v970
  %1035 = vst [vmem:[%s3 + $0x150] sm:$0xff] %v971
  %1036 = vst [vmem:[%s3 + $0x158] sm:$0xff] %v972
  %1037 = vst [vmem:[%s3 + $0x160] sm:$0xff] %v973
  %1038 = vst [vmem:[%s3 + $0x168] sm:$0xff] %v974
  %1039 = vst [vmem:[%s3 + $0x170] sm:$0xff] %v975
  %1040 = vst [vmem:[%s3 + $0x178] sm:$0xff] %v976
  %1041 = vst [vmem:[%s3 + $0x180] sm:$0xff] %v977
  %1042 = vst [vmem:[%s3 + $0x188] sm:$0xff] %v978
  %1043 = vst [vmem:[%s3 + $0x190] sm:$0xff] %v979
  %1044 = vst [vmem:[%s3 + $0x198] sm:$0xff] %v980
  %1045 = vst [vmem:[%s3 + $0x1a0] sm:$0xff] %v981
  %1046 = vst [vmem:[%s3 + $0x1a8] sm:$0xff] %v982
  %1047 = vst [vmem:[%s3 + $0x1b0] sm:$0xff] %v983
  %1048 = vst [vmem:[%s3 + $0x1b8] sm:$0xff] %v984
  %1049 = vst [vmem:[%s3 + $0x1c0] sm:$0xff] %v985
  %1050 = vst [vmem:[%s3 + $0x1c8] sm:$0xff] %v986
  %1051 = vst [vmem:[%s3 + $0x1d0] sm:$0xff] %v987
  %1052 = vst [vmem:[%s3 + $0x1d8] sm:$0xff] %v988
  %1053 = vst [vmem:[%s3 + $0x1e0] sm:$0xff] %v989
  %1054 = vst [vmem:[%s3 + $0x1e8] sm:$0xff] %v990
  %1055 = vst [vmem:[%s3 + $0x1f0] sm:$0xff] %v991
  %1056 = vst [vmem:[%s3 + $0x1f8] sm:$0xff] %v992
  // Predicated region
  $region14: #{metaformer_no_block.2} parent=0 // pred_check
    _
  $region15: #{metaformer_no_block.2} parent=0 // pred_check_branch
    %1058 = sbr.rel (0) target = $region17
  $region16: #{metaformer_no_block.2} parent=0 // pred_region
    _
  $region17: #{metaformer_no_block.2} parent=0 // pred_fallthru
    _
  // Predicated region
  $region18: #{metaformer_no_block.2} parent=0 // pred_check
    _
  $region19: #{metaformer_no_block.2} parent=0 // pred_check_branch
    %1060 = sbr.rel (0) target = $region21
  $region20: #{metaformer_no_block.2} parent=0 // pred_region
    _
  $region21: #{metaformer_no_block.2} parent=0 // pred_fallthru
    _

// kernel: reverse.1
$region0: #{reverse.1}
  %s0 = inlined_call_operand.vmem [shape: f32[2,4,16,7], index: 0, kind: input, shape index: {}]
  %s1 = inlined_call_operand.vmem [shape: f32[2,4,16,7], index: 1, kind: output, shape index: {}]
  $region1: #{reverse.1} parent=0
    #allocation0 [shape = 'u8[65536]{0}', space=vmem, size = 0x10000, scoped, tag = 'operand span for operand 0']
    #allocation1 [shape = 'u8[32768]{0}', space=vmem, size = 0x8000, scoped, tag = 'operand span for operand 1']
    %s2 = scalar_lea.vmem [#allocation0], 8
    // Predicated region
    $region2: #{reverse.1} parent=1 // pred_check
      _
    $region3: #{reverse.1} parent=1 // pred_check_branch
      %4 = sbr.rel (0) target = $region5
    $region4: #{reverse.1} parent=1 // pred_region
      // Predicated region
      $region6: #{reverse.1} parent=4 // pred_check
        _
      $region7: #{reverse.1} parent=4 // pred_check_branch
        %6 = sbr.rel (0) target = $region9
      $region8: #{reverse.1} parent=4 // pred_region
        // Predicated region
        $region21: #{reverse.1} parent=8 // pred_check
          _
        $region22: #{reverse.1} parent=8 // pred_check_branch
          %35 = sbr.rel (0) target = $region24
        $region23: #{reverse.1} parent=8 // pred_region
          loop: start=0, step=1, limit=1
          $region25: #{reverse.1} parent=23 // loop_pre_header
            _
          $region26: #{reverse.1} parent=23 // loop_header
            %s37 = sphi 0, %s41
            %p38 = scmp.ge.s32.totalorder %s37, 1
            %s42 = sphi %s0, %s0
            %s43 = sphi %s2, %s2
          $region27: #{reverse.1} parent=23 // loop_header_branch
            %40 = sbr.rel (%p38) target = $region31
          $region28: #{reverse.1} parent=23 // loop_body
            %v44 = vld [vmem:[%s42] sm:$0xff]
            %45 = vst [vmem:[%s43] sm:$0xff] %v44
            %v46 = vld [vmem:[%s42 + $0x8] sm:$0xff]
            %47 = vst [vmem:[%s43 + $0x10] sm:$0xff] %v46
            %v48 = vld [vmem:[%s42 + $0x10] sm:$0xff]
            %49 = vst [vmem:[%s43 + $0x20] sm:$0xff] %v48
            %v50 = vld [vmem:[%s42 + $0x18] sm:$0xff]
            %51 = vst [vmem:[%s43 + $0x30] sm:$0xff] %v50
            %v52 = vld [vmem:[%s42 + $0x20] sm:$0xff]
            %53 = vst [vmem:[%s43 + $0x40] sm:$0xff] %v52
            %v54 = vld [vmem:[%s42 + $0x28] sm:$0xff]
            %55 = vst [vmem:[%s43 + $0x50] sm:$0xff] %v54
            %v56 = vld [vmem:[%s42 + $0x30] sm:$0xff]
            %57 = vst [vmem:[%s43 + $0x60] sm:$0xff] %v56
            %v58 = vld [vmem:[%s42 + $0x38] sm:$0xff]
            %59 = vst [vmem:[%s43 + $0x70] sm:$0xff] %v58
          $region29: #{reverse.1} parent=23 // loop_footer
            %s41 = sadd.s32 1, %s37
          $region30: #{reverse.1} parent=23 // loop_footer_branch
            %36 = sbr.rel target = $region26
          $region31: #{reverse.1} parent=23 // loop_exit
            _
        $region24: #{reverse.1} parent=8 // pred_fallthru
          _
        // Predicated region
        $region32: #{reverse.1} parent=8 // pred_check
          _
        $region33: #{reverse.1} parent=8 // pred_check_branch
          %61 = sbr.rel target = $region35
        $region34: #{reverse.1} parent=8 // pred_region
          _
        $region35: #{reverse.1} parent=8 // pred_fallthru
          _
      $region9: #{reverse.1} parent=4 // pred_fallthru
        _
      // Predicated region
      $region10: #{reverse.1} parent=4 // pred_check
        _
      $region11: #{reverse.1} parent=4 // pred_check_branch
        %8 = sbr.rel target = $region13
      $region12: #{reverse.1} parent=4 // pred_region
        loop: start=0, step=1, limit=1
        $region14: #{reverse.1} parent=12 // loop_pre_header
          _
        $region15: #{reverse.1} parent=12 // loop_header
          %s11 = sphi 0, %s15
          %p12 = scmp.ge.s32.totalorder %s11, 1
          %s16 = sphi %s0, %s0
          %s17 = sphi %s2, %s2
        $region16: #{reverse.1} parent=12 // loop_header_branch
          %14 = sbr.rel (%p12) target = $region20
        $region17: #{reverse.1} parent=12 // loop_body
          %v18 = vld [vmem:[%s16] sm:$0xff]
          %19 = vst [vmem:[%s17] sm:$0xff] %v18
          %v20 = vld [vmem:[%s16 + $0x8] sm:$0xff]
          %21 = vst [vmem:[%s17 + $0x10] sm:$0xff] %v20
          %v22 = vld [vmem:[%s16 + $0x10] sm:$0xff]
          %23 = vst [vmem:[%s17 + $0x20] sm:$0xff] %v22
          %v24 = vld [vmem:[%s16 + $0x18] sm:$0xff]
          %25 = vst [vmem:[%s17 + $0x30] sm:$0xff] %v24
          %v26 = vld [vmem:[%s16 + $0x20] sm:$0xff]
          %27 = vst [vmem:[%s17 + $0x40] sm:$0xff] %v26
          %v28 = vld [vmem:[%s16 + $0x28] sm:$0xff]
          %29 = vst [vmem:[%s17 + $0x50] sm:$0xff] %v28
          %v30 = vld [vmem:[%s16 + $0x30] sm:$0xff]
          %31 = vst [vmem:[%s17 + $0x60] sm:$0xff] %v30
          %v32 = vld [vmem:[%s16 + $0x38] sm:$0xff]
          %33 = vst [vmem:[%s17 + $0x70] sm:$0xff] %v32
        $region18: #{reverse.1} parent=12 // loop_footer
          %s15 = sadd.s32 1, %s11
        $region19: #{reverse.1} parent=12 // loop_footer_branch
          %10 = sbr.rel target = $region15
        $region20: #{reverse.1} parent=12 // loop_exit
          _
      $region13: #{reverse.1} parent=4 // pred_fallthru
        _
    $region5: #{reverse.1} parent=1 // pred_fallthru
      _
    %62 = vnop
    %s63 = scalar_lea.vmem [#allocation0], 7
    %v64 = vld [vmem:[%s63] ss:$-1 sm:$0xff]
    %v65 = vrot.slane %v64, 1
    %66 = vst [vmem:[#allocation1] sm:$0xff] %v65
    %s67 = scalar_lea.vmem [#allocation0], 8
    %s68 = scalar_lea.vmem %s67, 7 [#allocation0]
    %v69 = vld [vmem:[%s68] ss:$-1 sm:$0xff]
    %v70 = vrot.slane %v69, 1
    %v71 = vlaneseq
    %v72 = vshrl.u32 %v71, 7
    %vm73 = vcmp.lt.s32.totalorder %v72, 7
    %74 = vst.msk [vmem:[#allocation1] sm:$0xff] %vm73, %v70
    %s75 = scalar_lea.vmem [#allocation1], 8
    %s76 = scalar_lea.vmem [#allocation0], 16
    %s77 = scalar_lea.vmem %s76, 7 [#allocation0]
    %v78 = vld [vmem:[%s77] ss:$-1 sm:$0xff]
    %v79 = vrot.slane %v78, 1
    %80 = vst [vmem:[%s75] sm:$0xff] %v79
    %s81 = scalar_lea.vmem %s76, 8 [#allocation0]
    %s82 = scalar_lea.vmem %s81, 7 [#allocation0]
    %v83 = vld [vmem:[%s82] ss:$-1 sm:$0xff]
    %v84 = vrot.slane %v83, 1
    %v85 = vlaneseq
    %v86 = vshrl.u32 %v85, 7
    %vm87 = vcmp.lt.s32.totalorder %v86, 7
    %88 = vst.msk [vmem:[%s75] sm:$0xff] %vm87, %v84
    %s89 = scalar_lea.vmem [#allocation1], 16
    %s90 = scalar_lea.vmem [#allocation0], 32
    %s91 = scalar_lea.vmem %s90, 7 [#allocation0]
    %v92 = vld [vmem:[%s91] ss:$-1 sm:$0xff]
    %v93 = vrot.slane %v92, 1
    %94 = vst [vmem:[%s89] sm:$0xff] %v93
    %s95 = scalar_lea.vmem %s90, 8 [#allocation0]
    %s96 = scalar_lea.vmem %s95, 7 [#allocation0]
    %v97 = vld [vmem:[%s96] ss:$-1 sm:$0xff]
    %v98 = vrot.slane %v97, 1
    %v99 = vlaneseq
    %v100 = vshrl.u32 %v99, 7
    %vm101 = vcmp.lt.s32.totalorder %v100, 7
    %102 = vst.msk [vmem:[%s89] sm:$0xff] %vm101, %v98
    %s103 = scalar_lea.vmem [#allocation1], 24
    %s104 = scalar_lea.vmem [#allocation0], 48
    %s105 = scalar_lea.vmem %s104, 7 [#allocation0]
    %v106 = vld [vmem:[%s105] ss:$-1 sm:$0xff]
    %v107 = vrot.slane %v106, 1
    %108 = vst [vmem:[%s103] sm:$0xff] %v107
    %s109 = scalar_lea.vmem %s104, 8 [#allocation0]
    %s110 = scalar_lea.vmem %s109, 7 [#allocation0]
    %v111 = vld [vmem:[%s110] ss:$-1 sm:$0xff]
    %v112 = vrot.slane %v111, 1
    %v113 = vlaneseq
    %v114 = vshrl.u32 %v113, 7
    %vm115 = vcmp.lt.s32.totalorder %v114, 7
    %116 = vst.msk [vmem:[%s103] sm:$0xff] %vm115, %v112
    %s117 = scalar_lea.vmem [#allocation1], 32
    %s118 = scalar_lea.vmem [#allocation0], 64
    %s119 = scalar_lea.vmem %s118, 7 [#allocation0]
    %v120 = vld [vmem:[%s119] ss:$-1 sm:$0xff]
    %v121 = vrot.slane %v120, 1
    %122 = vst [vmem:[%s117] sm:$0xff] %v121
    %s123 = scalar_lea.vmem %s118, 8 [#allocation0]
    %s124 = scalar_lea.vmem %s123, 7 [#allocation0]
    %v125 = vld [vmem:[%s124] ss:$-1 sm:$0xff]
    %v126 = vrot.slane %v125, 1
    %v127 = vlaneseq
    %v128 = vshrl.u32 %v127, 7
    %vm129 = vcmp.lt.s32.totalorder %v128, 7
    %130 = vst.msk [vmem:[%s117] sm:$0xff] %vm129, %v126
    %s131 = scalar_lea.vmem [#allocation1], 40
    %s132 = scalar_lea.vmem [#allocation0], 80
    %s133 = scalar_lea.vmem %s132, 7 [#allocation0]
    %v134 = vld [vmem:[%s133] ss:$-1 sm:$0xff]
    %v135 = vrot.slane %v134, 1
    %136 = vst [vmem:[%s131] sm:$0xff] %v135
    %s137 = scalar_lea.vmem %s132, 8 [#allocation0]
    %s138 = scalar_lea.vmem %s137, 7 [#allocation0]
    %v139 = vld [vmem:[%s138] ss:$-1 sm:$0xff]
    %v140 = vrot.slane %v139, 1
    %v141 = vlaneseq
    %v142 = vshrl.u32 %v141, 7
    %vm143 = vcmp.lt.s32.totalorder %v142, 7
    %144 = vst.msk [vmem:[%s131] sm:$0xff] %vm143, %v140
    %s145 = scalar_lea.vmem [#allocation1], 48
    %s146 = scalar_lea.vmem [#allocation0], 96
    %s147 = scalar_lea.vmem %s146, 7 [#allocation0]
    %v148 = vld [vmem:[%s147] ss:$-1 sm:$0xff]
    %v149 = vrot.slane %v148, 1
    %150 = vst [vmem:[%s145] sm:$0xff] %v149
    %s151 = scalar_lea.vmem %s146, 8 [#allocation0]
    %s152 = scalar_lea.vmem %s151, 7 [#allocation0]
    %v153 = vld [vmem:[%s152] ss:$-1 sm:$0xff]
    %v154 = vrot.slane %v153, 1
    %v155 = vlaneseq
    %v156 = vshrl.u32 %v155, 7
    %vm157 = vcmp.lt.s32.totalorder %v156, 7
    %158 = vst.msk [vmem:[%s145] sm:$0xff] %vm157, %v154
    %s159 = scalar_lea.vmem [#allocation1], 56
    %s160 = scalar_lea.vmem [#allocation0], 112
    %s161 = scalar_lea.vmem %s160, 7 [#allocation0]
    %v162 = vld [vmem:[%s161] ss:$-1 sm:$0xff]
    %v163 = vrot.slane %v162, 1
    %164 = vst [vmem:[%s159] sm:$0xff] %v163
    %s165 = scalar_lea.vmem %s160, 8 [#allocation0]
    %s166 = scalar_lea.vmem %s165, 7 [#allocation0]
    %v167 = vld [vmem:[%s166] ss:$-1 sm:$0xff]
    %v168 = vrot.slane %v167, 1
    %v169 = vlaneseq
    %v170 = vshrl.u32 %v169, 7
    %vm171 = vcmp.lt.s32.totalorder %v170, 7
    %172 = vst.msk [vmem:[%s159] sm:$0xff] %vm171, %v168
    // Predicated region
    $region36: #{reverse.1} parent=1 // pred_check
      _
    $region37: #{reverse.1} parent=1 // pred_check_branch
      %174 = sbr.rel (0) target = $region39
    $region38: #{reverse.1} parent=1 // pred_region
      // Predicated region
      $region40: #{reverse.1} parent=38 // pred_check
        _
      $region41: #{reverse.1} parent=38 // pred_check_branch
        %176 = sbr.rel (0) target = $region43
      $region42: #{reverse.1} parent=38 // pred_region
        // Predicated region
        $region55: #{reverse.1} parent=42 // pred_check
          _
        $region56: #{reverse.1} parent=42 // pred_check_branch
          %205 = sbr.rel (0) target = $region58
        $region57: #{reverse.1} parent=42 // pred_region
          loop: start=0, step=1, limit=1
          $region59: #{reverse.1} parent=57 // loop_pre_header
            _
          $region60: #{reverse.1} parent=57 // loop_header
            %s207 = sphi 0, %s211
            %p208 = scmp.ge.s32.totalorder %s207, 1
            %s212 = sphi [#allocation1], [#allocation1]
            %s213 = sphi %s1, %s1
          $region61: #{reverse.1} parent=57 // loop_header_branch
            %210 = sbr.rel (%p208) target = $region65
          $region62: #{reverse.1} parent=57 // loop_body
            %v214 = vld [vmem:[%s212] sm:$0xff]
            %215 = vst [vmem:[%s213] sm:$0xff] %v214
            %v216 = vld [vmem:[%s212 + $0x8] sm:$0xff]
            %217 = vst [vmem:[%s213 + $0x8] sm:$0xff] %v216
            %v218 = vld [vmem:[%s212 + $0x10] sm:$0xff]
            %219 = vst [vmem:[%s213 + $0x10] sm:$0xff] %v218
            %v220 = vld [vmem:[%s212 + $0x18] sm:$0xff]
            %221 = vst [vmem:[%s213 + $0x18] sm:$0xff] %v220
            %v222 = vld [vmem:[%s212 + $0x20] sm:$0xff]
            %223 = vst [vmem:[%s213 + $0x20] sm:$0xff] %v222
            %v224 = vld [vmem:[%s212 + $0x28] sm:$0xff]
            %225 = vst [vmem:[%s213 + $0x28] sm:$0xff] %v224
            %v226 = vld [vmem:[%s212 + $0x30] sm:$0xff]
            %227 = vst [vmem:[%s213 + $0x30] sm:$0xff] %v226
            %v228 = vld [vmem:[%s212 + $0x38] sm:$0xff]
            %229 = vst [vmem:[%s213 + $0x38] sm:$0xff] %v228
          $region63: #{reverse.1} parent=57 // loop_footer
            %s211 = sadd.s32 1, %s207
          $region64: #{reverse.1} parent=57 // loop_footer_branch
            %206 = sbr.rel target = $region60
          $region65: #{reverse.1} parent=57 // loop_exit
            _
        $region58: #{reverse.1} parent=42 // pred_fallthru
          _
        // Predicated region
        $region66: #{reverse.1} parent=42 // pred_check
          _
        $region67: #{reverse.1} parent=42 // pred_check_branch
          %231 = sbr.rel target = $region69
        $region68: #{reverse.1} parent=42 // pred_region
          _
        $region69: #{reverse.1} parent=42 // pred_fallthru
          _
      $region43: #{reverse.1} parent=38 // pred_fallthru
        _
      // Predicated region
      $region44: #{reverse.1} parent=38 // pred_check
        _
      $region45: #{reverse.1} parent=38 // pred_check_branch
        %178 = sbr.rel target = $region47
      $region46: #{reverse.1} parent=38 // pred_region
        loop: start=0, step=1, limit=1
        $region48: #{reverse.1} parent=46 // loop_pre_header
          _
        $region49: #{reverse.1} parent=46 // loop_header
          %s181 = sphi 0, %s185
          %p182 = scmp.ge.s32.totalorder %s181, 1
          %s186 = sphi [#allocation1], [#allocation1]
          %s187 = sphi %s1, %s1
        $region50: #{reverse.1} parent=46 // loop_header_branch
          %184 = sbr.rel (%p182) target = $region54
        $region51: #{reverse.1} parent=46 // loop_body
          %v188 = vld [vmem:[%s186] sm:$0xff]
          %189 = vst [vmem:[%s187] sm:$0xff] %v188
          %v190 = vld [vmem:[%s186 + $0x8] sm:$0xff]
          %191 = vst [vmem:[%s187 + $0x8] sm:$0xff] %v190
          %v192 = vld [vmem:[%s186 + $0x10] sm:$0xff]
          %193 = vst [vmem:[%s187 + $0x10] sm:$0xff] %v192
          %v194 = vld [vmem:[%s186 + $0x18] sm:$0xff]
          %195 = vst [vmem:[%s187 + $0x18] sm:$0xff] %v194
          %v196 = vld [vmem:[%s186 + $0x20] sm:$0xff]
          %197 = vst [vmem:[%s187 + $0x20] sm:$0xff] %v196
          %v198 = vld [vmem:[%s186 + $0x28] sm:$0xff]
          %199 = vst [vmem:[%s187 + $0x28] sm:$0xff] %v198
          %v200 = vld [vmem:[%s186 + $0x30] sm:$0xff]
          %201 = vst [vmem:[%s187 + $0x30] sm:$0xff] %v200
          %v202 = vld [vmem:[%s186 + $0x38] sm:$0xff]
          %203 = vst [vmem:[%s187 + $0x38] sm:$0xff] %v202
        $region52: #{reverse.1} parent=46 // loop_footer
          %s185 = sadd.s32 1, %s181
        $region53: #{reverse.1} parent=46 // loop_footer_branch
          %180 = sbr.rel target = $region49
        $region54: #{reverse.1} parent=46 // loop_exit
          _
      $region47: #{reverse.1} parent=38 // pred_fallthru
        _
    $region39: #{reverse.1} parent=1 // pred_fallthru
      _
    %232 = vnop

// kernel: metaformer_no_block.3
$region0: #{metaformer_no_block.3}
  #allocation0 [shape = 'u32[]', space=smem, size = 0x4, offset = 0x4, fixed_abs, tag = 'smem constant byte address 0x4 - core index']
  #allocation1 [shape = 'u32[144,128]{1,0:T(1,128)}', space=vmem, size = 0x12000, scoped, tag = 'internal scratch']
  %s0 = inlined_call_operand.vmem [shape: f32[512,128], index: 0, kind: input, shape index: {}, may-alias: {0,12}]
  %s1 = inlined_call_operand.vmem [shape: f32[512,128], index: 1, kind: input, shape index: {}]
  %s2 = inlined_call_operand.vmem [shape: f32[1,128], index: 2, kind: input, shape index: {}]
  %s3 = inlined_call_operand.vmem [shape: f32[1,128], index: 3, kind: input, shape index: {}]
  %s4 = inlined_call_operand.vmem [shape: bf16[128,128], index: 4, kind: input, shape index: {}]
  %s5 = inlined_call_operand.vmem [shape: f32[1,128], index: 5, kind: input, shape index: {}]
  %s6 = inlined_call_operand.vmem [shape: f32[1,128], index: 6, kind: input, shape index: {}]
  %s7 = inlined_call_operand.vmem [shape: f32[1,128], index: 7, kind: input, shape index: {}]
  %s8 = inlined_call_operand.vmem [shape: bf16[128,128], index: 8, kind: input, shape index: {}]
  %s9 = inlined_call_operand.vmem [shape: f32[1,128], index: 9, kind: input, shape index: {}]
  %s10 = inlined_call_operand.vmem [shape: bf16[128,128], index: 10, kind: input, shape index: {}]
  %s11 = inlined_call_operand.vmem [shape: f32[1,128], index: 11, kind: input, shape index: {}]
  %s12 = inlined_call_operand.vmem [shape: f32[512,128], index: 12, kind: output, shape index: {}, may-alias: {0,12}]
  %s13 = sld [smem:[#allocation0]]
  $region58: #{metaformer_no_block.3} parent=0
    _
  %s15 = ssub.s32 1, %s13
  %s16 = scalar_select 0, %s15, %s13
  // Predicated region
  $region2: #{metaformer_no_block.3} parent=0 // pred_check
    _
  $region3: #{metaformer_no_block.3} parent=0 // pred_check_branch
    %18 = sbr.rel (0) target = $region5
  $region4: #{metaformer_no_block.3} parent=0 // pred_region
    _
  $region5: #{metaformer_no_block.3} parent=0 // pred_fallthru
    _
  // Predicated region
  $region6: #{metaformer_no_block.3} parent=0 // pred_check
    _
  $region7: #{metaformer_no_block.3} parent=0 // pred_check_branch
    %20 = sbr.rel (0) target = $region9
  $region8: #{metaformer_no_block.3} parent=0 // pred_region
    _
  $region9: #{metaformer_no_block.3} parent=0 // pred_fallthru
    _
  // Predicated region
  $region10: #{metaformer_no_block.3} parent=0 // pred_check
    _
  $region11: #{metaformer_no_block.3} parent=0 // pred_check_branch
    %22 = sbr.rel (0) target = $region13
  $region12: #{metaformer_no_block.3} parent=0 // pred_region
    _
  $region13: #{metaformer_no_block.3} parent=0 // pred_fallthru
    _
  // Predicated region
  $region14: #{metaformer_no_block.3} parent=0 // pred_check
    _
  $region15: #{metaformer_no_block.3} parent=0 // pred_check_branch
    %24 = sbr.rel (0) target = $region17
  $region16: #{metaformer_no_block.3} parent=0 // pred_region
    _
  $region17: #{metaformer_no_block.3} parent=0 // pred_fallthru
    _
  // Predicated region
  $region18: #{metaformer_no_block.3} parent=0 // pred_check
    _
  $region19: #{metaformer_no_block.3} parent=0 // pred_check_branch
    %26 = sbr.rel (0) target = $region21
  $region20: #{metaformer_no_block.3} parent=0 // pred_region
    _
  $region21: #{metaformer_no_block.3} parent=0 // pred_fallthru
    _
  // Predicated region
  $region22: #{metaformer_no_block.3} parent=0 // pred_check
    _
  $region23: #{metaformer_no_block.3} parent=0 // pred_check_branch
    %28 = sbr.rel (0) target = $region25
  $region24: #{metaformer_no_block.3} parent=0 // pred_region
    _
  $region25: #{metaformer_no_block.3} parent=0 // pred_fallthru
    _
  // Predicated region
  $region26: #{metaformer_no_block.3} parent=0 // pred_check
    _
  $region27: #{metaformer_no_block.3} parent=0 // pred_check_branch
    %30 = sbr.rel (0) target = $region29
  $region28: #{metaformer_no_block.3} parent=0 // pred_region
    _
  $region29: #{metaformer_no_block.3} parent=0 // pred_fallthru
    _
  // Predicated region
  $region30: #{metaformer_no_block.3} parent=0 // pred_check
    _
  $region31: #{metaformer_no_block.3} parent=0 // pred_check_branch
    %32 = sbr.rel (0) target = $region33
  $region32: #{metaformer_no_block.3} parent=0 // pred_region
    _
  $region33: #{metaformer_no_block.3} parent=0 // pred_fallthru
    _
  // Predicated region
  $region34: #{metaformer_no_block.3} parent=0 // pred_check
    _
  $region35: #{metaformer_no_block.3} parent=0 // pred_check_branch
    %34 = sbr.rel (0) target = $region37
  $region36: #{metaformer_no_block.3} parent=0 // pred_region
    _
  $region37: #{metaformer_no_block.3} parent=0 // pred_fallthru
    _
  // Predicated region
  $region38: #{metaformer_no_block.3} parent=0 // pred_check
    _
  $region39: #{metaformer_no_block.3} parent=0 // pred_check_branch
    %36 = sbr.rel (0) target = $region41
  $region40: #{metaformer_no_block.3} parent=0 // pred_region
    _
  $region41: #{metaformer_no_block.3} parent=0 // pred_fallthru
    _
  // Predicated region
  $region42: #{metaformer_no_block.3} parent=0 // pred_check
    _
  $region43: #{metaformer_no_block.3} parent=0 // pred_check_branch
    %38 = sbr.rel (0) target = $region45
  $region44: #{metaformer_no_block.3} parent=0 // pred_region
    _
  $region45: #{metaformer_no_block.3} parent=0 // pred_fallthru
    _
  // Predicated region
  $region46: #{metaformer_no_block.3} parent=0 // pred_check
    _
  $region47: #{metaformer_no_block.3} parent=0 // pred_check_branch
    %40 = sbr.rel (0) target = $region49
  $region48: #{metaformer_no_block.3} parent=0 // pred_region
    _
  $region49: #{metaformer_no_block.3} parent=0 // pred_fallthru
    _
  %v42 = vld [vmem:[%s0] sm:$0xff]
  %v43 = vld [vmem:[%s0 + $0x8] sm:$0xff]
  %v44 = vld [vmem:[%s0 + $0x10] sm:$0xff]
  %v45 = vld [vmem:[%s0 + $0x18] sm:$0xff]
  %v46 = vld [vmem:[%s0 + $0x20] sm:$0xff]
  %v47 = vld [vmem:[%s0 + $0x28] sm:$0xff]
  %v48 = vld [vmem:[%s0 + $0x30] sm:$0xff]
  %v49 = vld [vmem:[%s0 + $0x38] sm:$0xff]
  %v50 = vld [vmem:[%s0 + $0x40] sm:$0xff]
  %v51 = vld [vmem:[%s0 + $0x48] sm:$0xff]
  %v52 = vld [vmem:[%s0 + $0x50] sm:$0xff]
  %v53 = vld [vmem:[%s0 + $0x58] sm:$0xff]
  %v54 = vld [vmem:[%s0 + $0x60] sm:$0xff]
  %v55 = vld [vmem:[%s0 + $0x68] sm:$0xff]
  %v56 = vld [vmem:[%s0 + $0x70] sm:$0xff]
  %v57 = vld [vmem:[%s0 + $0x78] sm:$0xff]
  %v58 = vld [vmem:[%s0 + $0x80] sm:$0xff]
  %v59 = vld [vmem:[%s0 + $0x88] sm:$0xff]
  %v60 = vld [vmem:[%s0 + $0x90] sm:$0xff]
  %v61 = vld [vmem:[%s0 + $0x98] sm:$0xff]
  %v62 = vld [vmem:[%s0 + $0xa0] sm:$0xff]
  %v63 = vld [vmem:[%s0 + $0xa8] sm:$0xff]
  %v64 = vld [vmem:[%s0 + $0xb0] sm:$0xff]
  %v65 = vld [vmem:[%s0 + $0xb8] sm:$0xff]
  %v66 = vld [vmem:[%s0 + $0xc0] sm:$0xff]
  %v67 = vld [vmem:[%s0 + $0xc8] sm:$0xff]
  %v68 = vld [vmem:[%s0 + $0xd0] sm:$0xff]
  %v69 = vld [vmem:[%s0 + $0xd8] sm:$0xff]
  %v70 = vld [vmem:[%s0 + $0xe0] sm:$0xff]
  %v71 = vld [vmem:[%s0 + $0xe8] sm:$0xff]
  %v72 = vld [vmem:[%s0 + $0xf0] sm:$0xff]
  %v73 = vld [vmem:[%s0 + $0xf8] sm:$0xff]
  %v74 = vld [vmem:[%s0 + $0x100] sm:$0xff]
  %v75 = vld [vmem:[%s0 + $0x108] sm:$0xff]
  %v76 = vld [vmem:[%s0 + $0x110] sm:$0xff]
  %v77 = vld [vmem:[%s0 + $0x118] sm:$0xff]
  %v78 = vld [vmem:[%s0 + $0x120] sm:$0xff]
  %v79 = vld [vmem:[%s0 + $0x128] sm:$0xff]
  %v80 = vld [vmem:[%s0 + $0x130] sm:$0xff]
  %v81 = vld [vmem:[%s0 + $0x138] sm:$0xff]
  %v82 = vld [vmem:[%s0 + $0x140] sm:$0xff]
  %v83 = vld [vmem:[%s0 + $0x148] sm:$0xff]
  %v84 = vld [vmem:[%s0 + $0x150] sm:$0xff]
  %v85 = vld [vmem:[%s0 + $0x158] sm:$0xff]
  %v86 = vld [vmem:[%s0 + $0x160] sm:$0xff]
  %v87 = vld [vmem:[%s0 + $0x168] sm:$0xff]
  %v88 = vld [vmem:[%s0 + $0x170] sm:$0xff]
  %v89 = vld [vmem:[%s0 + $0x178] sm:$0xff]
  %v90 = vld [vmem:[%s0 + $0x180] sm:$0xff]
  %v91 = vld [vmem:[%s0 + $0x188] sm:$0xff]
  %v92 = vld [vmem:[%s0 + $0x190] sm:$0xff]
  %v93 = vld [vmem:[%s0 + $0x198] sm:$0xff]
  %v94 = vld [vmem:[%s0 + $0x1a0] sm:$0xff]
  %v95 = vld [vmem:[%s0 + $0x1a8] sm:$0xff]
  %v96 = vld [vmem:[%s0 + $0x1b0] sm:$0xff]
  %v97 = vld [vmem:[%s0 + $0x1b8] sm:$0xff]
  %v98 = vld [vmem:[%s0 + $0x1c0] sm:$0xff]
  %v99 = vld [vmem:[%s0 + $0x1c8] sm:$0xff]
  %v100 = vld [vmem:[%s0 + $0x1d0] sm:$0xff]
  %v101 = vld [vmem:[%s0 + $0x1d8] sm:$0xff]
  %v102 = vld [vmem:[%s0 + $0x1e0] sm:$0xff]
  %v103 = vld [vmem:[%s0 + $0x1e8] sm:$0xff]
  %v104 = vld [vmem:[%s0 + $0x1f0] sm:$0xff]
  %v105 = vld [vmem:[%s0 + $0x1f8] sm:$0xff]
  %v106 = vld [vmem:[%s1] sm:$0xff]
  %v107 = vld [vmem:[%s1 + $0x8] sm:$0xff]
  %v108 = vld [vmem:[%s1 + $0x10] sm:$0xff]
  %v109 = vld [vmem:[%s1 + $0x18] sm:$0xff]
  %v110 = vld [vmem:[%s1 + $0x20] sm:$0xff]
  %v111 = vld [vmem:[%s1 + $0x28] sm:$0xff]
  %v112 = vld [vmem:[%s1 + $0x30] sm:$0xff]
  %v113 = vld [vmem:[%s1 + $0x38] sm:$0xff]
  %v114 = vld [vmem:[%s1 + $0x40] sm:$0xff]
  %v115 = vld [vmem:[%s1 + $0x48] sm:$0xff]
  %v116 = vld [vmem:[%s1 + $0x50] sm:$0xff]
  %v117 = vld [vmem:[%s1 + $0x58] sm:$0xff]
  %v118 = vld [vmem:[%s1 + $0x60] sm:$0xff]
  %v119 = vld [vmem:[%s1 + $0x68] sm:$0xff]
  %v120 = vld [vmem:[%s1 + $0x70] sm:$0xff]
  %v121 = vld [vmem:[%s1 + $0x78] sm:$0xff]
  %v122 = vld [vmem:[%s1 + $0x80] sm:$0xff]
  %v123 = vld [vmem:[%s1 + $0x88] sm:$0xff]
  %v124 = vld [vmem:[%s1 + $0x90] sm:$0xff]
  %v125 = vld [vmem:[%s1 + $0x98] sm:$0xff]
  %v126 = vld [vmem:[%s1 + $0xa0] sm:$0xff]
  %v127 = vld [vmem:[%s1 + $0xa8] sm:$0xff]
  %v128 = vld [vmem:[%s1 + $0xb0] sm:$0xff]
  %v129 = vld [vmem:[%s1 + $0xb8] sm:$0xff]
  %v130 = vld [vmem:[%s1 + $0xc0] sm:$0xff]
  %v131 = vld [vmem:[%s1 + $0xc8] sm:$0xff]
  %v132 = vld [vmem:[%s1 + $0xd0] sm:$0xff]
  %v133 = vld [vmem:[%s1 + $0xd8] sm:$0xff]
  %v134 = vld [vmem:[%s1 + $0xe0] sm:$0xff]
  %v135 = vld [vmem:[%s1 + $0xe8] sm:$0xff]
  %v136 = vld [vmem:[%s1 + $0xf0] sm:$0xff]
  %v137 = vld [vmem:[%s1 + $0xf8] sm:$0xff]
  %v138 = vld [vmem:[%s1 + $0x100] sm:$0xff]
  %v139 = vld [vmem:[%s1 + $0x108] sm:$0xff]
  %v140 = vld [vmem:[%s1 + $0x110] sm:$0xff]
  %v141 = vld [vmem:[%s1 + $0x118] sm:$0xff]
  %v142 = vld [vmem:[%s1 + $0x120] sm:$0xff]
  %v143 = vld [vmem:[%s1 + $0x128] sm:$0xff]
  %v144 = vld [vmem:[%s1 + $0x130] sm:$0xff]
  %v145 = vld [vmem:[%s1 + $0x138] sm:$0xff]
  %v146 = vld [vmem:[%s1 + $0x140] sm:$0xff]
  %v147 = vld [vmem:[%s1 + $0x148] sm:$0xff]
  %v148 = vld [vmem:[%s1 + $0x150] sm:$0xff]
  %v149 = vld [vmem:[%s1 + $0x158] sm:$0xff]
  %v150 = vld [vmem:[%s1 + $0x160] sm:$0xff]
  %v151 = vld [vmem:[%s1 + $0x168] sm:$0xff]
  %v152 = vld [vmem:[%s1 + $0x170] sm:$0xff]
  %v153 = vld [vmem:[%s1 + $0x178] sm:$0xff]
  %v154 = vld [vmem:[%s1 + $0x180] sm:$0xff]
  %v155 = vld [vmem:[%s1 + $0x188] sm:$0xff]
  %v156 = vld [vmem:[%s1 + $0x190] sm:$0xff]
  %v157 = vld [vmem:[%s1 + $0x198] sm:$0xff]
  %v158 = vld [vmem:[%s1 + $0x1a0] sm:$0xff]
  %v159 = vld [vmem:[%s1 + $0x1a8] sm:$0xff]
  %v160 = vld [vmem:[%s1 + $0x1b0] sm:$0xff]
  %v161 = vld [vmem:[%s1 + $0x1b8] sm:$0xff]
  %v162 = vld [vmem:[%s1 + $0x1c0] sm:$0xff]
  %v163 = vld [vmem:[%s1 + $0x1c8] sm:$0xff]
  %v164 = vld [vmem:[%s1 + $0x1d0] sm:$0xff]
  %v165 = vld [vmem:[%s1 + $0x1d8] sm:$0xff]
  %v166 = vld [vmem:[%s1 + $0x1e0] sm:$0xff]
  %v167 = vld [vmem:[%s1 + $0x1e8] sm:$0xff]
  %v168 = vld [vmem:[%s1 + $0x1f0] sm:$0xff]
  %v169 = vld [vmem:[%s1 + $0x1f8] sm:$0xff]
  %v170 = vlaneseq
  %v171 = vand.u32 %v170, 127
  %vm172 = vcmp.lt.s32.totalorder %v171, 4
  %v173 = vsel %vm172, 1, 0
  %v174 = vcvt.s32.f32 %v173
  %175 = vadd.xlane.f32.xlu0 %v42
  %v176 = vpop.xlane.xlu0 %175
  %177 = vadd.xlane.f32.xlu0 %v43
  %v178 = vpop.xlane.xlu0 %177
  %179 = vadd.xlane.f32.xlu0 %v44
  %v180 = vpop.xlane.xlu0 %179
  %181 = vadd.xlane.f32.xlu0 %v45
  %v182 = vpop.xlane.xlu0 %181
  %183 = vadd.xlane.f32.xlu0 %v46
  %v184 = vpop.xlane.xlu0 %183
  %185 = vadd.xlane.f32.xlu0 %v47
  %v186 = vpop.xlane.xlu0 %185
  %187 = vadd.xlane.f32.xlu0 %v48
  %v188 = vpop.xlane.xlu0 %187
  %189 = vadd.xlane.f32.xlu0 %v49
  %v190 = vpop.xlane.xlu0 %189
  %191 = vadd.xlane.f32.xlu0 %v50
  %v192 = vpop.xlane.xlu0 %191
  %193 = vadd.xlane.f32.xlu0 %v51
  %v194 = vpop.xlane.xlu0 %193
  %195 = vadd.xlane.f32.xlu0 %v52
  %v196 = vpop.xlane.xlu0 %195
  %197 = vadd.xlane.f32.xlu0 %v53
  %v198 = vpop.xlane.xlu0 %197
  %199 = vadd.xlane.f32.xlu0 %v54
  %v200 = vpop.xlane.xlu0 %199
  %201 = vadd.xlane.f32.xlu0 %v55
  %v202 = vpop.xlane.xlu0 %201
  %203 = vadd.xlane.f32.xlu0 %v56
  %v204 = vpop.xlane.xlu0 %203
  %205 = vadd.xlane.f32.xlu0 %v57
  %v206 = vpop.xlane.xlu0 %205
  %207 = vadd.xlane.f32.xlu0 %v58
  %v208 = vpop.xlane.xlu0 %207
  %209 = vadd.xlane.f32.xlu0 %v59
  %v210 = vpop.xlane.xlu0 %209
  %211 = vadd.xlane.f32.xlu0 %v60
  %v212 = vpop.xlane.xlu0 %211
  %213 = vadd.xlane.f32.xlu0 %v61
  %v214 = vpop.xlane.xlu0 %213
  %215 = vadd.xlane.f32.xlu0 %v62
  %v216 = vpop.xlane.xlu0 %215
  %217 = vadd.xlane.f32.xlu0 %v63
  %v218 = vpop.xlane.xlu0 %217
  %219 = vadd.xlane.f32.xlu0 %v64
  %v220 = vpop.xlane.xlu0 %219
  %221 = vadd.xlane.f32.xlu0 %v65
  %v222 = vpop.xlane.xlu0 %221
  %223 = vadd.xlane.f32.xlu0 %v66
  %v224 = vpop.xlane.xlu0 %223
  %225 = vadd.xlane.f32.xlu0 %v67
  %v226 = vpop.xlane.xlu0 %225
  %227 = vadd.xlane.f32.xlu0 %v68
  %v228 = vpop.xlane.xlu0 %227
  %229 = vadd.xlane.f32.xlu0 %v69
  %v230 = vpop.xlane.xlu0 %229
  %231 = vadd.xlane.f32.xlu0 %v70
  %v232 = vpop.xlane.xlu0 %231
  %233 = vadd.xlane.f32.xlu0 %v71
  %v234 = vpop.xlane.xlu0 %233
  %235 = vadd.xlane.f32.xlu0 %v72
  %v236 = vpop.xlane.xlu0 %235
  %237 = vadd.xlane.f32.xlu0 %v73
  %v238 = vpop.xlane.xlu0 %237
  %239 = vadd.xlane.f32.xlu0 %v74
  %v240 = vpop.xlane.xlu0 %239
  %241 = vadd.xlane.f32.xlu0 %v75
  %v242 = vpop.xlane.xlu0 %241
  %243 = vadd.xlane.f32.xlu0 %v76
  %v244 = vpop.xlane.xlu0 %243
  %245 = vadd.xlane.f32.xlu0 %v77
  %v246 = vpop.xlane.xlu0 %245
  %247 = vadd.xlane.f32.xlu0 %v78
  %v248 = vpop.xlane.xlu0 %247
  %249 = vadd.xlane.f32.xlu0 %v79
  %v250 = vpop.xlane.xlu0 %249
  %251 = vadd.xlane.f32.xlu0 %v80
  %v252 = vpop.xlane.xlu0 %251
  %253 = vadd.xlane.f32.xlu0 %v81
  %v254 = vpop.xlane.xlu0 %253
  %255 = vadd.xlane.f32.xlu0 %v82
  %v256 = vpop.xlane.xlu0 %255
  %257 = vadd.xlane.f32.xlu0 %v83
  %v258 = vpop.xlane.xlu0 %257
  %259 = vadd.xlane.f32.xlu0 %v84
  %v260 = vpop.xlane.xlu0 %259
  %261 = vadd.xlane.f32.xlu0 %v85
  %v262 = vpop.xlane.xlu0 %261
  %263 = vadd.xlane.f32.xlu0 %v86
  %v264 = vpop.xlane.xlu0 %263
  %265 = vadd.xlane.f32.xlu0 %v87
  %v266 = vpop.xlane.xlu0 %265
  %267 = vadd.xlane.f32.xlu0 %v88
  %v268 = vpop.xlane.xlu0 %267
  %269 = vadd.xlane.f32.xlu0 %v89
  %v270 = vpop.xlane.xlu0 %269
  %271 = vadd.xlane.f32.xlu0 %v90
  %v272 = vpop.xlane.xlu0 %271
  %273 = vadd.xlane.f32.xlu0 %v91
  %v274 = vpop.xlane.xlu0 %273
  %275 = vadd.xlane.f32.xlu0 %v92
  %v276 = vpop.xlane.xlu0 %275
  %277 = vadd.xlane.f32.xlu0 %v93
  %v278 = vpop.xlane.xlu0 %277
  %279 = vadd.xlane.f32.xlu0 %v94
  %v280 = vpop.xlane.xlu0 %279
  %281 = vadd.xlane.f32.xlu0 %v95
  %v282 = vpop.xlane.xlu0 %281
  %283 = vadd.xlane.f32.xlu0 %v96
  %v284 = vpop.xlane.xlu0 %283
  %285 = vadd.xlane.f32.xlu0 %v97
  %v286 = vpop.xlane.xlu0 %285
  %287 = vadd.xlane.f32.xlu0 %v98
  %v288 = vpop.xlane.xlu0 %287
  %289 = vadd.xlane.f32.xlu0 %v99
  %v290 = vpop.xlane.xlu0 %289
  %291 = vadd.xlane.f32.xlu0 %v100
  %v292 = vpop.xlane.xlu0 %291
  %293 = vadd.xlane.f32.xlu0 %v101
  %v294 = vpop.xlane.xlu0 %293
  %295 = vadd.xlane.f32.xlu0 %v102
  %v296 = vpop.xlane.xlu0 %295
  %297 = vadd.xlane.f32.xlu0 %v103
  %v298 = vpop.xlane.xlu0 %297
  %299 = vadd.xlane.f32.xlu0 %v104
  %v300 = vpop.xlane.xlu0 %299
  %301 = vadd.xlane.f32.xlu0 %v105
  %v302 = vpop.xlane.xlu0 %301
  %v303 = vmul.f32 %v176, 0.25
  %v304 = vmul.f32 %v178, 0.25
  %v305 = vmul.f32 %v180, 0.25
  %v306 = vmul.f32 %v182, 0.25
  %v307 = vmul.f32 %v184, 0.25
  %v308 = vmul.f32 %v186, 0.25
  %v309 = vmul.f32 %v188, 0.25
  %v310 = vmul.f32 %v190, 0.25
  %v311 = vmul.f32 %v192, 0.25
  %v312 = vmul.f32 %v194, 0.25
  %v313 = vmul.f32 %v196, 0.25
  %v314 = vmul.f32 %v198, 0.25
  %v315 = vmul.f32 %v200, 0.25
  %v316 = vmul.f32 %v202, 0.25
  %v317 = vmul.f32 %v204, 0.25
  %v318 = vmul.f32 %v206, 0.25
  %v319 = vmul.f32 %v208, 0.25
  %v320 = vmul.f32 %v210, 0.25
  %v321 = vmul.f32 %v212, 0.25
  %v322 = vmul.f32 %v214, 0.25
  %v323 = vmul.f32 %v216, 0.25
  %v324 = vmul.f32 %v218, 0.25
  %v325 = vmul.f32 %v220, 0.25
  %v326 = vmul.f32 %v222, 0.25
  %v327 = vmul.f32 %v224, 0.25
  %v328 = vmul.f32 %v226, 0.25
  %v329 = vmul.f32 %v228, 0.25
  %v330 = vmul.f32 %v230, 0.25
  %v331 = vmul.f32 %v232, 0.25
  %v332 = vmul.f32 %v234, 0.25
  %v333 = vmul.f32 %v236, 0.25
  %v334 = vmul.f32 %v238, 0.25
  %v335 = vmul.f32 %v240, 0.25
  %v336 = vmul.f32 %v242, 0.25
  %v337 = vmul.f32 %v244, 0.25
  %v338 = vmul.f32 %v246, 0.25
  %v339 = vmul.f32 %v248, 0.25
  %v340 = vmul.f32 %v250, 0.25
  %v341 = vmul.f32 %v252, 0.25
  %v342 = vmul.f32 %v254, 0.25
  %v343 = vmul.f32 %v256, 0.25
  %v344 = vmul.f32 %v258, 0.25
  %v345 = vmul.f32 %v260, 0.25
  %v346 = vmul.f32 %v262, 0.25
  %v347 = vmul.f32 %v264, 0.25
  %v348 = vmul.f32 %v266, 0.25
  %v349 = vmul.f32 %v268, 0.25
  %v350 = vmul.f32 %v270, 0.25
  %v351 = vmul.f32 %v272, 0.25
  %v352 = vmul.f32 %v274, 0.25
  %v353 = vmul.f32 %v276, 0.25
  %v354 = vmul.f32 %v278, 0.25
  %v355 = vmul.f32 %v280, 0.25
  %v356 = vmul.f32 %v282, 0.25
  %v357 = vmul.f32 %v284, 0.25
  %v358 = vmul.f32 %v286, 0.25
  %v359 = vmul.f32 %v288, 0.25
  %v360 = vmul.f32 %v290, 0.25
  %v361 = vmul.f32 %v292, 0.25
  %v362 = vmul.f32 %v294, 0.25
  %v363 = vmul.f32 %v296, 0.25
  %v364 = vmul.f32 %v298, 0.25
  %v365 = vmul.f32 %v300, 0.25
  %v366 = vmul.f32 %v302, 0.25
  %v367 = vsub.f32 %v42, %v303
  %v368 = vsub.f32 %v43, %v304
  %v369 = vsub.f32 %v44, %v305
  %v370 = vsub.f32 %v45, %v306
  %v371 = vsub.f32 %v46, %v307
  %v372 = vsub.f32 %v47, %v308
  %v373 = vsub.f32 %v48, %v309
  %v374 = vsub.f32 %v49, %v310
  %v375 = vsub.f32 %v50, %v311
  %v376 = vsub.f32 %v51, %v312
  %v377 = vsub.f32 %v52, %v313
  %v378 = vsub.f32 %v53, %v314
  %v379 = vsub.f32 %v54, %v315
  %v380 = vsub.f32 %v55, %v316
  %v381 = vsub.f32 %v56, %v317
  %v382 = vsub.f32 %v57, %v318
  %v383 = vsub.f32 %v58, %v319
  %v384 = vsub.f32 %v59, %v320
  %v385 = vsub.f32 %v60, %v321
  %v386 = vsub.f32 %v61, %v322
  %v387 = vsub.f32 %v62, %v323
  %v388 = vsub.f32 %v63, %v324
  %v389 = vsub.f32 %v64, %v325
  %v390 = vsub.f32 %v65, %v326
  %v391 = vsub.f32 %v66, %v327
  %v392 = vsub.f32 %v67, %v328
  %v393 = vsub.f32 %v68, %v329
  %v394 = vsub.f32 %v69, %v330
  %v395 = vsub.f32 %v70, %v331
  %v396 = vsub.f32 %v71, %v332
  %v397 = vsub.f32 %v72, %v333
  %v398 = vsub.f32 %v73, %v334
  %v399 = vsub.f32 %v74, %v335
  %v400 = vsub.f32 %v75, %v336
  %v401 = vsub.f32 %v76, %v337
  %v402 = vsub.f32 %v77, %v338
  %v403 = vsub.f32 %v78, %v339
  %v404 = vsub.f32 %v79, %v340
  %v405 = vsub.f32 %v80, %v341
  %v406 = vsub.f32 %v81, %v342
  %v407 = vsub.f32 %v82, %v343
  %v408 = vsub.f32 %v83, %v344
  %v409 = vsub.f32 %v84, %v345
  %v410 = vsub.f32 %v85, %v346
  %v411 = vsub.f32 %v86, %v347
  %v412 = vsub.f32 %v87, %v348
  %v413 = vsub.f32 %v88, %v349
  %v414 = vsub.f32 %v89, %v350
  %v415 = vsub.f32 %v90, %v351
  %v416 = vsub.f32 %v91, %v352
  %v417 = vsub.f32 %v92, %v353
  %v418 = vsub.f32 %v93, %v354
  %v419 = vsub.f32 %v94, %v355
  %v420 = vsub.f32 %v95, %v356
  %v421 = vsub.f32 %v96, %v357
  %v422 = vsub.f32 %v97, %v358
  %v423 = vsub.f32 %v98, %v359
  %v424 = vsub.f32 %v99, %v360
  %v425 = vsub.f32 %v100, %v361
  %v426 = vsub.f32 %v101, %v362
  %v427 = vsub.f32 %v102, %v363
  %v428 = vsub.f32 %v103, %v364
  %v429 = vsub.f32 %v104, %v365
  %v430 = vsub.f32 %v105, %v366
  %v431 = vmul.f32 %v367, %v174
  %v432 = vmul.f32 %v368, %v174
  %v433 = vmul.f32 %v369, %v174
  %v434 = vmul.f32 %v370, %v174
  %v435 = vmul.f32 %v371, %v174
  %v436 = vmul.f32 %v372, %v174
  %v437 = vmul.f32 %v373, %v174
  %v438 = vmul.f32 %v374, %v174
  %v439 = vmul.f32 %v375, %v174
  %v440 = vmul.f32 %v376, %v174
  %v441 = vmul.f32 %v377, %v174
  %v442 = vmul.f32 %v378, %v174
  %v443 = vmul.f32 %v379, %v174
  %v444 = vmul.f32 %v380, %v174
  %v445 = vmul.f32 %v381, %v174
  %v446 = vmul.f32 %v382, %v174
  %v447 = vmul.f32 %v383, %v174
  %v448 = vmul.f32 %v384, %v174
  %v449 = vmul.f32 %v385, %v174
  %v450 = vmul.f32 %v386, %v174
  %v451 = vmul.f32 %v387, %v174
  %v452 = vmul.f32 %v388, %v174
  %v453 = vmul.f32 %v389, %v174
  %v454 = vmul.f32 %v390, %v174
  %v455 = vmul.f32 %v391, %v174
  %v456 = vmul.f32 %v392, %v174
  %v457 = vmul.f32 %v393, %v174
  %v458 = vmul.f32 %v394, %v174
  %v459 = vmul.f32 %v395, %v174
  %v460 = vmul.f32 %v396, %v174
  %v461 = vmul.f32 %v397, %v174
  %v462 = vmul.f32 %v398, %v174
  %v463 = vmul.f32 %v399, %v174
  %v464 = vmul.f32 %v400, %v174
  %v465 = vmul.f32 %v401, %v174
  %v466 = vmul.f32 %v402, %v174
  %v467 = vmul.f32 %v403, %v174
  %v468 = vmul.f32 %v404, %v174
  %v469 = vmul.f32 %v405, %v174
  %v470 = vmul.f32 %v406, %v174
  %v471 = vmul.f32 %v407, %v174
  %v472 = vmul.f32 %v408, %v174
  %v473 = vmul.f32 %v409, %v174
  %v474 = vmul.f32 %v410, %v174
  %v475 = vmul.f32 %v411, %v174
  %v476 = vmul.f32 %v412, %v174
  %v477 = vmul.f32 %v413, %v174
  %v478 = vmul.f32 %v414, %v174
  %v479 = vmul.f32 %v415, %v174
  %v480 = vmul.f32 %v416, %v174
  %v481 = vmul.f32 %v417, %v174
  %v482 = vmul.f32 %v418, %v174
  %v483 = vmul.f32 %v419, %v174
  %v484 = vmul.f32 %v420, %v174
  %v485 = vmul.f32 %v421, %v174
  %v486 = vmul.f32 %v422, %v174
  %v487 = vmul.f32 %v423, %v174
  %v488 = vmul.f32 %v424, %v174
  %v489 = vmul.f32 %v425, %v174
  %v490 = vmul.f32 %v426, %v174
  %v491 = vmul.f32 %v427, %v174
  %v492 = vmul.f32 %v428, %v174
  %v493 = vmul.f32 %v429, %v174
  %v494 = vmul.f32 %v430, %v174
  %v495 = vmul.f32 %v431, %v431
  %v496 = vmul.f32 %v432, %v432
  %v497 = vmul.f32 %v433, %v433
  %v498 = vmul.f32 %v434, %v434
  %v499 = vmul.f32 %v435, %v435
  %v500 = vmul.f32 %v436, %v436
  %v501 = vmul.f32 %v437, %v437
  %v502 = vmul.f32 %v438, %v438
  %v503 = vmul.f32 %v439, %v439
  %v504 = vmul.f32 %v440, %v440
  %v505 = vmul.f32 %v441, %v441
  %v506 = vmul.f32 %v442, %v442
  %v507 = vmul.f32 %v443, %v443
  %v508 = vmul.f32 %v444, %v444
  %v509 = vmul.f32 %v445, %v445
  %v510 = vmul.f32 %v446, %v446
  %v511 = vmul.f32 %v447, %v447
  %v512 = vmul.f32 %v448, %v448
  %v513 = vmul.f32 %v449, %v449
  %v514 = vmul.f32 %v450, %v450
  %v515 = vmul.f32 %v451, %v451
  %v516 = vmul.f32 %v452, %v452
  %v517 = vmul.f32 %v453, %v453
  %v518 = vmul.f32 %v454, %v454
  %v519 = vmul.f32 %v455, %v455
  %v520 = vmul.f32 %v456, %v456
  %v521 = vmul.f32 %v457, %v457
  %v522 = vmul.f32 %v458, %v458
  %v523 = vmul.f32 %v459, %v459
  %v524 = vmul.f32 %v460, %v460
  %v525 = vmul.f32 %v461, %v461
  %v526 = vmul.f32 %v462, %v462
  %v527 = vmul.f32 %v463, %v463
  %v528 = vmul.f32 %v464, %v464
  %v529 = vmul.f32 %v465, %v465
  %v530 = vmul.f32 %v466, %v466
  %v531 = vmul.f32 %v467, %v467
  %v532 = vmul.f32 %v468, %v468
  %v533 = vmul.f32 %v469, %v469
  %v534 = vmul.f32 %v470, %v470
  %v535 = vmul.f32 %v471, %v471
  %v536 = vmul.f32 %v472, %v472
  %v537 = vmul.f32 %v473, %v473
  %v538 = vmul.f32 %v474, %v474
  %v539 = vmul.f32 %v475, %v475
  %v540 = vmul.f32 %v476, %v476
  %v541 = vmul.f32 %v477, %v477
  %v542 = vmul.f32 %v478, %v478
  %v543 = vmul.f32 %v479, %v479
  %v544 = vmul.f32 %v480, %v480
  %v545 = vmul.f32 %v481, %v481
  %v546 = vmul.f32 %v482, %v482
  %v547 = vmul.f32 %v483, %v483
  %v548 = vmul.f32 %v484, %v484
  %v549 = vmul.f32 %v485, %v485
  %v550 = vmul.f32 %v486, %v486
  %v551 = vmul.f32 %v487, %v487
  %v552 = vmul.f32 %v488, %v488
  %v553 = vmul.f32 %v489, %v489
  %v554 = vmul.f32 %v490, %v490
  %v555 = vmul.f32 %v491, %v491
  %v556 = vmul.f32 %v492, %v492
  %v557 = vmul.f32 %v493, %v493
  %v558 = vmul.f32 %v494, %v494
  %559 = vadd.xlane.f32.xlu0 %v495
  %v560 = vpop.xlane.xlu0 %559
  %561 = vadd.xlane.f32.xlu0 %v496
  %v562 = vpop.xlane.xlu0 %561
  %563 = vadd.xlane.f32.xlu0 %v497
  %v564 = vpop.xlane.xlu0 %563
  %565 = vadd.xlane.f32.xlu0 %v498
  %v566 = vpop.xlane.xlu0 %565
  %567 = vadd.xlane.f32.xlu0 %v499
  %v568 = vpop.xlane.xlu0 %567
  %569 = vadd.xlane.f32.xlu0 %v500
  %v570 = vpop.xlane.xlu0 %569
  %571 = vadd.xlane.f32.xlu0 %v501
  %v572 = vpop.xlane.xlu0 %571
  %573 = vadd.xlane.f32.xlu0 %v502
  %v574 = vpop.xlane.xlu0 %573
  %575 = vadd.xlane.f32.xlu0 %v503
  %v576 = vpop.xlane.xlu0 %575
  %577 = vadd.xlane.f32.xlu0 %v504
  %v578 = vpop.xlane.xlu0 %577
  %579 = vadd.xlane.f32.xlu0 %v505
  %v580 = vpop.xlane.xlu0 %579
  %581 = vadd.xlane.f32.xlu0 %v506
  %v582 = vpop.xlane.xlu0 %581
  %583 = vadd.xlane.f32.xlu0 %v507
  %v584 = vpop.xlane.xlu0 %583
  %585 = vadd.xlane.f32.xlu0 %v508
  %v586 = vpop.xlane.xlu0 %585
  %587 = vadd.xlane.f32.xlu0 %v509
  %v588 = vpop.xlane.xlu0 %587
  %589 = vadd.xlane.f32.xlu0 %v510
  %v590 = vpop.xlane.xlu0 %589
  %591 = vadd.xlane.f32.xlu0 %v511
  %v592 = vpop.xlane.xlu0 %591
  %593 = vadd.xlane.f32.xlu0 %v512
  %v594 = vpop.xlane.xlu0 %593
  %595 = vadd.xlane.f32.xlu0 %v513
  %v596 = vpop.xlane.xlu0 %595
  %597 = vadd.xlane.f32.xlu0 %v514
  %v598 = vpop.xlane.xlu0 %597
  %599 = vadd.xlane.f32.xlu0 %v515
  %v600 = vpop.xlane.xlu0 %599
  %601 = vadd.xlane.f32.xlu0 %v516
  %v602 = vpop.xlane.xlu0 %601
  %603 = vadd.xlane.f32.xlu0 %v517
  %v604 = vpop.xlane.xlu0 %603
  %605 = vadd.xlane.f32.xlu0 %v518
  %v606 = vpop.xlane.xlu0 %605
  %607 = vadd.xlane.f32.xlu0 %v519
  %v608 = vpop.xlane.xlu0 %607
  %609 = vadd.xlane.f32.xlu0 %v520
  %v610 = vpop.xlane.xlu0 %609
  %611 = vadd.xlane.f32.xlu0 %v521
  %v612 = vpop.xlane.xlu0 %611
  %613 = vadd.xlane.f32.xlu0 %v522
  %v614 = vpop.xlane.xlu0 %613
  %615 = vadd.xlane.f32.xlu0 %v523
  %v616 = vpop.xlane.xlu0 %615
  %617 = vadd.xlane.f32.xlu0 %v524
  %v618 = vpop.xlane.xlu0 %617
  %619 = vadd.xlane.f32.xlu0 %v525
  %v620 = vpop.xlane.xlu0 %619
  %621 = vadd.xlane.f32.xlu0 %v526
  %v622 = vpop.xlane.xlu0 %621
  %623 = vadd.xlane.f32.xlu0 %v527
  %v624 = vpop.xlane.xlu0 %623
  %625 = vadd.xlane.f32.xlu0 %v528
  %v626 = vpop.xlane.xlu0 %625
  %627 = vadd.xlane.f32.xlu0 %v529
  %v628 = vpop.xlane.xlu0 %627
  %629 = vadd.xlane.f32.xlu0 %v530
  %v630 = vpop.xlane.xlu0 %629
  %631 = vadd.xlane.f32.xlu0 %v531
  %v632 = vpop.xlane.xlu0 %631
  %633 = vadd.xlane.f32.xlu0 %v532
  %v634 = vpop.xlane.xlu0 %633
  %635 = vadd.xlane.f32.xlu0 %v533
  %v636 = vpop.xlane.xlu0 %635
  %637 = vadd.xlane.f32.xlu0 %v534
  %v638 = vpop.xlane.xlu0 %637
  %639 = vadd.xlane.f32.xlu0 %v535
  %v640 = vpop.xlane.xlu0 %639
  %641 = vadd.xlane.f32.xlu0 %v536
  %v642 = vpop.xlane.xlu0 %641
  %643 = vadd.xlane.f32.xlu0 %v537
  %v644 = vpop.xlane.xlu0 %643
  %645 = vadd.xlane.f32.xlu0 %v538
  %v646 = vpop.xlane.xlu0 %645
  %647 = vadd.xlane.f32.xlu0 %v539
  %v648 = vpop.xlane.xlu0 %647
  %649 = vadd.xlane.f32.xlu0 %v540
  %v650 = vpop.xlane.xlu0 %649
  %651 = vadd.xlane.f32.xlu0 %v541
  %v652 = vpop.xlane.xlu0 %651
  %653 = vadd.xlane.f32.xlu0 %v542
  %v654 = vpop.xlane.xlu0 %653
  %655 = vadd.xlane.f32.xlu0 %v543
  %v656 = vpop.xlane.xlu0 %655
  %657 = vadd.xlane.f32.xlu0 %v544
  %v658 = vpop.xlane.xlu0 %657
  %659 = vadd.xlane.f32.xlu0 %v545
  %v660 = vpop.xlane.xlu0 %659
  %661 = vadd.xlane.f32.xlu0 %v546
  %v662 = vpop.xlane.xlu0 %661
  %663 = vadd.xlane.f32.xlu0 %v547
  %v664 = vpop.xlane.xlu0 %663
  %665 = vadd.xlane.f32.xlu0 %v548
  %v666 = vpop.xlane.xlu0 %665
  %667 = vadd.xlane.f32.xlu0 %v549
  %v668 = vpop.xlane.xlu0 %667
  %669 = vadd.xlane.f32.xlu0 %v550
  %v670 = vpop.xlane.xlu0 %669
  %671 = vadd.xlane.f32.xlu0 %v551
  %v672 = vpop.xlane.xlu0 %671
  %673 = vadd.xlane.f32.xlu0 %v552
  %v674 = vpop.xlane.xlu0 %673
  %675 = vadd.xlane.f32.xlu0 %v553
  %v676 = vpop.xlane.xlu0 %675
  %677 = vadd.xlane.f32.xlu0 %v554
  %v678 = vpop.xlane.xlu0 %677
  %679 = vadd.xlane.f32.xlu0 %v555
  %v680 = vpop.xlane.xlu0 %679
  %681 = vadd.xlane.f32.xlu0 %v556
  %v682 = vpop.xlane.xlu0 %681
  %683 = vadd.xlane.f32.xlu0 %v557
  %v684 = vpop.xlane.xlu0 %683
  %685 = vadd.xlane.f32.xlu0 %v558
  %v686 = vpop.xlane.xlu0 %685
  %v687 = vmul.f32 %v560, 0.25
  %v688 = vmul.f32 %v562, 0.25
  %v689 = vmul.f32 %v564, 0.25
  %v690 = vmul.f32 %v566, 0.25
  %v691 = vmul.f32 %v568, 0.25
  %v692 = vmul.f32 %v570, 0.25
  %v693 = vmul.f32 %v572, 0.25
  %v694 = vmul.f32 %v574, 0.25
  %v695 = vmul.f32 %v576, 0.25
  %v696 = vmul.f32 %v578, 0.25
  %v697 = vmul.f32 %v580, 0.25
  %v698 = vmul.f32 %v582, 0.25
  %v699 = vmul.f32 %v584, 0.25
  %v700 = vmul.f32 %v586, 0.25
  %v701 = vmul.f32 %v588, 0.25
  %v702 = vmul.f32 %v590, 0.25
  %v703 = vmul.f32 %v592, 0.25
  %v704 = vmul.f32 %v594, 0.25
  %v705 = vmul.f32 %v596, 0.25
  %v706 = vmul.f32 %v598, 0.25
  %v707 = vmul.f32 %v600, 0.25
  %v708 = vmul.f32 %v602, 0.25
  %v709 = vmul.f32 %v604, 0.25
  %v710 = vmul.f32 %v606, 0.25
  %v711 = vmul.f32 %v608, 0.25
  %v712 = vmul.f32 %v610, 0.25
  %v713 = vmul.f32 %v612, 0.25
  %v714 = vmul.f32 %v614, 0.25
  %v715 = vmul.f32 %v616, 0.25
  %v716 = vmul.f32 %v618, 0.25
  %v717 = vmul.f32 %v620, 0.25
  %v718 = vmul.f32 %v622, 0.25
  %v719 = vmul.f32 %v624, 0.25
  %v720 = vmul.f32 %v626, 0.25
  %v721 = vmul.f32 %v628, 0.25
  %v722 = vmul.f32 %v630, 0.25
  %v723 = vmul.f32 %v632, 0.25
  %v724 = vmul.f32 %v634, 0.25
  %v725 = vmul.f32 %v636, 0.25
  %v726 = vmul.f32 %v638, 0.25
  %v727 = vmul.f32 %v640, 0.25
  %v728 = vmul.f32 %v642, 0.25
  %v729 = vmul.f32 %v644, 0.25
  %v730 = vmul.f32 %v646, 0.25
  %v731 = vmul.f32 %v648, 0.25
  %v732 = vmul.f32 %v650, 0.25
  %v733 = vmul.f32 %v652, 0.25
  %v734 = vmul.f32 %v654, 0.25
  %v735 = vmul.f32 %v656, 0.25
  %v736 = vmul.f32 %v658, 0.25
  %v737 = vmul.f32 %v660, 0.25
  %v738 = vmul.f32 %v662, 0.25
  %v739 = vmul.f32 %v664, 0.25
  %v740 = vmul.f32 %v666, 0.25
  %v741 = vmul.f32 %v668, 0.25
  %v742 = vmul.f32 %v670, 0.25
  %v743 = vmul.f32 %v672, 0.25
  %v744 = vmul.f32 %v674, 0.25
  %v745 = vmul.f32 %v676, 0.25
  %v746 = vmul.f32 %v678, 0.25
  %v747 = vmul.f32 %v680, 0.25
  %v748 = vmul.f32 %v682, 0.25
  %v749 = vmul.f32 %v684, 0.25
  %v750 = vmul.f32 %v686, 0.25
  %v751 = vadd.f32 %v687, 1e-05
  %v752 = vadd.f32 %v688, 1e-05
  %v753 = vadd.f32 %v689, 1e-05
  %v754 = vadd.f32 %v690, 1e-05
  %v755 = vadd.f32 %v691, 1e-05
  %v756 = vadd.f32 %v692, 1e-05
  %v757 = vadd.f32 %v693, 1e-05
  %v758 = vadd.f32 %v694, 1e-05
  %v759 = vadd.f32 %v695, 1e-05
  %v760 = vadd.f32 %v696, 1e-05
  %v761 = vadd.f32 %v697, 1e-05
  %v762 = vadd.f32 %v698, 1e-05
  %v763 = vadd.f32 %v699, 1e-05
  %v764 = vadd.f32 %v700, 1e-05
  %v765 = vadd.f32 %v701, 1e-05
  %v766 = vadd.f32 %v702, 1e-05
  %v767 = vadd.f32 %v703, 1e-05
  %v768 = vadd.f32 %v704, 1e-05
  %v769 = vadd.f32 %v705, 1e-05
  %v770 = vadd.f32 %v706, 1e-05
  %v771 = vadd.f32 %v707, 1e-05
  %v772 = vadd.f32 %v708, 1e-05
  %v773 = vadd.f32 %v709, 1e-05
  %v774 = vadd.f32 %v710, 1e-05
  %v775 = vadd.f32 %v711, 1e-05
  %v776 = vadd.f32 %v712, 1e-05
  %v777 = vadd.f32 %v713, 1e-05
  %v778 = vadd.f32 %v714, 1e-05
  %v779 = vadd.f32 %v715, 1e-05
  %v780 = vadd.f32 %v716, 1e-05
  %v781 = vadd.f32 %v717, 1e-05
  %v782 = vadd.f32 %v718, 1e-05
  %v783 = vadd.f32 %v719, 1e-05
  %v784 = vadd.f32 %v720, 1e-05
  %v785 = vadd.f32 %v721, 1e-05
  %v786 = vadd.f32 %v722, 1e-05
  %v787 = vadd.f32 %v723, 1e-05
  %v788 = vadd.f32 %v724, 1e-05
  %v789 = vadd.f32 %v725, 1e-05
  %v790 = vadd.f32 %v726, 1e-05
  %v791 = vadd.f32 %v727, 1e-05
  %v792 = vadd.f32 %v728, 1e-05
  %v793 = vadd.f32 %v729, 1e-05
  %v794 = vadd.f32 %v730, 1e-05
  %v795 = vadd.f32 %v731, 1e-05
  %v796 = vadd.f32 %v732, 1e-05
  %v797 = vadd.f32 %v733, 1e-05
  %v798 = vadd.f32 %v734, 1e-05
  %v799 = vadd.f32 %v735, 1e-05
  %v800 = vadd.f32 %v736, 1e-05
  %v801 = vadd.f32 %v737, 1e-05
  %v802 = vadd.f32 %v738, 1e-05
  %v803 = vadd.f32 %v739, 1e-05
  %v804 = vadd.f32 %v740, 1e-05
  %v805 = vadd.f32 %v741, 1e-05
  %v806 = vadd.f32 %v742, 1e-05
  %v807 = vadd.f32 %v743, 1e-05
  %v808 = vadd.f32 %v744, 1e-05
  %v809 = vadd.f32 %v745, 1e-05
  %v810 = vadd.f32 %v746, 1e-05
  %v811 = vadd.f32 %v747, 1e-05
  %v812 = vadd.f32 %v748, 1e-05
  %v813 = vadd.f32 %v749, 1e-05
  %v814 = vadd.f32 %v750, 1e-05
  %v815 = vrsqrt.pop %v751
  %v816 = vrsqrt.pop %v752
  %v817 = vrsqrt.pop %v753
  %v818 = vrsqrt.pop %v754
  %v819 = vrsqrt.pop %v755
  %v820 = vrsqrt.pop %v756
  %v821 = vrsqrt.pop %v757
  %v822 = vrsqrt.pop %v758
  %v823 = vrsqrt.pop %v759
  %v824 = vrsqrt.pop %v760
  %v825 = vrsqrt.pop %v761
  %v826 = vrsqrt.pop %v762
  %v827 = vrsqrt.pop %v763
  %v828 = vrsqrt.pop %v764
  %v829 = vrsqrt.pop %v765
  %v830 = vrsqrt.pop %v766
  %v831 = vrsqrt.pop %v767
  %v832 = vrsqrt.pop %v768
  %v833 = vrsqrt.pop %v769
  %v834 = vrsqrt.pop %v770
  %v835 = vrsqrt.pop %v771
  %v836 = vrsqrt.pop %v772
  %v837 = vrsqrt.pop %v773
  %v838 = vrsqrt.pop %v774
  %v839 = vrsqrt.pop %v775
  %v840 = vrsqrt.pop %v776
  %v841 = vrsqrt.pop %v777
  %v842 = vrsqrt.pop %v778
  %v843 = vrsqrt.pop %v779
  %v844 = vrsqrt.pop %v780
  %v845 = vrsqrt.pop %v781
  %v846 = vrsqrt.pop %v782
  %v847 = vrsqrt.pop %v783
  %v848 = vrsqrt.pop %v784
  %v849 = vrsqrt.pop %v785
  %v850 = vrsqrt.pop %v786
  %v851 = vrsqrt.pop %v787
  %v852 = vrsqrt.pop %v788
  %v853 = vrsqrt.pop %v789
  %v854 = vrsqrt.pop %v790
  %v855 = vrsqrt.pop %v791
  %v856 = vrsqrt.pop %v792
  %v857 = vrsqrt.pop %v793
  %v858 = vrsqrt.pop %v794
  %v859 = vrsqrt.pop %v795
  %v860 = vrsqrt.pop %v796
  %v861 = vrsqrt.pop %v797
  %v862 = vrsqrt.pop %v798
  %v863 = vrsqrt.pop %v799
  %v864 = vrsqrt.pop %v800
  %v865 = vrsqrt.pop %v801
  %v866 = vrsqrt.pop %v802
  %v867 = vrsqrt.pop %v803
  %v868 = vrsqrt.pop %v804
  %v869 = vrsqrt.pop %v805
  %v870 = vrsqrt.pop %v806
  %v871 = vrsqrt.pop %v807
  %v872 = vrsqrt.pop %v808
  %v873 = vrsqrt.pop %v809
  %v874 = vrsqrt.pop %v810
  %v875 = vrsqrt.pop %v811
  %v876 = vrsqrt.pop %v812
  %v877 = vrsqrt.pop %v813
  %v878 = vrsqrt.pop %v814
  %v879 = vmul.f32 %v431, %v815
  %v880 = vmul.f32 %v432, %v816
  %v881 = vmul.f32 %v433, %v817
  %v882 = vmul.f32 %v434, %v818
  %v883 = vmul.f32 %v435, %v819
  %v884 = vmul.f32 %v436, %v820
  %v885 = vmul.f32 %v437, %v821
  %v886 = vmul.f32 %v438, %v822
  %v887 = vmul.f32 %v439, %v823
  %v888 = vmul.f32 %v440, %v824
  %v889 = vmul.f32 %v441, %v825
  %v890 = vmul.f32 %v442, %v826
  %v891 = vmul.f32 %v443, %v827
  %v892 = vmul.f32 %v444, %v828
  %v893 = vmul.f32 %v445, %v829
  %v894 = vmul.f32 %v446, %v830
  %v895 = vmul.f32 %v447, %v831
  %v896 = vmul.f32 %v448, %v832
  %v897 = vmul.f32 %v449, %v833
  %v898 = vmul.f32 %v450, %v834
  %v899 = vmul.f32 %v451, %v835
  %v900 = vmul.f32 %v452, %v836
  %v901 = vmul.f32 %v453, %v837
  %v902 = vmul.f32 %v454, %v838
  %v903 = vmul.f32 %v455, %v839
  %v904 = vmul.f32 %v456, %v840
  %v905 = vmul.f32 %v457, %v841
  %v906 = vmul.f32 %v458, %v842
  %v907 = vmul.f32 %v459, %v843
  %v908 = vmul.f32 %v460, %v844
  %v909 = vmul.f32 %v461, %v845
  %v910 = vmul.f32 %v462, %v846
  %v911 = vmul.f32 %v463, %v847
  %v912 = vmul.f32 %v464, %v848
  %v913 = vmul.f32 %v465, %v849
  %v914 = vmul.f32 %v466, %v850
  %v915 = vmul.f32 %v467, %v851
  %v916 = vmul.f32 %v468, %v852
  %v917 = vmul.f32 %v469, %v853
  %v918 = vmul.f32 %v470, %v854
  %v919 = vmul.f32 %v471, %v855
  %v920 = vmul.f32 %v472, %v856
  %v921 = vmul.f32 %v473, %v857
  %v922 = vmul.f32 %v474, %v858
  %v923 = vmul.f32 %v475, %v859
  %v924 = vmul.f32 %v476, %v860
  %v925 = vmul.f32 %v477, %v861
  %v926 = vmul.f32 %v478, %v862
  %v927 = vmul.f32 %v479, %v863
  %v928 = vmul.f32 %v480, %v864
  %v929 = vmul.f32 %v481, %v865
  %v930 = vmul.f32 %v482, %v866
  %v931 = vmul.f32 %v483, %v867
  %v932 = vmul.f32 %v484, %v868
  %v933 = vmul.f32 %v485, %v869
  %v934 = vmul.f32 %v486, %v870
  %v935 = vmul.f32 %v487, %v871
  %v936 = vmul.f32 %v488, %v872
  %v937 = vmul.f32 %v489, %v873
  %v938 = vmul.f32 %v490, %v874
  %v939 = vmul.f32 %v491, %v875
  %v940 = vmul.f32 %v492, %v876
  %v941 = vmul.f32 %v493, %v877
  %v942 = vmul.f32 %v494, %v878
  %v943 = vld [vmem:[%s2] sm:$0x1]
  %v945 = vlaneseq
  %v946 = vshrl.u32 %v945, 7
  %v947 = vsub.s32 0, %v946
  %v948 = vrot.slane %v943, %v947
  %v950 = vmul.f32 %v879, %v948
  %v951 = vmul.f32 %v880, %v948
  %v952 = vmul.f32 %v881, %v948
  %v953 = vmul.f32 %v882, %v948
  %v954 = vmul.f32 %v883, %v948
  %v955 = vmul.f32 %v884, %v948
  %v956 = vmul.f32 %v885, %v948
  %v957 = vmul.f32 %v886, %v948
  %v958 = vmul.f32 %v887, %v948
  %v959 = vmul.f32 %v888, %v948
  %v960 = vmul.f32 %v889, %v948
  %v961 = vmul.f32 %v890, %v948
  %v962 = vmul.f32 %v891, %v948
  %v963 = vmul.f32 %v892, %v948
  %v964 = vmul.f32 %v893, %v948
  %v965 = vmul.f32 %v894, %v948
  %v966 = vmul.f32 %v895, %v948
  %v967 = vmul.f32 %v896, %v948
  %v968 = vmul.f32 %v897, %v948
  %v969 = vmul.f32 %v898, %v948
  %v970 = vmul.f32 %v899, %v948
  %v971 = vmul.f32 %v900, %v948
  %v972 = vmul.f32 %v901, %v948
  %v973 = vmul.f32 %v902, %v948
  %v974 = vmul.f32 %v903, %v948
  %v975 = vmul.f32 %v904, %v948
  %v976 = vmul.f32 %v905, %v948
  %v977 = vmul.f32 %v906, %v948
  %v978 = vmul.f32 %v907, %v948
  %v979 = vmul.f32 %v908, %v948
  %v980 = vmul.f32 %v909, %v948
  %v981 = vmul.f32 %v910, %v948
  %v982 = vmul.f32 %v911, %v948
  %v983 = vmul.f32 %v912, %v948
  %v984 = vmul.f32 %v913, %v948
  %v985 = vmul.f32 %v914, %v948
  %v986 = vmul.f32 %v915, %v948
  %v987 = vmul.f32 %v916, %v948
  %v988 = vmul.f32 %v917, %v948
  %v989 = vmul.f32 %v918, %v948
  %v990 = vmul.f32 %v919, %v948
  %v991 = vmul.f32 %v920, %v948
  %v992 = vmul.f32 %v921, %v948
  %v993 = vmul.f32 %v922, %v948
  %v994 = vmul.f32 %v923, %v948
  %v995 = vmul.f32 %v924, %v948
  %v996 = vmul.f32 %v925, %v948
  %v997 = vmul.f32 %v926, %v948
  %v998 = vmul.f32 %v927, %v948
  %v999 = vmul.f32 %v928, %v948
  %v1000 = vmul.f32 %v929, %v948
  %v1001 = vmul.f32 %v930, %v948
  %v1002 = vmul.f32 %v931, %v948
  %v1003 = vmul.f32 %v932, %v948
  %v1004 = vmul.f32 %v933, %v948
  %v1005 = vmul.f32 %v934, %v948
  %v1006 = vmul.f32 %v935, %v948
  %v1007 = vmul.f32 %v936, %v948
  %v1008 = vmul.f32 %v937, %v948
  %v1009 = vmul.f32 %v938, %v948
  %v1010 = vmul.f32 %v939, %v948
  %v1011 = vmul.f32 %v940, %v948
  %v1012 = vmul.f32 %v941, %v948
  %v1013 = vmul.f32 %v942, %v948
  %v1014 = vld [vmem:[%s3] sm:$0x1]
  %v1016 = vlaneseq
  %v1017 = vshrl.u32 %v1016, 7
  %v1018 = vsub.s32 0, %v1017
  %v1019 = vrot.slane %v1014, %v1018
  %v1021 = vadd.f32 %v950, %v1019
  %v1022 = vadd.f32 %v951, %v1019
  %v1023 = vadd.f32 %v952, %v1019
  %v1024 = vadd.f32 %v953, %v1019
  %v1025 = vadd.f32 %v954, %v1019
  %v1026 = vadd.f32 %v955, %v1019
  %v1027 = vadd.f32 %v956, %v1019
  %v1028 = vadd.f32 %v957, %v1019
  %v1029 = vadd.f32 %v958, %v1019
  %v1030 = vadd.f32 %v959, %v1019
  %v1031 = vadd.f32 %v960, %v1019
  %v1032 = vadd.f32 %v961, %v1019
  %v1033 = vadd.f32 %v962, %v1019
  %v1034 = vadd.f32 %v963, %v1019
  %v1035 = vadd.f32 %v964, %v1019
  %v1036 = vadd.f32 %v965, %v1019
  %v1037 = vadd.f32 %v966, %v1019
  %v1038 = vadd.f32 %v967, %v1019
  %v1039 = vadd.f32 %v968, %v1019
  %v1040 = vadd.f32 %v969, %v1019
  %v1041 = vadd.f32 %v970, %v1019
  %v1042 = vadd.f32 %v971, %v1019
  %v1043 = vadd.f32 %v972, %v1019
  %v1044 = vadd.f32 %v973, %v1019
  %v1045 = vadd.f32 %v974, %v1019
  %v1046 = vadd.f32 %v975, %v1019
  %v1047 = vadd.f32 %v976, %v1019
  %v1048 = vadd.f32 %v977, %v1019
  %v1049 = vadd.f32 %v978, %v1019
  %v1050 = vadd.f32 %v979, %v1019
  %v1051 = vadd.f32 %v980, %v1019
  %v1052 = vadd.f32 %v981, %v1019
  %v1053 = vadd.f32 %v982, %v1019
  %v1054 = vadd.f32 %v983, %v1019
  %v1055 = vadd.f32 %v984, %v1019
  %v1056 = vadd.f32 %v985, %v1019
  %v1057 = vadd.f32 %v986, %v1019
  %v1058 = vadd.f32 %v987, %v1019
  %v1059 = vadd.f32 %v988, %v1019
  %v1060 = vadd.f32 %v989, %v1019
  %v1061 = vadd.f32 %v990, %v1019
  %v1062 = vadd.f32 %v991, %v1019
  %v1063 = vadd.f32 %v992, %v1019
  %v1064 = vadd.f32 %v993, %v1019
  %v1065 = vadd.f32 %v994, %v1019
  %v1066 = vadd.f32 %v995, %v1019
  %v1067 = vadd.f32 %v996, %v1019
  %v1068 = vadd.f32 %v997, %v1019
  %v1069 = vadd.f32 %v998, %v1019
  %v1070 = vadd.f32 %v999, %v1019
  %v1071 = vadd.f32 %v1000, %v1019
  %v1072 = vadd.f32 %v1001, %v1019
  %v1073 = vadd.f32 %v1002, %v1019
  %v1074 = vadd.f32 %v1003, %v1019
  %v1075 = vadd.f32 %v1004, %v1019
  %v1076 = vadd.f32 %v1005, %v1019
  %v1077 = vadd.f32 %v1006, %v1019
  %v1078 = vadd.f32 %v1007, %v1019
  %v1079 = vadd.f32 %v1008, %v1019
  %v1080 = vadd.f32 %v1009, %v1019
  %v1081 = vadd.f32 %v1010, %v1019
  %v1082 = vadd.f32 %v1011, %v1019
  %v1083 = vadd.f32 %v1012, %v1019
  %v1084 = vadd.f32 %v1013, %v1019
  %v1085 = vpack.c.bf16 %v1022, %v1021
  %v1086 = vpack.c.bf16 %v1024, %v1023
  %v1087 = vpack.c.bf16 %v1026, %v1025
  %v1088 = vpack.c.bf16 %v1028, %v1027
  %v1089 = vpack.c.bf16 %v1030, %v1029
  %v1090 = vpack.c.bf16 %v1032, %v1031
  %v1091 = vpack.c.bf16 %v1034, %v1033
  %v1092 = vpack.c.bf16 %v1036, %v1035
  %v1093 = vpack.c.bf16 %v1038, %v1037
  %v1094 = vpack.c.bf16 %v1040, %v1039
  %v1095 = vpack.c.bf16 %v1042, %v1041
  %v1096 = vpack.c.bf16 %v1044, %v1043
  %v1097 = vpack.c.bf16 %v1046, %v1045
  %v1098 = vpack.c.bf16 %v1048, %v1047
  %v1099 = vpack.c.bf16 %v1050, %v1049
  %v1100 = vpack.c.bf16 %v1052, %v1051
  %v1101 = vpack.c.bf16 %v1054, %v1053
  %v1102 = vpack.c.bf16 %v1056, %v1055
  %v1103 = vpack.c.bf16 %v1058, %v1057
  %v1104 = vpack.c.bf16 %v1060, %v1059
  %v1105 = vpack.c.bf16 %v1062, %v1061
  %v1106 = vpack.c.bf16 %v1064, %v1063
  %v1107 = vpack.c.bf16 %v1066, %v1065
  %v1108 = vpack.c.bf16 %v1068, %v1067
  %v1109 = vpack.c.bf16 %v1070, %v1069
  %v1110 = vpack.c.bf16 %v1072, %v1071
  %v1111 = vpack.c.bf16 %v1074, %v1073
  %v1112 = vpack.c.bf16 %v1076, %v1075
  %v1113 = vpack.c.bf16 %v1078, %v1077
  %v1114 = vpack.c.bf16 %v1080, %v1079
  %v1115 = vpack.c.bf16 %v1082, %v1081
  %v1116 = vpack.c.bf16 %v1084, %v1083
  %v1117 = vld [vmem:[%s4] sm:$0xf]
  %v1118 = vld [vmem:[%s4 + $0x4] sm:$0xf]
  %v1119 = vld [vmem:[%s4 + $0x8] sm:$0xf]
  %v1120 = vld [vmem:[%s4 + $0xc] sm:$0xf]
  %v1121 = vld [vmem:[%s4 + $0x10] sm:$0xf]
  %v1122 = vld [vmem:[%s4 + $0x14] sm:$0xf]
  %v1123 = vld [vmem:[%s4 + $0x18] sm:$0xf]
  %v1124 = vld [vmem:[%s4 + $0x1c] sm:$0xf]
  %v1125 = vld [vmem:[%s4 + $0x20] sm:$0xf]
  %v1126 = vld [vmem:[%s4 + $0x24] sm:$0xf]
  %v1127 = vld [vmem:[%s4 + $0x28] sm:$0xf]
  %v1128 = vld [vmem:[%s4 + $0x2c] sm:$0xf]
  %v1129 = vld [vmem:[%s4 + $0x30] sm:$0xf]
  %v1130 = vld [vmem:[%s4 + $0x34] sm:$0xf]
  %v1131 = vld [vmem:[%s4 + $0x38] sm:$0xf]
  %v1132 = vld [vmem:[%s4 + $0x3c] sm:$0xf]
  %v1149 = vunpack.c.l.b16 %v1117
  %v1150 = vunpack.c.l.b16 %v1118
  %v1151 = vunpack.c.l.b16 %v1119
  %v1152 = vunpack.c.l.b16 %v1120
  %v1153 = vunpack.c.l.b16 %v1121
  %v1154 = vunpack.c.l.b16 %v1122
  %v1155 = vunpack.c.l.b16 %v1123
  %v1156 = vunpack.c.l.b16 %v1124
  %v1157 = vunpack.c.l.b16 %v1125
  %v1158 = vunpack.c.l.b16 %v1126
  %v1159 = vunpack.c.l.b16 %v1127
  %v1160 = vunpack.c.l.b16 %v1128
  %v1161 = vunpack.c.l.b16 %v1129
  %v1162 = vunpack.c.l.b16 %v1130
  %v1163 = vunpack.c.l.b16 %v1131
  %v1164 = vunpack.c.l.b16 %v1132
  %v1165 = vpack.c.b16 %v1150, %v1149
  %v1166 = vpack.c.b16 %v1152, %v1151
  %v1167 = vpack.c.b16 %v1154, %v1153
  %v1168 = vpack.c.b16 %v1156, %v1155
  %v1169 = vpack.c.b16 %v1158, %v1157
  %v1170 = vpack.c.b16 %v1160, %v1159
  %v1171 = vpack.c.b16 %v1162, %v1161
  %v1172 = vpack.c.b16 %v1164, %v1163
  %1181 = vmatprep.subr.bf16.mxu0 0
  %1182 = vmatpush1.bf16.msra.mxu0 %v1165
  %1183 = vmatprep.subr.bf16.mxu0 0
  %1184 = vmatpush1.bf16.msra.mxu0 %v1166
  %1185 = vmatprep.subr.bf16.mxu0 0
  %1186 = vmatpush1.bf16.msra.mxu0 %v1167
  %1187 = vmatprep.subr.bf16.mxu0 0
  %1188 = vmatpush1.bf16.msra.mxu0 %v1168
  %1189 = vmatprep.subr.bf16.mxu0 0
  %1190 = vmatpush1.bf16.msra.mxu0 %v1169
  %1191 = vmatprep.subr.bf16.mxu0 0
  %1192 = vmatpush1.bf16.msra.mxu0 %v1170
  %1193 = vmatprep.subr.bf16.mxu0 0
  %1194 = vmatpush1.bf16.msra.mxu0 %v1171
  %1195 = vmatprep.subr.bf16.mxu0 0
  %1196 = vmatpush1.bf16.msra.mxu0 %v1172
  %1197 = vmatprep.subr.bf16.mxu0 0
  %1198 = vmatpush1.bf16.msra.mxu0 0
  %1199 = vmatprep.subr.bf16.mxu0 0
  %1200 = vmatpush1.bf16.msra.mxu0 0
  %1201 = vmatprep.subr.bf16.mxu0 0
  %1202 = vmatpush1.bf16.msra.mxu0 0
  %1203 = vmatprep.subr.bf16.mxu0 0
  %1204 = vmatpush1.bf16.msra.mxu0 0
  %1205 = vmatprep.subr.bf16.mxu0 0
  %1206 = vmatpush1.bf16.msra.mxu0 0
  %1207 = vmatprep.subr.bf16.mxu0 0
  %1208 = vmatpush1.bf16.msra.mxu0 0
  %1209 = vmatprep.subr.bf16.mxu0 0
  %1210 = vmatpush1.bf16.msra.mxu0 0
  %1211 = vmatprep.subr.bf16.mxu0 0
  %1212 = vmatpush1.bf16.msra.mxu0 0
  %1213 = vmatprep.mubr.bf16.mxu0 0
  %1214 = vmatmul.mubr.bf16.gmra.mrb[0].mxu0 %v1085
  %v1215 = vpop.f32.mrb[0].mxu0
  %v1216 = vadd.f32 0.0, %v1215
  %v1217 = vpop.f32.mrb[0].mxu0
  %v1218 = vpop.f32.mrb[0].mxu0
  %v1219 = vadd.f32 0.0, %v1218
  %v1220 = vpop.f32.mrb[0].mxu0
  %1221 = vmatprep.mubr.bf16.mxu0 0
  %1222 = vmatmul.mubr.bf16.gmra.mrb[0].mxu0 %v1086
  %v1223 = vpop.f32.mrb[0].mxu0
  %v1224 = vadd.f32 0.0, %v1223
  %v1225 = vpop.f32.mrb[0].mxu0
  %v1226 = vpop.f32.mrb[0].mxu0
  %v1227 = vadd.f32 0.0, %v1226
  %v1228 = vpop.f32.mrb[0].mxu0
  %1229 = vmatprep.mubr.bf16.mxu0 0
  %1230 = vmatmul.mubr.bf16.gmra.mrb[0].mxu0 %v1087
  %v1231 = vpop.f32.mrb[0].mxu0
  %v1232 = vadd.f32 0.0, %v1231
  %v1233 = vpop.f32.mrb[0].mxu0
  %v1234 = vpop.f32.mrb[0].mxu0
  %v1235 = vadd.f32 0.0, %v1234
  %v1236 = vpop.f32.mrb[0].mxu0
  %1237 = vmatprep.mubr.bf16.mxu0 0
  %1238 = vmatmul.mubr.bf16.gmra.mrb[0].mxu0 %v1088
  %v1239 = vpop.f32.mrb[0].mxu0
  %v1240 = vadd.f32 0.0, %v1239
  %v1241 = vpop.f32.mrb[0].mxu0
  %v1242 = vpop.f32.mrb[0].mxu0
  %v1243 = vadd.f32 0.0, %v1242
  %v1244 = vpop.f32.mrb[0].mxu0
  %1245 = vmatprep.mubr.bf16.mxu0 0
  %1246 = vmatmul.mubr.bf16.gmra.mrb[0].mxu0 %v1089
  %v1247 = vpop.f32.mrb[0].mxu0
  %v1248 = vadd.f32 0.0, %v1247
  %v1249 = vpop.f32.mrb[0].mxu0
  %v1250 = vpop.f32.mrb[0].mxu0
  %v1251 = vadd.f32 0.0, %v1250
  %v1252 = vpop.f32.mrb[0].mxu0
  %1253 = vmatprep.mubr.bf16.mxu0 0
  %1254 = vmatmul.mubr.bf16.gmra.mrb[0].mxu0 %v1090
  %v1255 = vpop.f32.mrb[0].mxu0
  %v1256 = vadd.f32 0.0, %v1255
  %v1257 = vpop.f32.mrb[0].mxu0
  %v1258 = vpop.f32.mrb[0].mxu0
  %v1259 = vadd.f32 0.0, %v1258
  %v1260 = vpop.f32.mrb[0].mxu0
  %1261 = vmatprep.mubr.bf16.mxu0 0
  %1262 = vmatmul.mubr.bf16.gmra.mrb[0].mxu0 %v1091
  %v1263 = vpop.f32.mrb[0].mxu0
  %v1264 = vadd.f32 0.0, %v1263
  %v1265 = vpop.f32.mrb[0].mxu0
  %v1266 = vpop.f32.mrb[0].mxu0
  %v1267 = vadd.f32 0.0, %v1266
  %v1268 = vpop.f32.mrb[0].mxu0
  %1269 = vmatprep.mubr.bf16.mxu0 0
  %1270 = vmatmul.mubr.bf16.gmra.mrb[0].mxu0 %v1092
  %v1271 = vpop.f32.mrb[0].mxu0
  %v1272 = vadd.f32 0.0, %v1271
  %v1273 = vpop.f32.mrb[0].mxu0
  %v1274 = vpop.f32.mrb[0].mxu0
  %v1275 = vadd.f32 0.0, %v1274
  %v1276 = vpop.f32.mrb[0].mxu0
  %1277 = vmatprep.mubr.bf16.mxu0 0
  %1278 = vmatmul.mubr.bf16.gmra.mrb[0].mxu0 %v1093
  %v1279 = vpop.f32.mrb[0].mxu0
  %v1280 = vadd.f32 0.0, %v1279
  %v1281 = vpop.f32.mrb[0].mxu0
  %v1282 = vpop.f32.mrb[0].mxu0
  %v1283 = vadd.f32 0.0, %v1282
  %v1284 = vpop.f32.mrb[0].mxu0
  %1285 = vmatprep.mubr.bf16.mxu0 0
  %1286 = vmatmul.mubr.bf16.gmra.mrb[0].mxu0 %v1094
  %v1287 = vpop.f32.mrb[0].mxu0
  %v1288 = vadd.f32 0.0, %v1287
  %v1289 = vpop.f32.mrb[0].mxu0
  %v1290 = vpop.f32.mrb[0].mxu0
  %v1291 = vadd.f32 0.0, %v1290
  %v1292 = vpop.f32.mrb[0].mxu0
  %1293 = vmatprep.mubr.bf16.mxu0 0
  %1294 = vmatmul.mubr.bf16.gmra.mrb[0].mxu0 %v1095
  %v1295 = vpop.f32.mrb[0].mxu0
  %v1296 = vadd.f32 0.0, %v1295
  %v1297 = vpop.f32.mrb[0].mxu0
  %v1298 = vpop.f32.mrb[0].mxu0
  %v1299 = vadd.f32 0.0, %v1298
  %v1300 = vpop.f32.mrb[0].mxu0
  %1301 = vmatprep.mubr.bf16.mxu0 0
  %1302 = vmatmul.mubr.bf16.gmra.mrb[0].mxu0 %v1096
  %v1303 = vpop.f32.mrb[0].mxu0
  %v1304 = vadd.f32 0.0, %v1303
  %v1305 = vpop.f32.mrb[0].mxu0
  %v1306 = vpop.f32.mrb[0].mxu0
  %v1307 = vadd.f32 0.0, %v1306
  %v1308 = vpop.f32.mrb[0].mxu0
  %1309 = vmatprep.mubr.bf16.mxu0 0
  %1310 = vmatmul.mubr.bf16.gmra.mrb[0].mxu0 %v1097
  %v1311 = vpop.f32.mrb[0].mxu0
  %v1312 = vadd.f32 0.0, %v1311
  %v1313 = vpop.f32.mrb[0].mxu0
  %v1314 = vpop.f32.mrb[0].mxu0
  %v1315 = vadd.f32 0.0, %v1314
  %v1316 = vpop.f32.mrb[0].mxu0
  %1317 = vmatprep.mubr.bf16.mxu0 0
  %1318 = vmatmul.mubr.bf16.gmra.mrb[0].mxu0 %v1098
  %v1319 = vpop.f32.mrb[0].mxu0
  %v1320 = vadd.f32 0.0, %v1319
  %v1321 = vpop.f32.mrb[0].mxu0
  %v1322 = vpop.f32.mrb[0].mxu0
  %v1323 = vadd.f32 0.0, %v1322
  %v1324 = vpop.f32.mrb[0].mxu0
  %1325 = vmatprep.mubr.bf16.mxu0 0
  %1326 = vmatmul.mubr.bf16.gmra.mrb[0].mxu0 %v1099
  %v1327 = vpop.f32.mrb[0].mxu0
  %v1328 = vadd.f32 0.0, %v1327
  %v1329 = vpop.f32.mrb[0].mxu0
  %v1330 = vpop.f32.mrb[0].mxu0
  %v1331 = vadd.f32 0.0, %v1330
  %v1332 = vpop.f32.mrb[0].mxu0
  %1333 = vmatprep.mubr.bf16.mxu0 0
  %1334 = vmatmul.mubr.bf16.gmra.mrb[0].mxu0 %v1100
  %v1335 = vpop.f32.mrb[0].mxu0
  %v1336 = vadd.f32 0.0, %v1335
  %v1337 = vpop.f32.mrb[0].mxu0
  %v1338 = vpop.f32.mrb[0].mxu0
  %v1339 = vadd.f32 0.0, %v1338
  %v1340 = vpop.f32.mrb[0].mxu0
  %1341 = vmatprep.mubr.bf16.mxu0 0
  %1342 = vmatmul.mubr.bf16.gmra.mrb[0].mxu0 %v1101
  %v1343 = vpop.f32.mrb[0].mxu0
  %v1344 = vadd.f32 0.0, %v1343
  %v1345 = vpop.f32.mrb[0].mxu0
  %v1346 = vpop.f32.mrb[0].mxu0
  %v1347 = vadd.f32 0.0, %v1346
  %v1348 = vpop.f32.mrb[0].mxu0
  %1349 = vmatprep.mubr.bf16.mxu0 0
  %1350 = vmatmul.mubr.bf16.gmra.mrb[0].mxu0 %v1102
  %v1351 = vpop.f32.mrb[0].mxu0
  %v1352 = vadd.f32 0.0, %v1351
  %v1353 = vpop.f32.mrb[0].mxu0
  %v1354 = vpop.f32.mrb[0].mxu0
  %v1355 = vadd.f32 0.0, %v1354
  %v1356 = vpop.f32.mrb[0].mxu0
  %1357 = vmatprep.mubr.bf16.mxu0 0
  %1358 = vmatmul.mubr.bf16.gmra.mrb[0].mxu0 %v1103
  %v1359 = vpop.f32.mrb[0].mxu0
  %v1360 = vadd.f32 0.0, %v1359
  %v1361 = vpop.f32.mrb[0].mxu0
  %v1362 = vpop.f32.mrb[0].mxu0
  %v1363 = vadd.f32 0.0, %v1362
  %v1364 = vpop.f32.mrb[0].mxu0
  %1365 = vmatprep.mubr.bf16.mxu0 0
  %1366 = vmatmul.mubr.bf16.gmra.mrb[0].mxu0 %v1104
  %v1367 = vpop.f32.mrb[0].mxu0
  %v1368 = vadd.f32 0.0, %v1367
  %v1369 = vpop.f32.mrb[0].mxu0
  %v1370 = vpop.f32.mrb[0].mxu0
  %v1371 = vadd.f32 0.0, %v1370
  %v1372 = vpop.f32.mrb[0].mxu0
  %1373 = vmatprep.mubr.bf16.mxu0 0
  %1374 = vmatmul.mubr.bf16.gmra.mrb[0].mxu0 %v1105
  %v1375 = vpop.f32.mrb[0].mxu0
  %v1376 = vadd.f32 0.0, %v1375
  %v1377 = vpop.f32.mrb[0].mxu0
  %v1378 = vpop.f32.mrb[0].mxu0
  %v1379 = vadd.f32 0.0, %v1378
  %v1380 = vpop.f32.mrb[0].mxu0
  %1381 = vmatprep.mubr.bf16.mxu0 0
  %1382 = vmatmul.mubr.bf16.gmra.mrb[0].mxu0 %v1106
  %v1383 = vpop.f32.mrb[0].mxu0
  %v1384 = vadd.f32 0.0, %v1383
  %v1385 = vpop.f32.mrb[0].mxu0
  %v1386 = vpop.f32.mrb[0].mxu0
  %v1387 = vadd.f32 0.0, %v1386
  %v1388 = vpop.f32.mrb[0].mxu0
  %1389 = vmatprep.mubr.bf16.mxu0 0
  %1390 = vmatmul.mubr.bf16.gmra.mrb[0].mxu0 %v1107
  %v1391 = vpop.f32.mrb[0].mxu0
  %v1392 = vadd.f32 0.0, %v1391
  %v1393 = vpop.f32.mrb[0].mxu0
  %v1394 = vpop.f32.mrb[0].mxu0
  %v1395 = vadd.f32 0.0, %v1394
  %v1396 = vpop.f32.mrb[0].mxu0
  %1397 = vmatprep.mubr.bf16.mxu0 0
  %1398 = vmatmul.mubr.bf16.gmra.mrb[0].mxu0 %v1108
  %v1399 = vpop.f32.mrb[0].mxu0
  %v1400 = vadd.f32 0.0, %v1399
  %v1401 = vpop.f32.mrb[0].mxu0
  %v1402 = vpop.f32.mrb[0].mxu0
  %v1403 = vadd.f32 0.0, %v1402
  %v1404 = vpop.f32.mrb[0].mxu0
  %1405 = vmatprep.mubr.bf16.mxu0 0
  %1406 = vmatmul.mubr.bf16.gmra.mrb[0].mxu0 %v1109
  %v1407 = vpop.f32.mrb[0].mxu0
  %v1408 = vadd.f32 0.0, %v1407
  %v1409 = vpop.f32.mrb[0].mxu0
  %v1410 = vpop.f32.mrb[0].mxu0
  %v1411 = vadd.f32 0.0, %v1410
  %v1412 = vpop.f32.mrb[0].mxu0
  %1413 = vmatprep.mubr.bf16.mxu0 0
  %1414 = vmatmul.mubr.bf16.gmra.mrb[0].mxu0 %v1110
  %v1415 = vpop.f32.mrb[0].mxu0
  %v1416 = vadd.f32 0.0, %v1415
  %v1417 = vpop.f32.mrb[0].mxu0
  %v1418 = vpop.f32.mrb[0].mxu0
  %v1419 = vadd.f32 0.0, %v1418
  %v1420 = vpop.f32.mrb[0].mxu0
  %1421 = vmatprep.mubr.bf16.mxu0 0
  %1422 = vmatmul.mubr.bf16.gmra.mrb[0].mxu0 %v1111
  %v1423 = vpop.f32.mrb[0].mxu0
  %v1424 = vadd.f32 0.0, %v1423
  %v1425 = vpop.f32.mrb[0].mxu0
  %v1426 = vpop.f32.mrb[0].mxu0
  %v1427 = vadd.f32 0.0, %v1426
  %v1428 = vpop.f32.mrb[0].mxu0
  %1429 = vmatprep.mubr.bf16.mxu0 0
  %1430 = vmatmul.mubr.bf16.gmra.mrb[0].mxu0 %v1112
  %v1431 = vpop.f32.mrb[0].mxu0
  %v1432 = vadd.f32 0.0, %v1431
  %v1433 = vpop.f32.mrb[0].mxu0
  %v1434 = vpop.f32.mrb[0].mxu0
  %v1435 = vadd.f32 0.0, %v1434
  %v1436 = vpop.f32.mrb[0].mxu0
  %1437 = vmatprep.mubr.bf16.mxu0 0
  %1438 = vmatmul.mubr.bf16.gmra.mrb[0].mxu0 %v1113
  %v1439 = vpop.f32.mrb[0].mxu0
  %v1440 = vadd.f32 0.0, %v1439
  %v1441 = vpop.f32.mrb[0].mxu0
  %v1442 = vpop.f32.mrb[0].mxu0
  %v1443 = vadd.f32 0.0, %v1442
  %v1444 = vpop.f32.mrb[0].mxu0
  %1445 = vmatprep.mubr.bf16.mxu0 0
  %1446 = vmatmul.mubr.bf16.gmra.mrb[0].mxu0 %v1114
  %v1447 = vpop.f32.mrb[0].mxu0
  %v1448 = vadd.f32 0.0, %v1447
  %v1449 = vpop.f32.mrb[0].mxu0
  %v1450 = vpop.f32.mrb[0].mxu0
  %v1451 = vadd.f32 0.0, %v1450
  %v1452 = vpop.f32.mrb[0].mxu0
  %1453 = vmatprep.mubr.bf16.mxu0 0
  %1454 = vmatmul.mubr.bf16.gmra.mrb[0].mxu0 %v1115
  %v1455 = vpop.f32.mrb[0].mxu0
  %v1456 = vadd.f32 0.0, %v1455
  %v1457 = vpop.f32.mrb[0].mxu0
  %v1458 = vpop.f32.mrb[0].mxu0
  %v1459 = vadd.f32 0.0, %v1458
  %v1460 = vpop.f32.mrb[0].mxu0
  %1461 = vmatprep.mubr.bf16.mxu0 0
  %1462 = vmatmul.mubr.bf16.gmra.mrb[0].mxu0 %v1116
  %v1463 = vpop.f32.mrb[0].mxu0
  %v1464 = vadd.f32 0.0, %v1463
  %v1465 = vpop.f32.mrb[0].mxu0
  %v1466 = vpop.f32.mrb[0].mxu0
  %v1467 = vadd.f32 0.0, %v1466
  %v1468 = vpop.f32.mrb[0].mxu0
  %1469 = vdwg.mxu0
  %v1470 = vadd.f32 %v106, %v1216
  %v1471 = vadd.f32 %v107, %v1219
  %v1472 = vadd.f32 %v108, %v1224
  %v1473 = vadd.f32 %v109, %v1227
  %v1474 = vadd.f32 %v110, %v1232
  %v1475 = vadd.f32 %v111, %v1235
  %v1476 = vadd.f32 %v112, %v1240
  %v1477 = vadd.f32 %v113, %v1243
  %v1478 = vadd.f32 %v114, %v1248
  %v1479 = vadd.f32 %v115, %v1251
  %v1480 = vadd.f32 %v116, %v1256
  %v1481 = vadd.f32 %v117, %v1259
  %v1482 = vadd.f32 %v118, %v1264
  %v1483 = vadd.f32 %v119, %v1267
  %v1484 = vadd.f32 %v120, %v1272
  %v1485 = vadd.f32 %v121, %v1275
  %v1486 = vadd.f32 %v122, %v1280
  %v1487 = vadd.f32 %v123, %v1283
  %v1488 = vadd.f32 %v124, %v1288
  %v1489 = vadd.f32 %v125, %v1291
  %v1490 = vadd.f32 %v126, %v1296
  %v1491 = vadd.f32 %v127, %v1299
  %v1492 = vadd.f32 %v128, %v1304
  %v1493 = vadd.f32 %v129, %v1307
  %v1494 = vadd.f32 %v130, %v1312
  %v1495 = vadd.f32 %v131, %v1315
  %v1496 = vadd.f32 %v132, %v1320
  %v1497 = vadd.f32 %v133, %v1323
  %v1498 = vadd.f32 %v134, %v1328
  %v1499 = vadd.f32 %v135, %v1331
  %v1500 = vadd.f32 %v136, %v1336
  %v1501 = vadd.f32 %v137, %v1339
  %v1502 = vadd.f32 %v138, %v1344
  %v1503 = vadd.f32 %v139, %v1347
  %v1504 = vadd.f32 %v140, %v1352
  %v1505 = vadd.f32 %v141, %v1355
  %v1506 = vadd.f32 %v142, %v1360
  %v1507 = vadd.f32 %v143, %v1363
  %v1508 = vadd.f32 %v144, %v1368
  %v1509 = vadd.f32 %v145, %v1371
  %v1510 = vadd.f32 %v146, %v1376
  %v1511 = vadd.f32 %v147, %v1379
  %v1512 = vadd.f32 %v148, %v1384
  %v1513 = vadd.f32 %v149, %v1387
  %v1514 = vadd.f32 %v150, %v1392
  %v1515 = vadd.f32 %v151, %v1395
  %v1516 = vadd.f32 %v152, %v1400
  %v1517 = vadd.f32 %v153, %v1403
  %v1518 = vadd.f32 %v154, %v1408
  %v1519 = vadd.f32 %v155, %v1411
  %v1520 = vadd.f32 %v156, %v1416
  %v1521 = vadd.f32 %v157, %v1419
  %v1522 = vadd.f32 %v158, %v1424
  %v1523 = vadd.f32 %v159, %v1427
  %v1524 = vadd.f32 %v160, %v1432
  %v1525 = vadd.f32 %v161, %v1435
  %v1526 = vadd.f32 %v162, %v1440
  %v1527 = vadd.f32 %v163, %v1443
  %v1528 = vadd.f32 %v164, %v1448
  %v1529 = vadd.f32 %v165, %v1451
  %v1530 = vadd.f32 %v166, %v1456
  %v1531 = vadd.f32 %v167, %v1459
  %v1532 = vadd.f32 %v168, %v1464
  %v1533 = vadd.f32 %v169, %v1467
  %v1534 = vld [vmem:[%s5] sm:$0x1]
  %v1536 = vlaneseq
  %v1537 = vshrl.u32 %v1536, 7
  %v1538 = vsub.s32 0, %v1537
  %v1539 = vrot.slane %v1534, %v1538
  %v1541 = vadd.f32 %v1470, %v1539
  %v1542 = vadd.f32 %v1471, %v1539
  %v1543 = vadd.f32 %v1472, %v1539
  %v1544 = vadd.f32 %v1473, %v1539
  %v1545 = vadd.f32 %v1474, %v1539
  %v1546 = vadd.f32 %v1475, %v1539
  %v1547 = vadd.f32 %v1476, %v1539
  %v1548 = vadd.f32 %v1477, %v1539
  %v1549 = vadd.f32 %v1478, %v1539
  %v1550 = vadd.f32 %v1479, %v1539
  %v1551 = vadd.f32 %v1480, %v1539
  %v1552 = vadd.f32 %v1481, %v1539
  %v1553 = vadd.f32 %v1482, %v1539
  %v1554 = vadd.f32 %v1483, %v1539
  %v1555 = vadd.f32 %v1484, %v1539
  %v1556 = vadd.f32 %v1485, %v1539
  %v1557 = vadd.f32 %v1486, %v1539
  %v1558 = vadd.f32 %v1487, %v1539
  %v1559 = vadd.f32 %v1488, %v1539
  %v1560 = vadd.f32 %v1489, %v1539
  %v1561 = vadd.f32 %v1490, %v1539
  %v1562 = vadd.f32 %v1491, %v1539
  %v1563 = vadd.f32 %v1492, %v1539
  %v1564 = vadd.f32 %v1493, %v1539
  %v1565 = vadd.f32 %v1494, %v1539
  %v1566 = vadd.f32 %v1495, %v1539
  %v1567 = vadd.f32 %v1496, %v1539
  %v1568 = vadd.f32 %v1497, %v1539
  %v1569 = vadd.f32 %v1498, %v1539
  %v1570 = vadd.f32 %v1499, %v1539
  %v1571 = vadd.f32 %v1500, %v1539
  %v1572 = vadd.f32 %v1501, %v1539
  %v1573 = vadd.f32 %v1502, %v1539
  %v1574 = vadd.f32 %v1503, %v1539
  %v1575 = vadd.f32 %v1504, %v1539
  %v1576 = vadd.f32 %v1505, %v1539
  %v1577 = vadd.f32 %v1506, %v1539
  %v1578 = vadd.f32 %v1507, %v1539
  %v1579 = vadd.f32 %v1508, %v1539
  %v1580 = vadd.f32 %v1509, %v1539
  %v1581 = vadd.f32 %v1510, %v1539
  %v1582 = vadd.f32 %v1511, %v1539
  %v1583 = vadd.f32 %v1512, %v1539
  %v1584 = vadd.f32 %v1513, %v1539
  %v1585 = vadd.f32 %v1514, %v1539
  %v1586 = vadd.f32 %v1515, %v1539
  %v1587 = vadd.f32 %v1516, %v1539
  %v1588 = vadd.f32 %v1517, %v1539
  %v1589 = vadd.f32 %v1518, %v1539
  %v1590 = vadd.f32 %v1519, %v1539
  %v1591 = vadd.f32 %v1520, %v1539
  %v1592 = vadd.f32 %v1521, %v1539
  %v1593 = vadd.f32 %v1522, %v1539
  %v1594 = vadd.f32 %v1523, %v1539
  %v1595 = vadd.f32 %v1524, %v1539
  %v1596 = vadd.f32 %v1525, %v1539
  %v1597 = vadd.f32 %v1526, %v1539
  %v1598 = vadd.f32 %v1527, %v1539
  %v1599 = vadd.f32 %v1528, %v1539
  %v1600 = vadd.f32 %v1529, %v1539
  %v1601 = vadd.f32 %v1530, %v1539
  %v1602 = vadd.f32 %v1531, %v1539
  %v1603 = vadd.f32 %v1532, %v1539
  %v1604 = vadd.f32 %v1533, %v1539
  %v1605 = vmax.f32 %v1541, 0.0
  %v1606 = vmax.f32 %v1542, 0.0
  %v1607 = vmax.f32 %v1543, 0.0
  %v1608 = vmax.f32 %v1544, 0.0
  %v1609 = vmax.f32 %v1545, 0.0
  %v1610 = vmax.f32 %v1546, 0.0
  %v1611 = vmax.f32 %v1547, 0.0
  %v1612 = vmax.f32 %v1548, 0.0
  %v1613 = vmax.f32 %v1549, 0.0
  %v1614 = vmax.f32 %v1550, 0.0
  %v1615 = vmax.f32 %v1551, 0.0
  %v1616 = vmax.f32 %v1552, 0.0
  %v1617 = vmax.f32 %v1553, 0.0
  %v1618 = vmax.f32 %v1554, 0.0
  %v1619 = vmax.f32 %v1555, 0.0
  %v1620 = vmax.f32 %v1556, 0.0
  %v1621 = vmax.f32 %v1557, 0.0
  %v1622 = vmax.f32 %v1558, 0.0
  %v1623 = vmax.f32 %v1559, 0.0
  %v1624 = vmax.f32 %v1560, 0.0
  %v1625 = vmax.f32 %v1561, 0.0
  %v1626 = vmax.f32 %v1562, 0.0
  %v1627 = vmax.f32 %v1563, 0.0
  %v1628 = vmax.f32 %v1564, 0.0
  %v1629 = vmax.f32 %v1565, 0.0
  %v1630 = vmax.f32 %v1566, 0.0
  %v1631 = vmax.f32 %v1567, 0.0
  %v1632 = vmax.f32 %v1568, 0.0
  %v1633 = vmax.f32 %v1569, 0.0
  %v1634 = vmax.f32 %v1570, 0.0
  %v1635 = vmax.f32 %v1571, 0.0
  %v1636 = vmax.f32 %v1572, 0.0
  %v1637 = vmax.f32 %v1573, 0.0
  %v1638 = vmax.f32 %v1574, 0.0
  %v1639 = vmax.f32 %v1575, 0.0
  %v1640 = vmax.f32 %v1576, 0.0
  %v1641 = vmax.f32 %v1577, 0.0
  %v1642 = vmax.f32 %v1578, 0.0
  %v1643 = vmax.f32 %v1579, 0.0
  %v1644 = vmax.f32 %v1580, 0.0
  %v1645 = vmax.f32 %v1581, 0.0
  %v1646 = vmax.f32 %v1582, 0.0
  %v1647 = vmax.f32 %v1583, 0.0
  %v1648 = vmax.f32 %v1584, 0.0
  %v1649 = vmax.f32 %v1585, 0.0
  %v1650 = vmax.f32 %v1586, 0.0
  %v1651 = vmax.f32 %v1587, 0.0
  %v1652 = vmax.f32 %v1588, 0.0
  %v1653 = vmax.f32 %v1589, 0.0
  %v1654 = vmax.f32 %v1590, 0.0
  %v1655 = vmax.f32 %v1591, 0.0
  %v1656 = vmax.f32 %v1592, 0.0
  %v1657 = vmax.f32 %v1593, 0.0
  %v1658 = vmax.f32 %v1594, 0.0
  %v1659 = vmax.f32 %v1595, 0.0
  %v1660 = vmax.f32 %v1596, 0.0
  %v1661 = vmax.f32 %v1597, 0.0
  %v1662 = vmax.f32 %v1598, 0.0
  %v1663 = vmax.f32 %v1599, 0.0
  %v1664 = vmax.f32 %v1600, 0.0
  %v1665 = vmax.f32 %v1601, 0.0
  %v1666 = vmax.f32 %v1602, 0.0
  %v1667 = vmax.f32 %v1603, 0.0
  %v1668 = vmax.f32 %v1604, 0.0
  %v1669 = vadd.f32 %v42, %v1605
  %v1670 = vadd.f32 %v43, %v1606
  %v1671 = vadd.f32 %v44, %v1607
  %v1672 = vadd.f32 %v45, %v1608
  %v1673 = vadd.f32 %v46, %v1609
  %v1674 = vadd.f32 %v47, %v1610
  %v1675 = vadd.f32 %v48, %v1611
  %v1676 = vadd.f32 %v49, %v1612
  %v1677 = vadd.f32 %v50, %v1613
  %v1678 = vadd.f32 %v51, %v1614
  %v1679 = vadd.f32 %v52, %v1615
  %v1680 = vadd.f32 %v53, %v1616
  %v1681 = vadd.f32 %v54, %v1617
  %v1682 = vadd.f32 %v55, %v1618
  %v1683 = vadd.f32 %v56, %v1619
  %v1684 = vadd.f32 %v57, %v1620
  %v1685 = vadd.f32 %v58, %v1621
  %v1686 = vadd.f32 %v59, %v1622
  %v1687 = vadd.f32 %v60, %v1623
  %v1688 = vadd.f32 %v61, %v1624
  %v1689 = vadd.f32 %v62, %v1625
  %v1690 = vadd.f32 %v63, %v1626
  %v1691 = vadd.f32 %v64, %v1627
  %v1692 = vadd.f32 %v65, %v1628
  %v1693 = vadd.f32 %v66, %v1629
  %v1694 = vadd.f32 %v67, %v1630
  %v1695 = vadd.f32 %v68, %v1631
  %v1696 = vadd.f32 %v69, %v1632
  %v1697 = vadd.f32 %v70, %v1633
  %v1698 = vadd.f32 %v71, %v1634
  %v1699 = vadd.f32 %v72, %v1635
  %v1700 = vadd.f32 %v73, %v1636
  %v1701 = vadd.f32 %v74, %v1637
  %v1702 = vadd.f32 %v75, %v1638
  %v1703 = vadd.f32 %v76, %v1639
  %v1704 = vadd.f32 %v77, %v1640
  %v1705 = vadd.f32 %v78, %v1641
  %v1706 = vadd.f32 %v79, %v1642
  %v1707 = vadd.f32 %v80, %v1643
  %v1708 = vadd.f32 %v81, %v1644
  %v1709 = vadd.f32 %v82, %v1645
  %v1710 = vadd.f32 %v83, %v1646
  %v1711 = vadd.f32 %v84, %v1647
  %v1712 = vadd.f32 %v85, %v1648
  %v1713 = vadd.f32 %v86, %v1649
  %v1714 = vadd.f32 %v87, %v1650
  %v1715 = vadd.f32 %v88, %v1651
  %v1716 = vadd.f32 %v89, %v1652
  %v1717 = vadd.f32 %v90, %v1653
  %v1718 = vadd.f32 %v91, %v1654
  %v1719 = vadd.f32 %v92, %v1655
  %v1720 = vadd.f32 %v93, %v1656
  %v1721 = vadd.f32 %v94, %v1657
  %v1722 = vadd.f32 %v95, %v1658
  %v1723 = vadd.f32 %v96, %v1659
  %v1724 = vadd.f32 %v97, %v1660
  %v1725 = vadd.f32 %v98, %v1661
  %v1726 = vadd.f32 %v99, %v1662
  %v1727 = vadd.f32 %v100, %v1663
  %v1728 = vadd.f32 %v101, %v1664
  %v1729 = vadd.f32 %v102, %v1665
  %v1730 = vadd.f32 %v103, %v1666
  %v1731 = vadd.f32 %v104, %v1667
  %v1732 = vadd.f32 %v105, %v1668
  %1733 = vadd.xlane.f32.xlu0 %v1669
  %v1734 = vpop.xlane.xlu0 %1733
  %1735 = vadd.xlane.f32.xlu0 %v1670
  %v1736 = vpop.xlane.xlu0 %1735
  %1737 = vadd.xlane.f32.xlu0 %v1671
  %v1738 = vpop.xlane.xlu0 %1737
  %1739 = vadd.xlane.f32.xlu0 %v1672
  %v1740 = vpop.xlane.xlu0 %1739
  %1741 = vadd.xlane.f32.xlu0 %v1673
  %v1742 = vpop.xlane.xlu0 %1741
  %1743 = vadd.xlane.f32.xlu0 %v1674
  %v1744 = vpop.xlane.xlu0 %1743
  %1745 = vadd.xlane.f32.xlu0 %v1675
  %v1746 = vpop.xlane.xlu0 %1745
  %1747 = vadd.xlane.f32.xlu0 %v1676
  %v1748 = vpop.xlane.xlu0 %1747
  %1749 = vadd.xlane.f32.xlu0 %v1677
  %v1750 = vpop.xlane.xlu0 %1749
  %1751 = vadd.xlane.f32.xlu0 %v1678
  %v1752 = vpop.xlane.xlu0 %1751
  %1753 = vadd.xlane.f32.xlu0 %v1679
  %v1754 = vpop.xlane.xlu0 %1753
  %1755 = vadd.xlane.f32.xlu0 %v1680
  %v1756 = vpop.xlane.xlu0 %1755
  %1757 = vadd.xlane.f32.xlu0 %v1681
  %v1758 = vpop.xlane.xlu0 %1757
  %1759 = vadd.xlane.f32.xlu0 %v1682
  %v1760 = vpop.xlane.xlu0 %1759
  %1761 = vadd.xlane.f32.xlu0 %v1683
  %v1762 = vpop.xlane.xlu0 %1761
  %1763 = vadd.xlane.f32.xlu0 %v1684
  %v1764 = vpop.xlane.xlu0 %1763
  %1765 = vadd.xlane.f32.xlu0 %v1685
  %v1766 = vpop.xlane.xlu0 %1765
  %1767 = vadd.xlane.f32.xlu0 %v1686
  %v1768 = vpop.xlane.xlu0 %1767
  %1769 = vadd.xlane.f32.xlu0 %v1687
  %v1770 = vpop.xlane.xlu0 %1769
  %1771 = vadd.xlane.f32.xlu0 %v1688
  %v1772 = vpop.xlane.xlu0 %1771
  %1773 = vadd.xlane.f32.xlu0 %v1689
  %v1774 = vpop.xlane.xlu0 %1773
  %1775 = vadd.xlane.f32.xlu0 %v1690
  %v1776 = vpop.xlane.xlu0 %1775
  %1777 = vadd.xlane.f32.xlu0 %v1691
  %v1778 = vpop.xlane.xlu0 %1777
  %1779 = vadd.xlane.f32.xlu0 %v1692
  %v1780 = vpop.xlane.xlu0 %1779
  %1781 = vadd.xlane.f32.xlu0 %v1693
  %v1782 = vpop.xlane.xlu0 %1781
  %1783 = vadd.xlane.f32.xlu0 %v1694
  %v1784 = vpop.xlane.xlu0 %1783
  %1785 = vadd.xlane.f32.xlu0 %v1695
  %v1786 = vpop.xlane.xlu0 %1785
  %1787 = vadd.xlane.f32.xlu0 %v1696
  %v1788 = vpop.xlane.xlu0 %1787
  %1789 = vadd.xlane.f32.xlu0 %v1697
  %v1790 = vpop.xlane.xlu0 %1789
  %1791 = vadd.xlane.f32.xlu0 %v1698
  %v1792 = vpop.xlane.xlu0 %1791
  %1793 = vadd.xlane.f32.xlu0 %v1699
  %v1794 = vpop.xlane.xlu0 %1793
  %1795 = vadd.xlane.f32.xlu0 %v1700
  %v1796 = vpop.xlane.xlu0 %1795
  %1797 = vadd.xlane.f32.xlu0 %v1701
  %v1798 = vpop.xlane.xlu0 %1797
  %1799 = vadd.xlane.f32.xlu0 %v1702
  %v1800 = vpop.xlane.xlu0 %1799
  %1801 = vadd.xlane.f32.xlu0 %v1703
  %v1802 = vpop.xlane.xlu0 %1801
  %1803 = vadd.xlane.f32.xlu0 %v1704
  %v1804 = vpop.xlane.xlu0 %1803
  %1805 = vadd.xlane.f32.xlu0 %v1705
  %v1806 = vpop.xlane.xlu0 %1805
  %1807 = vadd.xlane.f32.xlu0 %v1706
  %v1808 = vpop.xlane.xlu0 %1807
  %1809 = vadd.xlane.f32.xlu0 %v1707
  %v1810 = vpop.xlane.xlu0 %1809
  %1811 = vadd.xlane.f32.xlu0 %v1708
  %v1812 = vpop.xlane.xlu0 %1811
  %1813 = vadd.xlane.f32.xlu0 %v1709
  %v1814 = vpop.xlane.xlu0 %1813
  %1815 = vadd.xlane.f32.xlu0 %v1710
  %v1816 = vpop.xlane.xlu0 %1815
  %1817 = vadd.xlane.f32.xlu0 %v1711
  %v1818 = vpop.xlane.xlu0 %1817
  %1819 = vadd.xlane.f32.xlu0 %v1712
  %v1820 = vpop.xlane.xlu0 %1819
  %1821 = vadd.xlane.f32.xlu0 %v1713
  %v1822 = vpop.xlane.xlu0 %1821
  %1823 = vadd.xlane.f32.xlu0 %v1714
  %v1824 = vpop.xlane.xlu0 %1823
  %1825 = vadd.xlane.f32.xlu0 %v1715
  %v1826 = vpop.xlane.xlu0 %1825
  %1827 = vadd.xlane.f32.xlu0 %v1716
  %v1828 = vpop.xlane.xlu0 %1827
  %1829 = vadd.xlane.f32.xlu0 %v1717
  %v1830 = vpop.xlane.xlu0 %1829
  %1831 = vadd.xlane.f32.xlu0 %v1718
  %v1832 = vpop.xlane.xlu0 %1831
  %1833 = vadd.xlane.f32.xlu0 %v1719
  %v1834 = vpop.xlane.xlu0 %1833
  %1835 = vadd.xlane.f32.xlu0 %v1720
  %v1836 = vpop.xlane.xlu0 %1835
  %1837 = vadd.xlane.f32.xlu0 %v1721
  %v1838 = vpop.xlane.xlu0 %1837
  %1839 = vadd.xlane.f32.xlu0 %v1722
  %v1840 = vpop.xlane.xlu0 %1839
  %1841 = vadd.xlane.f32.xlu0 %v1723
  %v1842 = vpop.xlane.xlu0 %1841
  %1843 = vadd.xlane.f32.xlu0 %v1724
  %v1844 = vpop.xlane.xlu0 %1843
  %1845 = vadd.xlane.f32.xlu0 %v1725
  %v1846 = vpop.xlane.xlu0 %1845
  %1847 = vadd.xlane.f32.xlu0 %v1726
  %v1848 = vpop.xlane.xlu0 %1847
  %1849 = vadd.xlane.f32.xlu0 %v1727
  %v1850 = vpop.xlane.xlu0 %1849
  %1851 = vadd.xlane.f32.xlu0 %v1728
  %v1852 = vpop.xlane.xlu0 %1851
  %1853 = vadd.xlane.f32.xlu0 %v1729
  %v1854 = vpop.xlane.xlu0 %1853
  %1855 = vadd.xlane.f32.xlu0 %v1730
  %v1856 = vpop.xlane.xlu0 %1855
  %1857 = vadd.xlane.f32.xlu0 %v1731
  %v1858 = vpop.xlane.xlu0 %1857
  %1859 = vadd.xlane.f32.xlu0 %v1732
  %v1860 = vpop.xlane.xlu0 %1859
  %v1861 = vmul.f32 %v1734, 0.25
  %v1862 = vmul.f32 %v1736, 0.25
  %v1863 = vmul.f32 %v1738, 0.25
  %v1864 = vmul.f32 %v1740, 0.25
  %v1865 = vmul.f32 %v1742, 0.25
  %v1866 = vmul.f32 %v1744, 0.25
  %v1867 = vmul.f32 %v1746, 0.25
  %v1868 = vmul.f32 %v1748, 0.25
  %v1869 = vmul.f32 %v1750, 0.25
  %v1870 = vmul.f32 %v1752, 0.25
  %v1871 = vmul.f32 %v1754, 0.25
  %v1872 = vmul.f32 %v1756, 0.25
  %v1873 = vmul.f32 %v1758, 0.25
  %v1874 = vmul.f32 %v1760, 0.25
  %v1875 = vmul.f32 %v1762, 0.25
  %v1876 = vmul.f32 %v1764, 0.25
  %v1877 = vmul.f32 %v1766, 0.25
  %v1878 = vmul.f32 %v1768, 0.25
  %v1879 = vmul.f32 %v1770, 0.25
  %v1880 = vmul.f32 %v1772, 0.25
  %v1881 = vmul.f32 %v1774, 0.25
  %v1882 = vmul.f32 %v1776, 0.25
  %v1883 = vmul.f32 %v1778, 0.25
  %v1884 = vmul.f32 %v1780, 0.25
  %v1885 = vmul.f32 %v1782, 0.25
  %v1886 = vmul.f32 %v1784, 0.25
  %v1887 = vmul.f32 %v1786, 0.25
  %v1888 = vmul.f32 %v1788, 0.25
  %v1889 = vmul.f32 %v1790, 0.25
  %v1890 = vmul.f32 %v1792, 0.25
  %v1891 = vmul.f32 %v1794, 0.25
  %v1892 = vmul.f32 %v1796, 0.25
  %v1893 = vmul.f32 %v1798, 0.25
  %v1894 = vmul.f32 %v1800, 0.25
  %v1895 = vmul.f32 %v1802, 0.25
  %v1896 = vmul.f32 %v1804, 0.25
  %v1897 = vmul.f32 %v1806, 0.25
  %v1898 = vmul.f32 %v1808, 0.25
  %v1899 = vmul.f32 %v1810, 0.25
  %v1900 = vmul.f32 %v1812, 0.25
  %v1901 = vmul.f32 %v1814, 0.25
  %v1902 = vmul.f32 %v1816, 0.25
  %v1903 = vmul.f32 %v1818, 0.25
  %v1904 = vmul.f32 %v1820, 0.25
  %v1905 = vmul.f32 %v1822, 0.25
  %v1906 = vmul.f32 %v1824, 0.25
  %v1907 = vmul.f32 %v1826, 0.25
  %v1908 = vmul.f32 %v1828, 0.25
  %v1909 = vmul.f32 %v1830, 0.25
  %v1910 = vmul.f32 %v1832, 0.25
  %v1911 = vmul.f32 %v1834, 0.25
  %v1912 = vmul.f32 %v1836, 0.25
  %v1913 = vmul.f32 %v1838, 0.25
  %v1914 = vmul.f32 %v1840, 0.25
  %v1915 = vmul.f32 %v1842, 0.25
  %v1916 = vmul.f32 %v1844, 0.25
  %v1917 = vmul.f32 %v1846, 0.25
  %v1918 = vmul.f32 %v1848, 0.25
  %v1919 = vmul.f32 %v1850, 0.25
  %v1920 = vmul.f32 %v1852, 0.25
  %v1921 = vmul.f32 %v1854, 0.25
  %v1922 = vmul.f32 %v1856, 0.25
  %v1923 = vmul.f32 %v1858, 0.25
  %v1924 = vmul.f32 %v1860, 0.25
  %v1925 = vsub.f32 %v1669, %v1861
  %v1926 = vsub.f32 %v1670, %v1862
  %v1927 = vsub.f32 %v1671, %v1863
  %v1928 = vsub.f32 %v1672, %v1864
  %v1929 = vsub.f32 %v1673, %v1865
  %v1930 = vsub.f32 %v1674, %v1866
  %v1931 = vsub.f32 %v1675, %v1867
  %v1932 = vsub.f32 %v1676, %v1868
  %v1933 = vsub.f32 %v1677, %v1869
  %v1934 = vsub.f32 %v1678, %v1870
  %v1935 = vsub.f32 %v1679, %v1871
  %v1936 = vsub.f32 %v1680, %v1872
  %v1937 = vsub.f32 %v1681, %v1873
  %v1938 = vsub.f32 %v1682, %v1874
  %v1939 = vsub.f32 %v1683, %v1875
  %v1940 = vsub.f32 %v1684, %v1876
  %v1941 = vsub.f32 %v1685, %v1877
  %v1942 = vsub.f32 %v1686, %v1878
  %v1943 = vsub.f32 %v1687, %v1879
  %v1944 = vsub.f32 %v1688, %v1880
  %v1945 = vsub.f32 %v1689, %v1881
  %v1946 = vsub.f32 %v1690, %v1882
  %v1947 = vsub.f32 %v1691, %v1883
  %v1948 = vsub.f32 %v1692, %v1884
  %v1949 = vsub.f32 %v1693, %v1885
  %v1950 = vsub.f32 %v1694, %v1886
  %v1951 = vsub.f32 %v1695, %v1887
  %v1952 = vsub.f32 %v1696, %v1888
  %v1953 = vsub.f32 %v1697, %v1889
  %v1954 = vsub.f32 %v1698, %v1890
  %v1955 = vsub.f32 %v1699, %v1891
  %v1956 = vsub.f32 %v1700, %v1892
  %v1957 = vsub.f32 %v1701, %v1893
  %v1958 = vsub.f32 %v1702, %v1894
  %v1959 = vsub.f32 %v1703, %v1895
  %v1960 = vsub.f32 %v1704, %v1896
  %v1961 = vsub.f32 %v1705, %v1897
  %v1962 = vsub.f32 %v1706, %v1898
  %v1963 = vsub.f32 %v1707, %v1899
  %v1964 = vsub.f32 %v1708, %v1900
  %v1965 = vsub.f32 %v1709, %v1901
  %v1966 = vsub.f32 %v1710, %v1902
  %v1967 = vsub.f32 %v1711, %v1903
  %v1968 = vsub.f32 %v1712, %v1904
  %v1969 = vsub.f32 %v1713, %v1905
  %v1970 = vsub.f32 %v1714, %v1906
  %v1971 = vsub.f32 %v1715, %v1907
  %v1972 = vsub.f32 %v1716, %v1908
  %v1973 = vsub.f32 %v1717, %v1909
  %v1974 = vsub.f32 %v1718, %v1910
  %v1975 = vsub.f32 %v1719, %v1911
  %v1976 = vsub.f32 %v1720, %v1912
  %v1977 = vsub.f32 %v1721, %v1913
  %v1978 = vsub.f32 %v1722, %v1914
  %v1979 = vsub.f32 %v1723, %v1915
  %v1980 = vsub.f32 %v1724, %v1916
  %v1981 = vsub.f32 %v1725, %v1917
  %v1982 = vsub.f32 %v1726, %v1918
  %v1983 = vsub.f32 %v1727, %v1919
  %v1984 = vsub.f32 %v1728, %v1920
  %v1985 = vsub.f32 %v1729, %v1921
  %v1986 = vsub.f32 %v1730, %v1922
  %v1987 = vsub.f32 %v1731, %v1923
  %v1988 = vsub.f32 %v1732, %v1924
  %v1989 = vmul.f32 %v1925, %v174
  %v1990 = vmul.f32 %v1926, %v174
  %v1991 = vmul.f32 %v1927, %v174
  %v1992 = vmul.f32 %v1928, %v174
  %v1993 = vmul.f32 %v1929, %v174
  %v1994 = vmul.f32 %v1930, %v174
  %v1995 = vmul.f32 %v1931, %v174
  %v1996 = vmul.f32 %v1932, %v174
  %v1997 = vmul.f32 %v1933, %v174
  %v1998 = vmul.f32 %v1934, %v174
  %v1999 = vmul.f32 %v1935, %v174
  %v2000 = vmul.f32 %v1936, %v174
  %v2001 = vmul.f32 %v1937, %v174
  %v2002 = vmul.f32 %v1938, %v174
  %v2003 = vmul.f32 %v1939, %v174
  %v2004 = vmul.f32 %v1940, %v174
  %v2005 = vmul.f32 %v1941, %v174
  %v2006 = vmul.f32 %v1942, %v174
  %v2007 = vmul.f32 %v1943, %v174
  %v2008 = vmul.f32 %v1944, %v174
  %v2009 = vmul.f32 %v1945, %v174
  %v2010 = vmul.f32 %v1946, %v174
  %v2011 = vmul.f32 %v1947, %v174
  %v2012 = vmul.f32 %v1948, %v174
  %v2013 = vmul.f32 %v1949, %v174
  %v2014 = vmul.f32 %v1950, %v174
  %v2015 = vmul.f32 %v1951, %v174
  %v2016 = vmul.f32 %v1952, %v174
  %v2017 = vmul.f32 %v1953, %v174
  %v2018 = vmul.f32 %v1954, %v174
  %v2019 = vmul.f32 %v1955, %v174
  %v2020 = vmul.f32 %v1956, %v174
  %v2021 = vmul.f32 %v1957, %v174
  %v2022 = vmul.f32 %v1958, %v174
  %v2023 = vmul.f32 %v1959, %v174
  %v2024 = vmul.f32 %v1960, %v174
  %v2025 = vmul.f32 %v1961, %v174
  %v2026 = vmul.f32 %v1962, %v174
  %v2027 = vmul.f32 %v1963, %v174
  %v2028 = vmul.f32 %v1964, %v174
  %v2029 = vmul.f32 %v1965, %v174
  %v2030 = vmul.f32 %v1966, %v174
  %v2031 = vmul.f32 %v1967, %v174
  %v2032 = vmul.f32 %v1968, %v174
  %v2033 = vmul.f32 %v1969, %v174
  %v2034 = vmul.f32 %v1970, %v174
  %v2035 = vmul.f32 %v1971, %v174
  %v2036 = vmul.f32 %v1972, %v174
  %v2037 = vmul.f32 %v1973, %v174
  %v2038 = vmul.f32 %v1974, %v174
  %v2039 = vmul.f32 %v1975, %v174
  %v2040 = vmul.f32 %v1976, %v174
  %v2041 = vmul.f32 %v1977, %v174
  %v2042 = vmul.f32 %v1978, %v174
  %v2043 = vmul.f32 %v1979, %v174
  %v2044 = vmul.f32 %v1980, %v174
  %v2045 = vmul.f32 %v1981, %v174
  %v2046 = vmul.f32 %v1982, %v174
  %v2047 = vmul.f32 %v1983, %v174
  %v2048 = vmul.f32 %v1984, %v174
  %v2049 = vmul.f32 %v1985, %v174
  %v2050 = vmul.f32 %v1986, %v174
  %v2051 = vmul.f32 %v1987, %v174
  %v2052 = vmul.f32 %v1988, %v174
  %v2053 = vmul.f32 %v1989, %v1989
  %v2054 = vmul.f32 %v1990, %v1990
  %v2055 = vmul.f32 %v1991, %v1991
  %v2056 = vmul.f32 %v1992, %v1992
  %v2057 = vmul.f32 %v1993, %v1993
  %v2058 = vmul.f32 %v1994, %v1994
  %v2059 = vmul.f32 %v1995, %v1995
  %v2060 = vmul.f32 %v1996, %v1996
  %v2061 = vmul.f32 %v1997, %v1997
  %v2062 = vmul.f32 %v1998, %v1998
  %v2063 = vmul.f32 %v1999, %v1999
  %v2064 = vmul.f32 %v2000, %v2000
  %v2065 = vmul.f32 %v2001, %v2001
  %v2066 = vmul.f32 %v2002, %v2002
  %v2067 = vmul.f32 %v2003, %v2003
  %v2068 = vmul.f32 %v2004, %v2004
  %v2069 = vmul.f32 %v2005, %v2005
  %v2070 = vmul.f32 %v2006, %v2006
  %v2071 = vmul.f32 %v2007, %v2007
  %v2072 = vmul.f32 %v2008, %v2008
  %v2073 = vmul.f32 %v2009, %v2009
  %v2074 = vmul.f32 %v2010, %v2010
  %v2075 = vmul.f32 %v2011, %v2011
  %v2076 = vmul.f32 %v2012, %v2012
  %v2077 = vmul.f32 %v2013, %v2013
  %v2078 = vmul.f32 %v2014, %v2014
  %v2079 = vmul.f32 %v2015, %v2015
  %v2080 = vmul.f32 %v2016, %v2016
  %v2081 = vmul.f32 %v2017, %v2017
  %v2082 = vmul.f32 %v2018, %v2018
  %v2083 = vmul.f32 %v2019, %v2019
  %v2084 = vmul.f32 %v2020, %v2020
  %v2085 = vmul.f32 %v2021, %v2021
  %v2086 = vmul.f32 %v2022, %v2022
  %v2087 = vmul.f32 %v2023, %v2023
  %v2088 = vmul.f32 %v2024, %v2024
  %v2089 = vmul.f32 %v2025, %v2025
  %v2090 = vmul.f32 %v2026, %v2026
  %v2091 = vmul.f32 %v2027, %v2027
  %v2092 = vmul.f32 %v2028, %v2028
  %v2093 = vmul.f32 %v2029, %v2029
  %v2094 = vmul.f32 %v2030, %v2030
  %v2095 = vmul.f32 %v2031, %v2031
  %v2096 = vmul.f32 %v2032, %v2032
  %v2097 = vmul.f32 %v2033, %v2033
  %v2098 = vmul.f32 %v2034, %v2034
  %v2099 = vmul.f32 %v2035, %v2035
  %v2100 = vmul.f32 %v2036, %v2036
  %v2101 = vmul.f32 %v2037, %v2037
  %v2102 = vmul.f32 %v2038, %v2038
  %v2103 = vmul.f32 %v2039, %v2039
  %v2104 = vmul.f32 %v2040, %v2040
  %v2105 = vmul.f32 %v2041, %v2041
  %v2106 = vmul.f32 %v2042, %v2042
  %v2107 = vmul.f32 %v2043, %v2043
  %v2108 = vmul.f32 %v2044, %v2044
  %v2109 = vmul.f32 %v2045, %v2045
  %v2110 = vmul.f32 %v2046, %v2046
  %v2111 = vmul.f32 %v2047, %v2047
  %v2112 = vmul.f32 %v2048, %v2048
  %v2113 = vmul.f32 %v2049, %v2049
  %v2114 = vmul.f32 %v2050, %v2050
  %v2115 = vmul.f32 %v2051, %v2051
  %v2116 = vmul.f32 %v2052, %v2052
  %2117 = vadd.xlane.f32.xlu0 %v2053
  %v2118 = vpop.xlane.xlu0 %2117
  %2119 = vadd.xlane.f32.xlu0 %v2054
  %v2120 = vpop.xlane.xlu0 %2119
  %2121 = vadd.xlane.f32.xlu0 %v2055
  %v2122 = vpop.xlane.xlu0 %2121
  %2123 = vadd.xlane.f32.xlu0 %v2056
  %v2124 = vpop.xlane.xlu0 %2123
  %2125 = vadd.xlane.f32.xlu0 %v2057
  %v2126 = vpop.xlane.xlu0 %2125
  %2127 = vadd.xlane.f32.xlu0 %v2058
  %v2128 = vpop.xlane.xlu0 %2127
  %2129 = vadd.xlane.f32.xlu0 %v2059
  %v2130 = vpop.xlane.xlu0 %2129
  %2131 = vadd.xlane.f32.xlu0 %v2060
  %v2132 = vpop.xlane.xlu0 %2131
  %2133 = vadd.xlane.f32.xlu0 %v2061
  %v2134 = vpop.xlane.xlu0 %2133
  %2135 = vadd.xlane.f32.xlu0 %v2062
  %v2136 = vpop.xlane.xlu0 %2135
  %2137 = vadd.xlane.f32.xlu0 %v2063
  %v2138 = vpop.xlane.xlu0 %2137
  %2139 = vadd.xlane.f32.xlu0 %v2064
  %v2140 = vpop.xlane.xlu0 %2139
  %2141 = vadd.xlane.f32.xlu0 %v2065
  %v2142 = vpop.xlane.xlu0 %2141
  %2143 = vadd.xlane.f32.xlu0 %v2066
  %v2144 = vpop.xlane.xlu0 %2143
  %2145 = vadd.xlane.f32.xlu0 %v2067
  %v2146 = vpop.xlane.xlu0 %2145
  %2147 = vadd.xlane.f32.xlu0 %v2068
  %v2148 = vpop.xlane.xlu0 %2147
  %2149 = vadd.xlane.f32.xlu0 %v2069
  %v2150 = vpop.xlane.xlu0 %2149
  %2151 = vadd.xlane.f32.xlu0 %v2070
  %v2152 = vpop.xlane.xlu0 %2151
  %2153 = vadd.xlane.f32.xlu0 %v2071
  %v2154 = vpop.xlane.xlu0 %2153
  %2155 = vadd.xlane.f32.xlu0 %v2072
  %v2156 = vpop.xlane.xlu0 %2155
  %2157 = vadd.xlane.f32.xlu0 %v2073
  %v2158 = vpop.xlane.xlu0 %2157
  %2159 = vadd.xlane.f32.xlu0 %v2074
  %v2160 = vpop.xlane.xlu0 %2159
  %2161 = vadd.xlane.f32.xlu0 %v2075
  %v2162 = vpop.xlane.xlu0 %2161
  %2163 = vadd.xlane.f32.xlu0 %v2076
  %v2164 = vpop.xlane.xlu0 %2163
  %2165 = vadd.xlane.f32.xlu0 %v2077
  %v2166 = vpop.xlane.xlu0 %2165
  %2167 = vadd.xlane.f32.xlu0 %v2078
  %v2168 = vpop.xlane.xlu0 %2167
  %2169 = vadd.xlane.f32.xlu0 %v2079
  %v2170 = vpop.xlane.xlu0 %2169
  %2171 = vadd.xlane.f32.xlu0 %v2080
  %v2172 = vpop.xlane.xlu0 %2171
  %2173 = vadd.xlane.f32.xlu0 %v2081
  %v2174 = vpop.xlane.xlu0 %2173
  %2175 = vadd.xlane.f32.xlu0 %v2082
  %v2176 = vpop.xlane.xlu0 %2175
  %2177 = vadd.xlane.f32.xlu0 %v2083
  %v2178 = vpop.xlane.xlu0 %2177
  %2179 = vadd.xlane.f32.xlu0 %v2084
  %v2180 = vpop.xlane.xlu0 %2179
  %2181 = vadd.xlane.f32.xlu0 %v2085
  %v2182 = vpop.xlane.xlu0 %2181
  %2183 = vadd.xlane.f32.xlu0 %v2086
  %v2184 = vpop.xlane.xlu0 %2183
  %2185 = vadd.xlane.f32.xlu0 %v2087
  %v2186 = vpop.xlane.xlu0 %2185
  %2187 = vadd.xlane.f32.xlu0 %v2088
  %v2188 = vpop.xlane.xlu0 %2187
  %2189 = vadd.xlane.f32.xlu0 %v2089
  %v2190 = vpop.xlane.xlu0 %2189
  %2191 = vadd.xlane.f32.xlu0 %v2090
  %v2192 = vpop.xlane.xlu0 %2191
  %2193 = vadd.xlane.f32.xlu0 %v2091
  %v2194 = vpop.xlane.xlu0 %2193
  %2195 = vadd.xlane.f32.xlu0 %v2092
  %v2196 = vpop.xlane.xlu0 %2195
  %2197 = vadd.xlane.f32.xlu0 %v2093
  %v2198 = vpop.xlane.xlu0 %2197
  %2199 = vadd.xlane.f32.xlu0 %v2094
  %v2200 = vpop.xlane.xlu0 %2199
  %2201 = vadd.xlane.f32.xlu0 %v2095
  %v2202 = vpop.xlane.xlu0 %2201
  %2203 = vadd.xlane.f32.xlu0 %v2096
  %v2204 = vpop.xlane.xlu0 %2203
  %2205 = vadd.xlane.f32.xlu0 %v2097
  %v2206 = vpop.xlane.xlu0 %2205
  %2207 = vadd.xlane.f32.xlu0 %v2098
  %v2208 = vpop.xlane.xlu0 %2207
  %2209 = vadd.xlane.f32.xlu0 %v2099
  %v2210 = vpop.xlane.xlu0 %2209
  %2211 = vadd.xlane.f32.xlu0 %v2100
  %v2212 = vpop.xlane.xlu0 %2211
  %2213 = vadd.xlane.f32.xlu0 %v2101
  %v2214 = vpop.xlane.xlu0 %2213
  %2215 = vadd.xlane.f32.xlu0 %v2102
  %v2216 = vpop.xlane.xlu0 %2215
  %2217 = vadd.xlane.f32.xlu0 %v2103
  %v2218 = vpop.xlane.xlu0 %2217
  %2219 = vadd.xlane.f32.xlu0 %v2104
  %v2220 = vpop.xlane.xlu0 %2219
  %2221 = vadd.xlane.f32.xlu0 %v2105
  %v2222 = vpop.xlane.xlu0 %2221
  %2223 = vadd.xlane.f32.xlu0 %v2106
  %v2224 = vpop.xlane.xlu0 %2223
  %2225 = vadd.xlane.f32.xlu0 %v2107
  %v2226 = vpop.xlane.xlu0 %2225
  %2227 = vadd.xlane.f32.xlu0 %v2108
  %v2228 = vpop.xlane.xlu0 %2227
  %2229 = vadd.xlane.f32.xlu0 %v2109
  %v2230 = vpop.xlane.xlu0 %2229
  %2231 = vadd.xlane.f32.xlu0 %v2110
  %v2232 = vpop.xlane.xlu0 %2231
  %2233 = vadd.xlane.f32.xlu0 %v2111
  %v2234 = vpop.xlane.xlu0 %2233
  %2235 = vadd.xlane.f32.xlu0 %v2112
  %v2236 = vpop.xlane.xlu0 %2235
  %2237 = vadd.xlane.f32.xlu0 %v2113
  %v2238 = vpop.xlane.xlu0 %2237
  %2239 = vadd.xlane.f32.xlu0 %v2114
  %v2240 = vpop.xlane.xlu0 %2239
  %2241 = vadd.xlane.f32.xlu0 %v2115
  %v2242 = vpop.xlane.xlu0 %2241
  %2243 = vadd.xlane.f32.xlu0 %v2116
  %v2244 = vpop.xlane.xlu0 %2243
  %v2245 = vmul.f32 %v2118, 0.25
  %v2246 = vmul.f32 %v2120, 0.25
  %v2247 = vmul.f32 %v2122, 0.25
  %v2248 = vmul.f32 %v2124, 0.25
  %v2249 = vmul.f32 %v2126, 0.25
  %v2250 = vmul.f32 %v2128, 0.25
  %v2251 = vmul.f32 %v2130, 0.25
  %v2252 = vmul.f32 %v2132, 0.25
  %v2253 = vmul.f32 %v2134, 0.25
  %v2254 = vmul.f32 %v2136, 0.25
  %v2255 = vmul.f32 %v2138, 0.25
  %v2256 = vmul.f32 %v2140, 0.25
  %v2257 = vmul.f32 %v2142, 0.25
  %v2258 = vmul.f32 %v2144, 0.25
  %v2259 = vmul.f32 %v2146, 0.25
  %v2260 = vmul.f32 %v2148, 0.25
  %v2261 = vmul.f32 %v2150, 0.25
  %v2262 = vmul.f32 %v2152, 0.25
  %v2263 = vmul.f32 %v2154, 0.25
  %v2264 = vmul.f32 %v2156, 0.25
  %v2265 = vmul.f32 %v2158, 0.25
  %v2266 = vmul.f32 %v2160, 0.25
  %v2267 = vmul.f32 %v2162, 0.25
  %v2268 = vmul.f32 %v2164, 0.25
  %v2269 = vmul.f32 %v2166, 0.25
  %v2270 = vmul.f32 %v2168, 0.25
  %v2271 = vmul.f32 %v2170, 0.25
  %v2272 = vmul.f32 %v2172, 0.25
  %v2273 = vmul.f32 %v2174, 0.25
  %v2274 = vmul.f32 %v2176, 0.25
  %v2275 = vmul.f32 %v2178, 0.25
  %v2276 = vmul.f32 %v2180, 0.25
  %v2277 = vmul.f32 %v2182, 0.25
  %v2278 = vmul.f32 %v2184, 0.25
  %v2279 = vmul.f32 %v2186, 0.25
  %v2280 = vmul.f32 %v2188, 0.25
  %v2281 = vmul.f32 %v2190, 0.25
  %v2282 = vmul.f32 %v2192, 0.25
  %v2283 = vmul.f32 %v2194, 0.25
  %v2284 = vmul.f32 %v2196, 0.25
  %v2285 = vmul.f32 %v2198, 0.25
  %v2286 = vmul.f32 %v2200, 0.25
  %v2287 = vmul.f32 %v2202, 0.25
  %v2288 = vmul.f32 %v2204, 0.25
  %v2289 = vmul.f32 %v2206, 0.25
  %v2290 = vmul.f32 %v2208, 0.25
  %v2291 = vmul.f32 %v2210, 0.25
  %v2292 = vmul.f32 %v2212, 0.25
  %v2293 = vmul.f32 %v2214, 0.25
  %v2294 = vmul.f32 %v2216, 0.25
  %v2295 = vmul.f32 %v2218, 0.25
  %v2296 = vmul.f32 %v2220, 0.25
  %v2297 = vmul.f32 %v2222, 0.25
  %v2298 = vmul.f32 %v2224, 0.25
  %v2299 = vmul.f32 %v2226, 0.25
  %v2300 = vmul.f32 %v2228, 0.25
  %v2301 = vmul.f32 %v2230, 0.25
  %v2302 = vmul.f32 %v2232, 0.25
  %v2303 = vmul.f32 %v2234, 0.25
  %v2304 = vmul.f32 %v2236, 0.25
  %v2305 = vmul.f32 %v2238, 0.25
  %v2306 = vmul.f32 %v2240, 0.25
  %v2307 = vmul.f32 %v2242, 0.25
  %v2308 = vmul.f32 %v2244, 0.25
  %v2309 = vadd.f32 %v2245, 1e-05
  %v2310 = vadd.f32 %v2246, 1e-05
  %v2311 = vadd.f32 %v2247, 1e-05
  %v2312 = vadd.f32 %v2248, 1e-05
  %v2313 = vadd.f32 %v2249, 1e-05
  %v2314 = vadd.f32 %v2250, 1e-05
  %v2315 = vadd.f32 %v2251, 1e-05
  %v2316 = vadd.f32 %v2252, 1e-05
  %v2317 = vadd.f32 %v2253, 1e-05
  %v2318 = vadd.f32 %v2254, 1e-05
  %v2319 = vadd.f32 %v2255, 1e-05
  %v2320 = vadd.f32 %v2256, 1e-05
  %v2321 = vadd.f32 %v2257, 1e-05
  %v2322 = vadd.f32 %v2258, 1e-05
  %v2323 = vadd.f32 %v2259, 1e-05
  %v2324 = vadd.f32 %v2260, 1e-05
  %v2325 = vadd.f32 %v2261, 1e-05
  %v2326 = vadd.f32 %v2262, 1e-05
  %v2327 = vadd.f32 %v2263, 1e-05
  %v2328 = vadd.f32 %v2264, 1e-05
  %v2329 = vadd.f32 %v2265, 1e-05
  %v2330 = vadd.f32 %v2266, 1e-05
  %v2331 = vadd.f32 %v2267, 1e-05
  %v2332 = vadd.f32 %v2268, 1e-05
  %v2333 = vadd.f32 %v2269, 1e-05
  %v2334 = vadd.f32 %v2270, 1e-05
  %v2335 = vadd.f32 %v2271, 1e-05
  %v2336 = vadd.f32 %v2272, 1e-05
  %v2337 = vadd.f32 %v2273, 1e-05
  %v2338 = vadd.f32 %v2274, 1e-05
  %v2339 = vadd.f32 %v2275, 1e-05
  %v2340 = vadd.f32 %v2276, 1e-05
  %v2341 = vadd.f32 %v2277, 1e-05
  %v2342 = vadd.f32 %v2278, 1e-05
  %v2343 = vadd.f32 %v2279, 1e-05
  %v2344 = vadd.f32 %v2280, 1e-05
  %v2345 = vadd.f32 %v2281, 1e-05
  %v2346 = vadd.f32 %v2282, 1e-05
  %v2347 = vadd.f32 %v2283, 1e-05
  %v2348 = vadd.f32 %v2284, 1e-05
  %v2349 = vadd.f32 %v2285, 1e-05
  %v2350 = vadd.f32 %v2286, 1e-05
  %v2351 = vadd.f32 %v2287, 1e-05
  %v2352 = vadd.f32 %v2288, 1e-05
  %v2353 = vadd.f32 %v2289, 1e-05
  %v2354 = vadd.f32 %v2290, 1e-05
  %v2355 = vadd.f32 %v2291, 1e-05
  %v2356 = vadd.f32 %v2292, 1e-05
  %v2357 = vadd.f32 %v2293, 1e-05
  %v2358 = vadd.f32 %v2294, 1e-05
  %v2359 = vadd.f32 %v2295, 1e-05
  %v2360 = vadd.f32 %v2296, 1e-05
  %v2361 = vadd.f32 %v2297, 1e-05
  %v2362 = vadd.f32 %v2298, 1e-05
  %v2363 = vadd.f32 %v2299, 1e-05
  %v2364 = vadd.f32 %v2300, 1e-05
  %v2365 = vadd.f32 %v2301, 1e-05
  %v2366 = vadd.f32 %v2302, 1e-05
  %v2367 = vadd.f32 %v2303, 1e-05
  %v2368 = vadd.f32 %v2304, 1e-05
  %v2369 = vadd.f32 %v2305, 1e-05
  %v2370 = vadd.f32 %v2306, 1e-05
  %v2371 = vadd.f32 %v2307, 1e-05
  %v2372 = vadd.f32 %v2308, 1e-05
  %v2373 = vrsqrt.pop %v2309
  %v2374 = vrsqrt.pop %v2310
  %v2375 = vrsqrt.pop %v2311
  %v2376 = vrsqrt.pop %v2312
  %v2377 = vrsqrt.pop %v2313
  %v2378 = vrsqrt.pop %v2314
  %v2379 = vrsqrt.pop %v2315
  %v2380 = vrsqrt.pop %v2316
  %v2381 = vrsqrt.pop %v2317
  %v2382 = vrsqrt.pop %v2318
  %v2383 = vrsqrt.pop %v2319
  %v2384 = vrsqrt.pop %v2320
  %v2385 = vrsqrt.pop %v2321
  %v2386 = vrsqrt.pop %v2322
  %v2387 = vrsqrt.pop %v2323
  %v2388 = vrsqrt.pop %v2324
  %v2389 = vrsqrt.pop %v2325
  %v2390 = vrsqrt.pop %v2326
  %v2391 = vrsqrt.pop %v2327
  %v2392 = vrsqrt.pop %v2328
  %v2393 = vrsqrt.pop %v2329
  %v2394 = vrsqrt.pop %v2330
  %v2395 = vrsqrt.pop %v2331
  %v2396 = vrsqrt.pop %v2332
  %v2397 = vrsqrt.pop %v2333
  %v2398 = vrsqrt.pop %v2334
  %v2399 = vrsqrt.pop %v2335
  %v2400 = vrsqrt.pop %v2336
  %v2401 = vrsqrt.pop %v2337
  %v2402 = vrsqrt.pop %v2338
  %v2403 = vrsqrt.pop %v2339
  %v2404 = vrsqrt.pop %v2340
  %v2405 = vrsqrt.pop %v2341
  %v2406 = vrsqrt.pop %v2342
  %v2407 = vrsqrt.pop %v2343
  %v2408 = vrsqrt.pop %v2344
  %v2409 = vrsqrt.pop %v2345
  %v2410 = vrsqrt.pop %v2346
  %v2411 = vrsqrt.pop %v2347
  %v2412 = vrsqrt.pop %v2348
  %v2413 = vrsqrt.pop %v2349
  %v2414 = vrsqrt.pop %v2350
  %v2415 = vrsqrt.pop %v2351
  %v2416 = vrsqrt.pop %v2352
  %v2417 = vrsqrt.pop %v2353
  %v2418 = vrsqrt.pop %v2354
  %v2419 = vrsqrt.pop %v2355
  %v2420 = vrsqrt.pop %v2356
  %v2421 = vrsqrt.pop %v2357
  %v2422 = vrsqrt.pop %v2358
  %v2423 = vrsqrt.pop %v2359
  %v2424 = vrsqrt.pop %v2360
  %v2425 = vrsqrt.pop %v2361
  %v2426 = vrsqrt.pop %v2362
  %v2427 = vrsqrt.pop %v2363
  %v2428 = vrsqrt.pop %v2364
  %v2429 = vrsqrt.pop %v2365
  %v2430 = vrsqrt.pop %v2366
  %v2431 = vrsqrt.pop %v2367
  %v2432 = vrsqrt.pop %v2368
  %v2433 = vrsqrt.pop %v2369
  %v2434 = vrsqrt.pop %v2370
  %v2435 = vrsqrt.pop %v2371
  %v2436 = vrsqrt.pop %v2372
  %v2437 = vmul.f32 %v1989, %v2373
  %v2438 = vmul.f32 %v1990, %v2374
  %v2439 = vmul.f32 %v1991, %v2375
  %v2440 = vmul.f32 %v1992, %v2376
  %v2441 = vmul.f32 %v1993, %v2377
  %v2442 = vmul.f32 %v1994, %v2378
  %v2443 = vmul.f32 %v1995, %v2379
  %v2444 = vmul.f32 %v1996, %v2380
  %v2445 = vmul.f32 %v1997, %v2381
  %v2446 = vmul.f32 %v1998, %v2382
  %v2447 = vmul.f32 %v1999, %v2383
  %v2448 = vmul.f32 %v2000, %v2384
  %v2449 = vmul.f32 %v2001, %v2385
  %v2450 = vmul.f32 %v2002, %v2386
  %v2451 = vmul.f32 %v2003, %v2387
  %v2452 = vmul.f32 %v2004, %v2388
  %v2453 = vmul.f32 %v2005, %v2389
  %v2454 = vmul.f32 %v2006, %v2390
  %v2455 = vmul.f32 %v2007, %v2391
  %v2456 = vmul.f32 %v2008, %v2392
  %v2457 = vmul.f32 %v2009, %v2393
  %v2458 = vmul.f32 %v2010, %v2394
  %v2459 = vmul.f32 %v2011, %v2395
  %v2460 = vmul.f32 %v2012, %v2396
  %v2461 = vmul.f32 %v2013, %v2397
  %v2462 = vmul.f32 %v2014, %v2398
  %v2463 = vmul.f32 %v2015, %v2399
  %v2464 = vmul.f32 %v2016, %v2400
  %v2465 = vmul.f32 %v2017, %v2401
  %v2466 = vmul.f32 %v2018, %v2402
  %v2467 = vmul.f32 %v2019, %v2403
  %v2468 = vmul.f32 %v2020, %v2404
  %v2469 = vmul.f32 %v2021, %v2405
  %v2470 = vmul.f32 %v2022, %v2406
  %v2471 = vmul.f32 %v2023, %v2407
  %v2472 = vmul.f32 %v2024, %v2408
  %v2473 = vmul.f32 %v2025, %v2409
  %v2474 = vmul.f32 %v2026, %v2410
  %v2475 = vmul.f32 %v2027, %v2411
  %v2476 = vmul.f32 %v2028, %v2412
  %v2477 = vmul.f32 %v2029, %v2413
  %v2478 = vmul.f32 %v2030, %v2414
  %v2479 = vmul.f32 %v2031, %v2415
  %v2480 = vmul.f32 %v2032, %v2416
  %v2481 = vmul.f32 %v2033, %v2417
  %v2482 = vmul.f32 %v2034, %v2418
  %v2483 = vmul.f32 %v2035, %v2419
  %v2484 = vmul.f32 %v2036, %v2420
  %v2485 = vmul.f32 %v2037, %v2421
  %v2486 = vmul.f32 %v2038, %v2422
  %v2487 = vmul.f32 %v2039, %v2423
  %v2488 = vmul.f32 %v2040, %v2424
  %v2489 = vmul.f32 %v2041, %v2425
  %v2490 = vmul.f32 %v2042, %v2426
  %v2491 = vmul.f32 %v2043, %v2427
  %v2492 = vmul.f32 %v2044, %v2428
  %v2493 = vmul.f32 %v2045, %v2429
  %v2494 = vmul.f32 %v2046, %v2430
  %v2495 = vmul.f32 %v2047, %v2431
  %v2496 = vmul.f32 %v2048, %v2432
  %v2497 = vmul.f32 %v2049, %v2433
  %v2498 = vmul.f32 %v2050, %v2434
  %v2499 = vmul.f32 %v2051, %v2435
  %v2500 = vmul.f32 %v2052, %v2436
  %v2501 = vld [vmem:[%s6] sm:$0x1]
  %v2503 = vlaneseq
  %v2504 = vshrl.u32 %v2503, 7
  %v2505 = vsub.s32 0, %v2504
  %v2506 = vrot.slane %v2501, %v2505
  %v2508 = vmul.f32 %v2437, %v2506
  %v2509 = vmul.f32 %v2438, %v2506
  %v2510 = vmul.f32 %v2439, %v2506
  %v2511 = vmul.f32 %v2440, %v2506
  %v2512 = vmul.f32 %v2441, %v2506
  %v2513 = vmul.f32 %v2442, %v2506
  %v2514 = vmul.f32 %v2443, %v2506
  %v2515 = vmul.f32 %v2444, %v2506
  %v2516 = vmul.f32 %v2445, %v2506
  %v2517 = vmul.f32 %v2446, %v2506
  %v2518 = vmul.f32 %v2447, %v2506
  %v2519 = vmul.f32 %v2448, %v2506
  %v2520 = vmul.f32 %v2449, %v2506
  %v2521 = vmul.f32 %v2450, %v2506
  %v2522 = vmul.f32 %v2451, %v2506
  %v2523 = vmul.f32 %v2452, %v2506
  %v2524 = vmul.f32 %v2453, %v2506
  %v2525 = vmul.f32 %v2454, %v2506
  %v2526 = vmul.f32 %v2455, %v2506
  %v2527 = vmul.f32 %v2456, %v2506
  %v2528 = vmul.f32 %v2457, %v2506
  %v2529 = vmul.f32 %v2458, %v2506
  %v2530 = vmul.f32 %v2459, %v2506
  %v2531 = vmul.f32 %v2460, %v2506
  %v2532 = vmul.f32 %v2461, %v2506
  %v2533 = vmul.f32 %v2462, %v2506
  %v2534 = vmul.f32 %v2463, %v2506
  %v2535 = vmul.f32 %v2464, %v2506
  %v2536 = vmul.f32 %v2465, %v2506
  %v2537 = vmul.f32 %v2466, %v2506
  %v2538 = vmul.f32 %v2467, %v2506
  %v2539 = vmul.f32 %v2468, %v2506
  %v2540 = vmul.f32 %v2469, %v2506
  %v2541 = vmul.f32 %v2470, %v2506
  %v2542 = vmul.f32 %v2471, %v2506
  %v2543 = vmul.f32 %v2472, %v2506
  %v2544 = vmul.f32 %v2473, %v2506
  %v2545 = vmul.f32 %v2474, %v2506
  %v2546 = vmul.f32 %v2475, %v2506
  %v2547 = vmul.f32 %v2476, %v2506
  %v2548 = vmul.f32 %v2477, %v2506
  %v2549 = vmul.f32 %v2478, %v2506
  %v2550 = vmul.f32 %v2479, %v2506
  %v2551 = vmul.f32 %v2480, %v2506
  %v2552 = vmul.f32 %v2481, %v2506
  %v2553 = vmul.f32 %v2482, %v2506
  %v2554 = vmul.f32 %v2483, %v2506
  %v2555 = vmul.f32 %v2484, %v2506
  %v2556 = vmul.f32 %v2485, %v2506
  %v2557 = vmul.f32 %v2486, %v2506
  %v2558 = vmul.f32 %v2487, %v2506
  %v2559 = vmul.f32 %v2488, %v2506
  %v2560 = vmul.f32 %v2489, %v2506
  %v2561 = vmul.f32 %v2490, %v2506
  %v2562 = vmul.f32 %v2491, %v2506
  %v2563 = vmul.f32 %v2492, %v2506
  %v2564 = vmul.f32 %v2493, %v2506
  %v2565 = vmul.f32 %v2494, %v2506
  %v2566 = vmul.f32 %v2495, %v2506
  %v2567 = vmul.f32 %v2496, %v2506
  %v2568 = vmul.f32 %v2497, %v2506
  %v2569 = vmul.f32 %v2498, %v2506
  %v2570 = vmul.f32 %v2499, %v2506
  %v2571 = vmul.f32 %v2500, %v2506
  %v2572 = vld [vmem:[%s7] sm:$0x1]
  %v2574 = vlaneseq
  %v2575 = vshrl.u32 %v2574, 7
  %v2576 = vsub.s32 0, %v2575
  %v2577 = vrot.slane %v2572, %v2576
  %v2579 = vadd.f32 %v2508, %v2577
  %v2580 = vadd.f32 %v2509, %v2577
  %v2581 = vadd.f32 %v2510, %v2577
  %v2582 = vadd.f32 %v2511, %v2577
  %v2583 = vadd.f32 %v2512, %v2577
  %v2584 = vadd.f32 %v2513, %v2577
  %v2585 = vadd.f32 %v2514, %v2577
  %v2586 = vadd.f32 %v2515, %v2577
  %v2587 = vadd.f32 %v2516, %v2577
  %v2588 = vadd.f32 %v2517, %v2577
  %v2589 = vadd.f32 %v2518, %v2577
  %v2590 = vadd.f32 %v2519, %v2577
  %v2591 = vadd.f32 %v2520, %v2577
  %v2592 = vadd.f32 %v2521, %v2577
  %v2593 = vadd.f32 %v2522, %v2577
  %v2594 = vadd.f32 %v2523, %v2577
  %v2595 = vadd.f32 %v2524, %v2577
  %v2596 = vadd.f32 %v2525, %v2577
  %v2597 = vadd.f32 %v2526, %v2577
  %v2598 = vadd.f32 %v2527, %v2577
  %v2599 = vadd.f32 %v2528, %v2577
  %v2600 = vadd.f32 %v2529, %v2577
  %v2601 = vadd.f32 %v2530, %v2577
  %v2602 = vadd.f32 %v2531, %v2577
  %v2603 = vadd.f32 %v2532, %v2577
  %v2604 = vadd.f32 %v2533, %v2577
  %v2605 = vadd.f32 %v2534, %v2577
  %v2606 = vadd.f32 %v2535, %v2577
  %v2607 = vadd.f32 %v2536, %v2577
  %v2608 = vadd.f32 %v2537, %v2577
  %v2609 = vadd.f32 %v2538, %v2577
  %v2610 = vadd.f32 %v2539, %v2577
  %v2611 = vadd.f32 %v2540, %v2577
  %v2612 = vadd.f32 %v2541, %v2577
  %v2613 = vadd.f32 %v2542, %v2577
  %v2614 = vadd.f32 %v2543, %v2577
  %v2615 = vadd.f32 %v2544, %v2577
  %v2616 = vadd.f32 %v2545, %v2577
  %v2617 = vadd.f32 %v2546, %v2577
  %v2618 = vadd.f32 %v2547, %v2577
  %v2619 = vadd.f32 %v2548, %v2577
  %v2620 = vadd.f32 %v2549, %v2577
  %v2621 = vadd.f32 %v2550, %v2577
  %v2622 = vadd.f32 %v2551, %v2577
  %v2623 = vadd.f32 %v2552, %v2577
  %v2624 = vadd.f32 %v2553, %v2577
  %v2625 = vadd.f32 %v2554, %v2577
  %v2626 = vadd.f32 %v2555, %v2577
  %v2627 = vadd.f32 %v2556, %v2577
  %v2628 = vadd.f32 %v2557, %v2577
  %v2629 = vadd.f32 %v2558, %v2577
  %v2630 = vadd.f32 %v2559, %v2577
  %v2631 = vadd.f32 %v2560, %v2577
  %v2632 = vadd.f32 %v2561, %v2577
  %v2633 = vadd.f32 %v2562, %v2577
  %v2634 = vadd.f32 %v2563, %v2577
  %v2635 = vadd.f32 %v2564, %v2577
  %v2636 = vadd.f32 %v2565, %v2577
  %v2637 = vadd.f32 %v2566, %v2577
  %v2638 = vadd.f32 %v2567, %v2577
  %v2639 = vadd.f32 %v2568, %v2577
  %v2640 = vadd.f32 %v2569, %v2577
  %v2641 = vadd.f32 %v2570, %v2577
  %v2642 = vadd.f32 %v2571, %v2577
  %v2643 = vpack.c.bf16 %v2580, %v2579
  %v2644 = vpack.c.bf16 %v2582, %v2581
  %v2645 = vpack.c.bf16 %v2584, %v2583
  %v2646 = vpack.c.bf16 %v2586, %v2585
  %v2647 = vpack.c.bf16 %v2588, %v2587
  %v2648 = vpack.c.bf16 %v2590, %v2589
  %v2649 = vpack.c.bf16 %v2592, %v2591
  %v2650 = vpack.c.bf16 %v2594, %v2593
  %v2651 = vpack.c.bf16 %v2596, %v2595
  %v2652 = vpack.c.bf16 %v2598, %v2597
  %v2653 = vpack.c.bf16 %v2600, %v2599
  %v2654 = vpack.c.bf16 %v2602, %v2601
  %v2655 = vpack.c.bf16 %v2604, %v2603
  %v2656 = vpack.c.bf16 %v2606, %v2605
  %v2657 = vpack.c.bf16 %v2608, %v2607
  %v2658 = vpack.c.bf16 %v2610, %v2609
  %v2659 = vpack.c.bf16 %v2612, %v2611
  %v2660 = vpack.c.bf16 %v2614, %v2613
  %v2661 = vpack.c.bf16 %v2616, %v2615
  %v2662 = vpack.c.bf16 %v2618, %v2617
  %v2663 = vpack.c.bf16 %v2620, %v2619
  %v2664 = vpack.c.bf16 %v2622, %v2621
  %v2665 = vpack.c.bf16 %v2624, %v2623
  %v2666 = vpack.c.bf16 %v2626, %v2625
  %v2667 = vpack.c.bf16 %v2628, %v2627
  %v2668 = vpack.c.bf16 %v2630, %v2629
  %v2669 = vpack.c.bf16 %v2632, %v2631
  %v2670 = vpack.c.bf16 %v2634, %v2633
  %v2671 = vpack.c.bf16 %v2636, %v2635
  %v2672 = vpack.c.bf16 %v2638, %v2637
  %v2673 = vpack.c.bf16 %v2640, %v2639
  %v2674 = vpack.c.bf16 %v2642, %v2641
  %v2675 = vld [vmem:[%s8] sm:$0xf]
  %v2676 = vld [vmem:[%s8 + $0x4] sm:$0xf]
  %v2677 = vld [vmem:[%s8 + $0x8] sm:$0xf]
  %v2678 = vld [vmem:[%s8 + $0xc] sm:$0xf]
  %v2679 = vld [vmem:[%s8 + $0x10] sm:$0xf]
  %v2680 = vld [vmem:[%s8 + $0x14] sm:$0xf]
  %v2681 = vld [vmem:[%s8 + $0x18] sm:$0xf]
  %v2682 = vld [vmem:[%s8 + $0x1c] sm:$0xf]
  %v2683 = vld [vmem:[%s8 + $0x20] sm:$0xf]
  %v2684 = vld [vmem:[%s8 + $0x24] sm:$0xf]
  %v2685 = vld [vmem:[%s8 + $0x28] sm:$0xf]
  %v2686 = vld [vmem:[%s8 + $0x2c] sm:$0xf]
  %v2687 = vld [vmem:[%s8 + $0x30] sm:$0xf]
  %v2688 = vld [vmem:[%s8 + $0x34] sm:$0xf]
  %v2689 = vld [vmem:[%s8 + $0x38] sm:$0xf]
  %v2690 = vld [vmem:[%s8 + $0x3c] sm:$0xf]
  %v2691 = vld [vmem:[%s9] sm:$0x1]
  %v2693 = vlaneseq
  %v2694 = vshrl.u32 %v2693, 7
  %v2695 = vsub.s32 0, %v2694
  %v2696 = vrot.slane %v2691, %v2695
  %v2714 = vunpack.c.l.b16 %v2675
  %v2715 = vunpack.c.l.b16 %v2676
  %v2716 = vunpack.c.l.b16 %v2677
  %v2717 = vunpack.c.l.b16 %v2678
  %v2718 = vunpack.c.l.b16 %v2679
  %v2719 = vunpack.c.l.b16 %v2680
  %v2720 = vunpack.c.l.b16 %v2681
  %v2721 = vunpack.c.l.b16 %v2682
  %v2722 = vunpack.c.l.b16 %v2683
  %v2723 = vunpack.c.l.b16 %v2684
  %v2724 = vunpack.c.l.b16 %v2685
  %v2725 = vunpack.c.l.b16 %v2686
  %v2726 = vunpack.c.l.b16 %v2687
  %v2727 = vunpack.c.l.b16 %v2688
  %v2728 = vunpack.c.l.b16 %v2689
  %v2729 = vunpack.c.l.b16 %v2690
  %v2730 = vpack.c.b16 %v2715, %v2714
  %v2731 = vpack.c.b16 %v2717, %v2716
  %v2732 = vpack.c.b16 %v2719, %v2718
  %v2733 = vpack.c.b16 %v2721, %v2720
  %v2734 = vpack.c.b16 %v2723, %v2722
  %v2735 = vpack.c.b16 %v2725, %v2724
  %v2736 = vpack.c.b16 %v2727, %v2726
  %v2737 = vpack.c.b16 %v2729, %v2728
  %2746 = vmatprep.subr.bf16.mxu0 0
  %2747 = vmatpush1.bf16.msra.mxu0 %v2730
  %2748 = vmatprep.subr.bf16.mxu0 0
  %2749 = vmatpush1.bf16.msra.mxu0 %v2731
  %2750 = vmatprep.subr.bf16.mxu0 0
  %2751 = vmatpush1.bf16.msra.mxu0 %v2732
  %2752 = vmatprep.subr.bf16.mxu0 0
  %2753 = vmatpush1.bf16.msra.mxu0 %v2733
  %2754 = vmatprep.subr.bf16.mxu0 0
  %2755 = vmatpush1.bf16.msra.mxu0 %v2734
  %2756 = vmatprep.subr.bf16.mxu0 0
  %2757 = vmatpush1.bf16.msra.mxu0 %v2735
  %2758 = vmatprep.subr.bf16.mxu0 0
  %2759 = vmatpush1.bf16.msra.mxu0 %v2736
  %2760 = vmatprep.subr.bf16.mxu0 0
  %2761 = vmatpush1.bf16.msra.mxu0 %v2737
  %2762 = vmatprep.subr.bf16.mxu0 0
  %2763 = vmatpush1.bf16.msra.mxu0 0
  %2764 = vmatprep.subr.bf16.mxu0 0
  %2765 = vmatpush1.bf16.msra.mxu0 0
  %2766 = vmatprep.subr.bf16.mxu0 0
  %2767 = vmatpush1.bf16.msra.mxu0 0
  %2768 = vmatprep.subr.bf16.mxu0 0
  %2769 = vmatpush1.bf16.msra.mxu0 0
  %2770 = vmatprep.subr.bf16.mxu0 0
  %2771 = vmatpush1.bf16.msra.mxu0 0
  %2772 = vmatprep.subr.bf16.mxu0 0
  %2773 = vmatpush1.bf16.msra.mxu0 0
  %2774 = vmatprep.subr.bf16.mxu0 0
  %2775 = vmatpush1.bf16.msra.mxu0 0
  %2776 = vmatprep.subr.bf16.mxu0 0
  %2777 = vmatpush1.bf16.msra.mxu0 0
  %2778 = vmatprep.mubr.bf16.mxu0 0
  %2779 = vmatmul.mubr.bf16.gmra.mrb[0].mxu0 %v2643
  %v2780 = vpop.f32.mrb[0].mxu0
  %v2781 = vadd.f32 %v2696, %v2780
  %v2782 = vpop.f32.mrb[0].mxu0
  %v2783 = vpop.f32.mrb[0].mxu0
  %v2784 = vadd.f32 %v2696, %v2783
  %v2785 = vpop.f32.mrb[0].mxu0
  %2786 = vmatprep.mubr.bf16.mxu0 0
  %2787 = vmatmul.mubr.bf16.gmra.mrb[0].mxu0 %v2644
  %v2788 = vpop.f32.mrb[0].mxu0
  %v2789 = vadd.f32 %v2696, %v2788
  %v2790 = vpop.f32.mrb[0].mxu0
  %v2791 = vpop.f32.mrb[0].mxu0
  %v2792 = vadd.f32 %v2696, %v2791
  %v2793 = vpop.f32.mrb[0].mxu0
  %2794 = vmatprep.mubr.bf16.mxu0 0
  %2795 = vmatmul.mubr.bf16.gmra.mrb[0].mxu0 %v2645
  %v2796 = vpop.f32.mrb[0].mxu0
  %v2797 = vadd.f32 %v2696, %v2796
  %v2798 = vpop.f32.mrb[0].mxu0
  %v2799 = vpop.f32.mrb[0].mxu0
  %v2800 = vadd.f32 %v2696, %v2799
  %v2801 = vpop.f32.mrb[0].mxu0
  %2802 = vmatprep.mubr.bf16.mxu0 0
  %2803 = vmatmul.mubr.bf16.gmra.mrb[0].mxu0 %v2646
  %v2804 = vpop.f32.mrb[0].mxu0
  %v2805 = vadd.f32 %v2696, %v2804
  %v2806 = vpop.f32.mrb[0].mxu0
  %v2807 = vpop.f32.mrb[0].mxu0
  %v2808 = vadd.f32 %v2696, %v2807
  %v2809 = vpop.f32.mrb[0].mxu0
  %2810 = vmatprep.mubr.bf16.mxu0 0
  %2811 = vmatmul.mubr.bf16.gmra.mrb[0].mxu0 %v2647
  %v2812 = vpop.f32.mrb[0].mxu0
  %v2813 = vadd.f32 %v2696, %v2812
  %v2814 = vpop.f32.mrb[0].mxu0
  %v2815 = vpop.f32.mrb[0].mxu0
  %v2816 = vadd.f32 %v2696, %v2815
  %v2817 = vpop.f32.mrb[0].mxu0
  %2818 = vmatprep.mubr.bf16.mxu0 0
  %2819 = vmatmul.mubr.bf16.gmra.mrb[0].mxu0 %v2648
  %v2820 = vpop.f32.mrb[0].mxu0
  %v2821 = vadd.f32 %v2696, %v2820
  %v2822 = vpop.f32.mrb[0].mxu0
  %v2823 = vpop.f32.mrb[0].mxu0
  %v2824 = vadd.f32 %v2696, %v2823
  %v2825 = vpop.f32.mrb[0].mxu0
  %2826 = vmatprep.mubr.bf16.mxu0 0
  %2827 = vmatmul.mubr.bf16.gmra.mrb[0].mxu0 %v2649
  %v2828 = vpop.f32.mrb[0].mxu0
  %v2829 = vadd.f32 %v2696, %v2828
  %v2830 = vpop.f32.mrb[0].mxu0
  %v2831 = vpop.f32.mrb[0].mxu0
  %v2832 = vadd.f32 %v2696, %v2831
  %v2833 = vpop.f32.mrb[0].mxu0
  %2834 = vmatprep.mubr.bf16.mxu0 0
  %2835 = vmatmul.mubr.bf16.gmra.mrb[0].mxu0 %v2650
  %v2836 = vpop.f32.mrb[0].mxu0
  %v2837 = vadd.f32 %v2696, %v2836
  %v2838 = vpop.f32.mrb[0].mxu0
  %v2839 = vpop.f32.mrb[0].mxu0
  %v2840 = vadd.f32 %v2696, %v2839
  %v2841 = vpop.f32.mrb[0].mxu0
  %2842 = vmatprep.mubr.bf16.mxu0 0
  %2843 = vmatmul.mubr.bf16.gmra.mrb[0].mxu0 %v2651
  %v2844 = vpop.f32.mrb[0].mxu0
  %v2845 = vadd.f32 %v2696, %v2844
  %v2846 = vpop.f32.mrb[0].mxu0
  %v2847 = vpop.f32.mrb[0].mxu0
  %v2848 = vadd.f32 %v2696, %v2847
  %v2849 = vpop.f32.mrb[0].mxu0
  %2850 = vmatprep.mubr.bf16.mxu0 0
  %2851 = vmatmul.mubr.bf16.gmra.mrb[0].mxu0 %v2652
  %v2852 = vpop.f32.mrb[0].mxu0
  %v2853 = vadd.f32 %v2696, %v2852
  %v2854 = vpop.f32.mrb[0].mxu0
  %v2855 = vpop.f32.mrb[0].mxu0
  %v2856 = vadd.f32 %v2696, %v2855
  %v2857 = vpop.f32.mrb[0].mxu0
  %2858 = vmatprep.mubr.bf16.mxu0 0
  %2859 = vmatmul.mubr.bf16.gmra.mrb[0].mxu0 %v2653
  %v2860 = vpop.f32.mrb[0].mxu0
  %v2861 = vadd.f32 %v2696, %v2860
  %v2862 = vpop.f32.mrb[0].mxu0
  %v2863 = vpop.f32.mrb[0].mxu0
  %v2864 = vadd.f32 %v2696, %v2863
  %v2865 = vpop.f32.mrb[0].mxu0
  %2866 = vmatprep.mubr.bf16.mxu0 0
  %2867 = vmatmul.mubr.bf16.gmra.mrb[0].mxu0 %v2654
  %v2868 = vpop.f32.mrb[0].mxu0
  %v2869 = vadd.f32 %v2696, %v2868
  %v2870 = vpop.f32.mrb[0].mxu0
  %v2871 = vpop.f32.mrb[0].mxu0
  %v2872 = vadd.f32 %v2696, %v2871
  %v2873 = vpop.f32.mrb[0].mxu0
  %2874 = vmatprep.mubr.bf16.mxu0 0
  %2875 = vmatmul.mubr.bf16.gmra.mrb[0].mxu0 %v2655
  %v2876 = vpop.f32.mrb[0].mxu0
  %v2877 = vadd.f32 %v2696, %v2876
  %v2878 = vpop.f32.mrb[0].mxu0
  %v2879 = vpop.f32.mrb[0].mxu0
  %v2880 = vadd.f32 %v2696, %v2879
  %v2881 = vpop.f32.mrb[0].mxu0
  %2882 = vmatprep.mubr.bf16.mxu0 0
  %2883 = vmatmul.mubr.bf16.gmra.mrb[0].mxu0 %v2656
  %v2884 = vpop.f32.mrb[0].mxu0
  %v2885 = vadd.f32 %v2696, %v2884
  %v2886 = vpop.f32.mrb[0].mxu0
  %v2887 = vpop.f32.mrb[0].mxu0
  %v2888 = vadd.f32 %v2696, %v2887
  %v2889 = vpop.f32.mrb[0].mxu0
  %2890 = vmatprep.mubr.bf16.mxu0 0
  %2891 = vmatmul.mubr.bf16.gmra.mrb[0].mxu0 %v2657
  %v2892 = vpop.f32.mrb[0].mxu0
  %v2893 = vadd.f32 %v2696, %v2892
  %v2894 = vpop.f32.mrb[0].mxu0
  %v2895 = vpop.f32.mrb[0].mxu0
  %v2896 = vadd.f32 %v2696, %v2895
  %v2897 = vpop.f32.mrb[0].mxu0
  %2898 = vmatprep.mubr.bf16.mxu0 0
  %2899 = vmatmul.mubr.bf16.gmra.mrb[0].mxu0 %v2658
  %v2900 = vpop.f32.mrb[0].mxu0
  %v2901 = vadd.f32 %v2696, %v2900
  %v2902 = vpop.f32.mrb[0].mxu0
  %v2903 = vpop.f32.mrb[0].mxu0
  %v2904 = vadd.f32 %v2696, %v2903
  %v2905 = vpop.f32.mrb[0].mxu0
  %2906 = vmatprep.mubr.bf16.mxu0 0
  %2907 = vmatmul.mubr.bf16.gmra.mrb[0].mxu0 %v2659
  %v2908 = vpop.f32.mrb[0].mxu0
  %v2909 = vadd.f32 %v2696, %v2908
  %v2910 = vpop.f32.mrb[0].mxu0
  %v2911 = vpop.f32.mrb[0].mxu0
  %v2912 = vadd.f32 %v2696, %v2911
  %v2913 = vpop.f32.mrb[0].mxu0
  %2914 = vmatprep.mubr.bf16.mxu0 0
  %2915 = vmatmul.mubr.bf16.gmra.mrb[0].mxu0 %v2660
  %v2916 = vpop.f32.mrb[0].mxu0
  %v2917 = vadd.f32 %v2696, %v2916
  %v2918 = vpop.f32.mrb[0].mxu0
  %v2919 = vpop.f32.mrb[0].mxu0
  %v2920 = vadd.f32 %v2696, %v2919
  %v2921 = vpop.f32.mrb[0].mxu0
  %2922 = vmatprep.mubr.bf16.mxu0 0
  %2923 = vmatmul.mubr.bf16.gmra.mrb[0].mxu0 %v2661
  %v2924 = vpop.f32.mrb[0].mxu0
  %v2925 = vadd.f32 %v2696, %v2924
  %v2926 = vpop.f32.mrb[0].mxu0
  %v2927 = vpop.f32.mrb[0].mxu0
  %v2928 = vadd.f32 %v2696, %v2927
  %v2929 = vpop.f32.mrb[0].mxu0
  %2930 = vmatprep.mubr.bf16.mxu0 0
  %2931 = vmatmul.mubr.bf16.gmra.mrb[0].mxu0 %v2662
  %v2932 = vpop.f32.mrb[0].mxu0
  %v2933 = vadd.f32 %v2696, %v2932
  %v2934 = vpop.f32.mrb[0].mxu0
  %v2935 = vpop.f32.mrb[0].mxu0
  %v2936 = vadd.f32 %v2696, %v2935
  %v2937 = vpop.f32.mrb[0].mxu0
  %2938 = vmatprep.mubr.bf16.mxu0 0
  %2939 = vmatmul.mubr.bf16.gmra.mrb[0].mxu0 %v2663
  %v2940 = vpop.f32.mrb[0].mxu0
  %v2941 = vadd.f32 %v2696, %v2940
  %v2942 = vpop.f32.mrb[0].mxu0
  %v2943 = vpop.f32.mrb[0].mxu0
  %v2944 = vadd.f32 %v2696, %v2943
  %v2945 = vpop.f32.mrb[0].mxu0
  %2946 = vmatprep.mubr.bf16.mxu0 0
  %2947 = vmatmul.mubr.bf16.gmra.mrb[0].mxu0 %v2664
  %v2948 = vpop.f32.mrb[0].mxu0
  %v2949 = vadd.f32 %v2696, %v2948
  %v2950 = vpop.f32.mrb[0].mxu0
  %v2951 = vpop.f32.mrb[0].mxu0
  %v2952 = vadd.f32 %v2696, %v2951
  %v2953 = vpop.f32.mrb[0].mxu0
  %2954 = vmatprep.mubr.bf16.mxu0 0
  %2955 = vmatmul.mubr.bf16.gmra.mrb[0].mxu0 %v2665
  %v2956 = vpop.f32.mrb[0].mxu0
  %v2957 = vadd.f32 %v2696, %v2956
  %v2958 = vpop.f32.mrb[0].mxu0
  %v2959 = vpop.f32.mrb[0].mxu0
  %v2960 = vadd.f32 %v2696, %v2959
  %v2961 = vpop.f32.mrb[0].mxu0
  %2962 = vmatprep.mubr.bf16.mxu0 0
  %2963 = vmatmul.mubr.bf16.gmra.mrb[0].mxu0 %v2666
  %v2964 = vpop.f32.mrb[0].mxu0
  %v2965 = vadd.f32 %v2696, %v2964
  %v2966 = vpop.f32.mrb[0].mxu0
  %v2967 = vpop.f32.mrb[0].mxu0
  %v2968 = vadd.f32 %v2696, %v2967
  %v2969 = vpop.f32.mrb[0].mxu0
  %2970 = vmatprep.mubr.bf16.mxu0 0
  %2971 = vmatmul.mubr.bf16.gmra.mrb[0].mxu0 %v2667
  %v2972 = vpop.f32.mrb[0].mxu0
  %v2973 = vadd.f32 %v2696, %v2972
  %v2974 = vpop.f32.mrb[0].mxu0
  %v2975 = vpop.f32.mrb[0].mxu0
  %v2976 = vadd.f32 %v2696, %v2975
  %v2977 = vpop.f32.mrb[0].mxu0
  %2978 = vmatprep.mubr.bf16.mxu0 0
  %2979 = vmatmul.mubr.bf16.gmra.mrb[0].mxu0 %v2668
  %v2980 = vpop.f32.mrb[0].mxu0
  %v2981 = vadd.f32 %v2696, %v2980
  %v2982 = vpop.f32.mrb[0].mxu0
  %v2983 = vpop.f32.mrb[0].mxu0
  %v2984 = vadd.f32 %v2696, %v2983
  %v2985 = vpop.f32.mrb[0].mxu0
  %2986 = vmatprep.mubr.bf16.mxu0 0
  %2987 = vmatmul.mubr.bf16.gmra.mrb[0].mxu0 %v2669
  %v2988 = vpop.f32.mrb[0].mxu0
  %v2989 = vadd.f32 %v2696, %v2988
  %v2990 = vpop.f32.mrb[0].mxu0
  %v2991 = vpop.f32.mrb[0].mxu0
  %v2992 = vadd.f32 %v2696, %v2991
  %v2993 = vpop.f32.mrb[0].mxu0
  %2994 = vmatprep.mubr.bf16.mxu0 0
  %2995 = vmatmul.mubr.bf16.gmra.mrb[0].mxu0 %v2670
  %v2996 = vpop.f32.mrb[0].mxu0
  %v2997 = vadd.f32 %v2696, %v2996
  %v2998 = vpop.f32.mrb[0].mxu0
  %v2999 = vpop.f32.mrb[0].mxu0
  %v3000 = vadd.f32 %v2696, %v2999
  %v3001 = vpop.f32.mrb[0].mxu0
  %3002 = vmatprep.mubr.bf16.mxu0 0
  %3003 = vmatmul.mubr.bf16.gmra.mrb[0].mxu0 %v2671
  %v3004 = vpop.f32.mrb[0].mxu0
  %v3005 = vadd.f32 %v2696, %v3004
  %v3006 = vpop.f32.mrb[0].mxu0
  %v3007 = vpop.f32.mrb[0].mxu0
  %v3008 = vadd.f32 %v2696, %v3007
  %v3009 = vpop.f32.mrb[0].mxu0
  %3010 = vmatprep.mubr.bf16.mxu0 0
  %3011 = vmatmul.mubr.bf16.gmra.mrb[0].mxu0 %v2672
  %v3012 = vpop.f32.mrb[0].mxu0
  %v3013 = vadd.f32 %v2696, %v3012
  %v3014 = vpop.f32.mrb[0].mxu0
  %v3015 = vpop.f32.mrb[0].mxu0
  %v3016 = vadd.f32 %v2696, %v3015
  %v3017 = vpop.f32.mrb[0].mxu0
  %3018 = vmatprep.mubr.bf16.mxu0 0
  %3019 = vmatmul.mubr.bf16.gmra.mrb[0].mxu0 %v2673
  %v3020 = vpop.f32.mrb[0].mxu0
  %v3021 = vadd.f32 %v2696, %v3020
  %v3022 = vpop.f32.mrb[0].mxu0
  %v3023 = vpop.f32.mrb[0].mxu0
  %v3024 = vadd.f32 %v2696, %v3023
  %v3025 = vpop.f32.mrb[0].mxu0
  %3026 = vmatprep.mubr.bf16.mxu0 0
  %3027 = vmatmul.mubr.bf16.gmra.mrb[0].mxu0 %v2674
  %v3028 = vpop.f32.mrb[0].mxu0
  %v3029 = vadd.f32 %v2696, %v3028
  %v3030 = vpop.f32.mrb[0].mxu0
  %v3031 = vpop.f32.mrb[0].mxu0
  %v3032 = vadd.f32 %v2696, %v3031
  %v3033 = vpop.f32.mrb[0].mxu0
  %3034 = vdwg.mxu0
  %v3035 = vmax.f32 %v2781, 0.0
  %v3036 = vmax.f32 %v2784, 0.0
  %v3037 = vmax.f32 %v2789, 0.0
  %v3038 = vmax.f32 %v2792, 0.0
  %v3039 = vmax.f32 %v2797, 0.0
  %v3040 = vmax.f32 %v2800, 0.0
  %v3041 = vmax.f32 %v2805, 0.0
  %v3042 = vmax.f32 %v2808, 0.0
  %v3043 = vmax.f32 %v2813, 0.0
  %v3044 = vmax.f32 %v2816, 0.0
  %v3045 = vmax.f32 %v2821, 0.0
  %v3046 = vmax.f32 %v2824, 0.0
  %v3047 = vmax.f32 %v2829, 0.0
  %v3048 = vmax.f32 %v2832, 0.0
  %v3049 = vmax.f32 %v2837, 0.0
  %v3050 = vmax.f32 %v2840, 0.0
  %v3051 = vmax.f32 %v2845, 0.0
  %v3052 = vmax.f32 %v2848, 0.0
  %v3053 = vmax.f32 %v2853, 0.0
  %v3054 = vmax.f32 %v2856, 0.0
  %v3055 = vmax.f32 %v2861, 0.0
  %v3056 = vmax.f32 %v2864, 0.0
  %v3057 = vmax.f32 %v2869, 0.0
  %v3058 = vmax.f32 %v2872, 0.0
  %v3059 = vmax.f32 %v2877, 0.0
  %v3060 = vmax.f32 %v2880, 0.0
  %v3061 = vmax.f32 %v2885, 0.0
  %v3062 = vmax.f32 %v2888, 0.0
  %v3063 = vmax.f32 %v2893, 0.0
  %v3064 = vmax.f32 %v2896, 0.0
  %v3065 = vmax.f32 %v2901, 0.0
  %v3066 = vmax.f32 %v2904, 0.0
  %v3067 = vmax.f32 %v2909, 0.0
  %v3068 = vmax.f32 %v2912, 0.0
  %v3069 = vmax.f32 %v2917, 0.0
  %v3070 = vmax.f32 %v2920, 0.0
  %v3071 = vmax.f32 %v2925, 0.0
  %v3072 = vmax.f32 %v2928, 0.0
  %v3073 = vmax.f32 %v2933, 0.0
  %v3074 = vmax.f32 %v2936, 0.0
  %v3075 = vmax.f32 %v2941, 0.0
  %v3076 = vmax.f32 %v2944, 0.0
  %v3077 = vmax.f32 %v2949, 0.0
  %v3078 = vmax.f32 %v2952, 0.0
  %v3079 = vmax.f32 %v2957, 0.0
  %v3080 = vmax.f32 %v2960, 0.0
  %v3081 = vmax.f32 %v2965, 0.0
  %v3082 = vmax.f32 %v2968, 0.0
  %v3083 = vmax.f32 %v2973, 0.0
  %v3084 = vmax.f32 %v2976, 0.0
  %v3085 = vmax.f32 %v2981, 0.0
  %v3086 = vmax.f32 %v2984, 0.0
  %v3087 = vmax.f32 %v2989, 0.0
  %v3088 = vmax.f32 %v2992, 0.0
  %v3089 = vmax.f32 %v2997, 0.0
  %v3090 = vmax.f32 %v3000, 0.0
  %v3091 = vmax.f32 %v3005, 0.0
  %v3092 = vmax.f32 %v3008, 0.0
  %v3093 = vmax.f32 %v3013, 0.0
  %v3094 = vmax.f32 %v3016, 0.0
  %v3095 = vmax.f32 %v3021, 0.0
  %v3096 = vmax.f32 %v3024, 0.0
  %v3097 = vmax.f32 %v3029, 0.0
  %v3098 = vmax.f32 %v3032, 0.0
  %v3099 = vpack.c.bf16 %v3036, %v3035
  %v3100 = vpack.c.bf16 %v3038, %v3037
  %v3101 = vpack.c.bf16 %v3040, %v3039
  %v3102 = vpack.c.bf16 %v3042, %v3041
  %v3103 = vpack.c.bf16 %v3044, %v3043
  %v3104 = vpack.c.bf16 %v3046, %v3045
  %v3105 = vpack.c.bf16 %v3048, %v3047
  %v3106 = vpack.c.bf16 %v3050, %v3049
  %v3107 = vpack.c.bf16 %v3052, %v3051
  %v3108 = vpack.c.bf16 %v3054, %v3053
  %v3109 = vpack.c.bf16 %v3056, %v3055
  %v3110 = vpack.c.bf16 %v3058, %v3057
  %v3111 = vpack.c.bf16 %v3060, %v3059
  %v3112 = vpack.c.bf16 %v3062, %v3061
  %v3113 = vpack.c.bf16 %v3064, %v3063
  %v3114 = vpack.c.bf16 %v3066, %v3065
  %v3115 = vpack.c.bf16 %v3068, %v3067
  %v3116 = vpack.c.bf16 %v3070, %v3069
  %v3117 = vpack.c.bf16 %v3072, %v3071
  %v3118 = vpack.c.bf16 %v3074, %v3073
  %v3119 = vpack.c.bf16 %v3076, %v3075
  %v3120 = vpack.c.bf16 %v3078, %v3077
  %v3121 = vpack.c.bf16 %v3080, %v3079
  %v3122 = vpack.c.bf16 %v3082, %v3081
  %v3123 = vpack.c.bf16 %v3084, %v3083
  %v3124 = vpack.c.bf16 %v3086, %v3085
  %v3125 = vpack.c.bf16 %v3088, %v3087
  %v3126 = vpack.c.bf16 %v3090, %v3089
  %v3127 = vpack.c.bf16 %v3092, %v3091
  %v3128 = vpack.c.bf16 %v3094, %v3093
  %v3129 = vpack.c.bf16 %v3096, %v3095
  %v3130 = vpack.c.bf16 %v3098, %v3097
  %v3131 = vld [vmem:[%s10] sm:$0xf]
  %v3132 = vld [vmem:[%s10 + $0x4] sm:$0xf]
  %v3133 = vld [vmem:[%s10 + $0x8] sm:$0xf]
  %v3134 = vld [vmem:[%s10 + $0xc] sm:$0xf]
  %v3135 = vld [vmem:[%s10 + $0x10] sm:$0xf]
  %v3136 = vld [vmem:[%s10 + $0x14] sm:$0xf]
  %v3137 = vld [vmem:[%s10 + $0x18] sm:$0xf]
  %v3138 = vld [vmem:[%s10 + $0x1c] sm:$0xf]
  %v3139 = vld [vmem:[%s10 + $0x20] sm:$0xf]
  %v3140 = vld [vmem:[%s10 + $0x24] sm:$0xf]
  %v3141 = vld [vmem:[%s10 + $0x28] sm:$0xf]
  %v3142 = vld [vmem:[%s10 + $0x2c] sm:$0xf]
  %v3143 = vld [vmem:[%s10 + $0x30] sm:$0xf]
  %v3144 = vld [vmem:[%s10 + $0x34] sm:$0xf]
  %v3145 = vld [vmem:[%s10 + $0x38] sm:$0xf]
  %v3146 = vld [vmem:[%s10 + $0x3c] sm:$0xf]
  %v3163 = vunpack.c.l.b16 %v3131
  %v3164 = vunpack.c.l.b16 %v3132
  %v3165 = vunpack.c.l.b16 %v3133
  %v3166 = vunpack.c.l.b16 %v3134
  %v3167 = vunpack.c.l.b16 %v3135
  %v3168 = vunpack.c.l.b16 %v3136
  %v3169 = vunpack.c.l.b16 %v3137
  %v3170 = vunpack.c.l.b16 %v3138
  %v3171 = vunpack.c.l.b16 %v3139
  %v3172 = vunpack.c.l.b16 %v3140
  %v3173 = vunpack.c.l.b16 %v3141
  %v3174 = vunpack.c.l.b16 %v3142
  %v3175 = vunpack.c.l.b16 %v3143
  %v3176 = vunpack.c.l.b16 %v3144
  %v3177 = vunpack.c.l.b16 %v3145
  %v3178 = vunpack.c.l.b16 %v3146
  %v3179 = vpack.c.b16 %v3164, %v3163
  %v3180 = vpack.c.b16 %v3166, %v3165
  %v3181 = vpack.c.b16 %v3168, %v3167
  %v3182 = vpack.c.b16 %v3170, %v3169
  %v3183 = vpack.c.b16 %v3172, %v3171
  %v3184 = vpack.c.b16 %v3174, %v3173
  %v3185 = vpack.c.b16 %v3176, %v3175
  %v3186 = vpack.c.b16 %v3178, %v3177
  %3195 = vmatprep.subr.bf16.mxu0 0
  %3196 = vmatpush1.bf16.msra.mxu0 %v3179
  %3197 = vmatprep.subr.bf16.mxu0 0
  %3198 = vmatpush1.bf16.msra.mxu0 %v3180
  %3199 = vmatprep.subr.bf16.mxu0 0
  %3200 = vmatpush1.bf16.msra.mxu0 %v3181
  %3201 = vmatprep.subr.bf16.mxu0 0
  %3202 = vmatpush1.bf16.msra.mxu0 %v3182
  %3203 = vmatprep.subr.bf16.mxu0 0
  %3204 = vmatpush1.bf16.msra.mxu0 %v3183
  %3205 = vmatprep.subr.bf16.mxu0 0
  %3206 = vmatpush1.bf16.msra.mxu0 %v3184
  %3207 = vmatprep.subr.bf16.mxu0 0
  %3208 = vmatpush1.bf16.msra.mxu0 %v3185
  %3209 = vmatprep.subr.bf16.mxu0 0
  %3210 = vmatpush1.bf16.msra.mxu0 %v3186
  %3211 = vmatprep.subr.bf16.mxu0 0
  %3212 = vmatpush1.bf16.msra.mxu0 0
  %3213 = vmatprep.subr.bf16.mxu0 0
  %3214 = vmatpush1.bf16.msra.mxu0 0
  %3215 = vmatprep.subr.bf16.mxu0 0
  %3216 = vmatpush1.bf16.msra.mxu0 0
  %3217 = vmatprep.subr.bf16.mxu0 0
  %3218 = vmatpush1.bf16.msra.mxu0 0
  %3219 = vmatprep.subr.bf16.mxu0 0
  %3220 = vmatpush1.bf16.msra.mxu0 0
  %3221 = vmatprep.subr.bf16.mxu0 0
  %3222 = vmatpush1.bf16.msra.mxu0 0
  %3223 = vmatprep.subr.bf16.mxu0 0
  %3224 = vmatpush1.bf16.msra.mxu0 0
  %3225 = vmatprep.subr.bf16.mxu0 0
  %3226 = vmatpush1.bf16.msra.mxu0 0
  %3227 = vmatprep.mubr.bf16.mxu0 0
  %3228 = vmatmul.mubr.bf16.gmra.mrb[0].mxu0 %v3099
  %v3229 = vpop.f32.mrb[0].mxu0
  %v3230 = vadd.f32 0.0, %v3229
  %v3231 = vpop.f32.mrb[0].mxu0
  %v3232 = vpop.f32.mrb[0].mxu0
  %v3233 = vadd.f32 0.0, %v3232
  %v3234 = vpop.f32.mrb[0].mxu0
  %3235 = vmatprep.mubr.bf16.mxu0 0
  %3236 = vmatmul.mubr.bf16.gmra.mrb[0].mxu0 %v3100
  %v3237 = vpop.f32.mrb[0].mxu0
  %v3238 = vadd.f32 0.0, %v3237
  %v3239 = vpop.f32.mrb[0].mxu0
  %v3240 = vpop.f32.mrb[0].mxu0
  %v3241 = vadd.f32 0.0, %v3240
  %v3242 = vpop.f32.mrb[0].mxu0
  %3243 = vmatprep.mubr.bf16.mxu0 0
  %3244 = vmatmul.mubr.bf16.gmra.mrb[0].mxu0 %v3101
  %v3245 = vpop.f32.mrb[0].mxu0
  %v3246 = vadd.f32 0.0, %v3245
  %v3247 = vpop.f32.mrb[0].mxu0
  %v3248 = vpop.f32.mrb[0].mxu0
  %v3249 = vadd.f32 0.0, %v3248
  %v3250 = vpop.f32.mrb[0].mxu0
  %3251 = vmatprep.mubr.bf16.mxu0 0
  %3252 = vmatmul.mubr.bf16.gmra.mrb[0].mxu0 %v3102
  %v3253 = vpop.f32.mrb[0].mxu0
  %v3254 = vadd.f32 0.0, %v3253
  %v3255 = vpop.f32.mrb[0].mxu0
  %v3256 = vpop.f32.mrb[0].mxu0
  %v3257 = vadd.f32 0.0, %v3256
  %v3258 = vpop.f32.mrb[0].mxu0
  %3259 = vmatprep.mubr.bf16.mxu0 0
  %3260 = vmatmul.mubr.bf16.gmra.mrb[0].mxu0 %v3103
  %v3261 = vpop.f32.mrb[0].mxu0
  %v3262 = vadd.f32 0.0, %v3261
  %v3263 = vpop.f32.mrb[0].mxu0
  %v3264 = vpop.f32.mrb[0].mxu0
  %v3265 = vadd.f32 0.0, %v3264
  %v3266 = vpop.f32.mrb[0].mxu0
  %3267 = vmatprep.mubr.bf16.mxu0 0
  %3268 = vmatmul.mubr.bf16.gmra.mrb[0].mxu0 %v3104
  %v3269 = vpop.f32.mrb[0].mxu0
  %v3270 = vadd.f32 0.0, %v3269
  %v3271 = vpop.f32.mrb[0].mxu0
  %v3272 = vpop.f32.mrb[0].mxu0
  %v3273 = vadd.f32 0.0, %v3272
  %v3274 = vpop.f32.mrb[0].mxu0
  %3275 = vmatprep.mubr.bf16.mxu0 0
  %3276 = vmatmul.mubr.bf16.gmra.mrb[0].mxu0 %v3105
  %v3277 = vpop.f32.mrb[0].mxu0
  %v3278 = vadd.f32 0.0, %v3277
  %v3279 = vpop.f32.mrb[0].mxu0
  %v3280 = vpop.f32.mrb[0].mxu0
  %v3281 = vadd.f32 0.0, %v3280
  %v3282 = vpop.f32.mrb[0].mxu0
  %3283 = vmatprep.mubr.bf16.mxu0 0
  %3284 = vmatmul.mubr.bf16.gmra.mrb[0].mxu0 %v3106
  %v3285 = vpop.f32.mrb[0].mxu0
  %v3286 = vadd.f32 0.0, %v3285
  %v3287 = vpop.f32.mrb[0].mxu0
  %v3288 = vpop.f32.mrb[0].mxu0
  %v3289 = vadd.f32 0.0, %v3288
  %v3290 = vpop.f32.mrb[0].mxu0
  %3291 = vmatprep.mubr.bf16.mxu0 0
  %3292 = vmatmul.mubr.bf16.gmra.mrb[0].mxu0 %v3107
  %v3293 = vpop.f32.mrb[0].mxu0
  %v3294 = vadd.f32 0.0, %v3293
  %v3295 = vpop.f32.mrb[0].mxu0
  %v3296 = vpop.f32.mrb[0].mxu0
  %v3297 = vadd.f32 0.0, %v3296
  %v3298 = vpop.f32.mrb[0].mxu0
  %3299 = vmatprep.mubr.bf16.mxu0 0
  %3300 = vmatmul.mubr.bf16.gmra.mrb[0].mxu0 %v3108
  %v3301 = vpop.f32.mrb[0].mxu0
  %v3302 = vadd.f32 0.0, %v3301
  %v3303 = vpop.f32.mrb[0].mxu0
  %v3304 = vpop.f32.mrb[0].mxu0
  %v3305 = vadd.f32 0.0, %v3304
  %v3306 = vpop.f32.mrb[0].mxu0
  %3307 = vmatprep.mubr.bf16.mxu0 0
  %3308 = vmatmul.mubr.bf16.gmra.mrb[0].mxu0 %v3109
  %v3309 = vpop.f32.mrb[0].mxu0
  %v3310 = vadd.f32 0.0, %v3309
  %v3311 = vpop.f32.mrb[0].mxu0
  %v3312 = vpop.f32.mrb[0].mxu0
  %v3313 = vadd.f32 0.0, %v3312
  %v3314 = vpop.f32.mrb[0].mxu0
  %3315 = vmatprep.mubr.bf16.mxu0 0
  %3316 = vmatmul.mubr.bf16.gmra.mrb[0].mxu0 %v3110
  %v3317 = vpop.f32.mrb[0].mxu0
  %v3318 = vadd.f32 0.0, %v3317
  %v3319 = vpop.f32.mrb[0].mxu0
  %v3320 = vpop.f32.mrb[0].mxu0
  %v3321 = vadd.f32 0.0, %v3320
  %v3322 = vpop.f32.mrb[0].mxu0
  %3323 = vmatprep.mubr.bf16.mxu0 0
  %3324 = vmatmul.mubr.bf16.gmra.mrb[0].mxu0 %v3111
  %v3325 = vpop.f32.mrb[0].mxu0
  %v3326 = vadd.f32 0.0, %v3325
  %v3327 = vpop.f32.mrb[0].mxu0
  %v3328 = vpop.f32.mrb[0].mxu0
  %v3329 = vadd.f32 0.0, %v3328
  %v3330 = vpop.f32.mrb[0].mxu0
  %3331 = vmatprep.mubr.bf16.mxu0 0
  %3332 = vmatmul.mubr.bf16.gmra.mrb[0].mxu0 %v3112
  %v3333 = vpop.f32.mrb[0].mxu0
  %v3334 = vadd.f32 0.0, %v3333
  %v3335 = vpop.f32.mrb[0].mxu0
  %v3336 = vpop.f32.mrb[0].mxu0
  %v3337 = vadd.f32 0.0, %v3336
  %v3338 = vpop.f32.mrb[0].mxu0
  %3339 = vmatprep.mubr.bf16.mxu0 0
  %3340 = vmatmul.mubr.bf16.gmra.mrb[0].mxu0 %v3113
  %v3341 = vpop.f32.mrb[0].mxu0
  %v3342 = vadd.f32 0.0, %v3341
  %v3343 = vpop.f32.mrb[0].mxu0
  %v3344 = vpop.f32.mrb[0].mxu0
  %v3345 = vadd.f32 0.0, %v3344
  %v3346 = vpop.f32.mrb[0].mxu0
  %3347 = vmatprep.mubr.bf16.mxu0 0
  %3348 = vmatmul.mubr.bf16.gmra.mrb[0].mxu0 %v3114
  %v3349 = vpop.f32.mrb[0].mxu0
  %v3350 = vadd.f32 0.0, %v3349
  %v3351 = vpop.f32.mrb[0].mxu0
  %v3352 = vpop.f32.mrb[0].mxu0
  %v3353 = vadd.f32 0.0, %v3352
  %v3354 = vpop.f32.mrb[0].mxu0
  %3355 = vmatprep.mubr.bf16.mxu0 0
  %3356 = vmatmul.mubr.bf16.gmra.mrb[0].mxu0 %v3115
  %v3357 = vpop.f32.mrb[0].mxu0
  %v3358 = vadd.f32 0.0, %v3357
  %v3359 = vpop.f32.mrb[0].mxu0
  %v3360 = vpop.f32.mrb[0].mxu0
  %v3361 = vadd.f32 0.0, %v3360
  %v3362 = vpop.f32.mrb[0].mxu0
  %3363 = vmatprep.mubr.bf16.mxu0 0
  %3364 = vmatmul.mubr.bf16.gmra.mrb[0].mxu0 %v3116
  %v3365 = vpop.f32.mrb[0].mxu0
  %v3366 = vadd.f32 0.0, %v3365
  %v3367 = vpop.f32.mrb[0].mxu0
  %v3368 = vpop.f32.mrb[0].mxu0
  %v3369 = vadd.f32 0.0, %v3368
  %v3370 = vpop.f32.mrb[0].mxu0
  %3371 = vmatprep.mubr.bf16.mxu0 0
  %3372 = vmatmul.mubr.bf16.gmra.mrb[0].mxu0 %v3117
  %v3373 = vpop.f32.mrb[0].mxu0
  %v3374 = vadd.f32 0.0, %v3373
  %v3375 = vpop.f32.mrb[0].mxu0
  %v3376 = vpop.f32.mrb[0].mxu0
  %v3377 = vadd.f32 0.0, %v3376
  %v3378 = vpop.f32.mrb[0].mxu0
  %3379 = vmatprep.mubr.bf16.mxu0 0
  %3380 = vmatmul.mubr.bf16.gmra.mrb[0].mxu0 %v3118
  %v3381 = vpop.f32.mrb[0].mxu0
  %v3382 = vadd.f32 0.0, %v3381
  %v3383 = vpop.f32.mrb[0].mxu0
  %v3384 = vpop.f32.mrb[0].mxu0
  %v3385 = vadd.f32 0.0, %v3384
  %v3386 = vpop.f32.mrb[0].mxu0
  %3387 = vmatprep.mubr.bf16.mxu0 0
  %3388 = vmatmul.mubr.bf16.gmra.mrb[0].mxu0 %v3119
  %v3389 = vpop.f32.mrb[0].mxu0
  %v3390 = vadd.f32 0.0, %v3389
  %v3391 = vpop.f32.mrb[0].mxu0
  %v3392 = vpop.f32.mrb[0].mxu0
  %v3393 = vadd.f32 0.0, %v3392
  %v3394 = vpop.f32.mrb[0].mxu0
  %3395 = vmatprep.mubr.bf16.mxu0 0
  %3396 = vmatmul.mubr.bf16.gmra.mrb[0].mxu0 %v3120
  %v3397 = vpop.f32.mrb[0].mxu0
  %v3398 = vadd.f32 0.0, %v3397
  %v3399 = vpop.f32.mrb[0].mxu0
  %v3400 = vpop.f32.mrb[0].mxu0
  %v3401 = vadd.f32 0.0, %v3400
  %v3402 = vpop.f32.mrb[0].mxu0
  %3403 = vmatprep.mubr.bf16.mxu0 0
  %3404 = vmatmul.mubr.bf16.gmra.mrb[0].mxu0 %v3121
  %v3405 = vpop.f32.mrb[0].mxu0
  %v3406 = vadd.f32 0.0, %v3405
  %v3407 = vpop.f32.mrb[0].mxu0
  %v3408 = vpop.f32.mrb[0].mxu0
  %v3409 = vadd.f32 0.0, %v3408
  %v3410 = vpop.f32.mrb[0].mxu0
  %3411 = vmatprep.mubr.bf16.mxu0 0
  %3412 = vmatmul.mubr.bf16.gmra.mrb[0].mxu0 %v3122
  %v3413 = vpop.f32.mrb[0].mxu0
  %v3414 = vadd.f32 0.0, %v3413
  %v3415 = vpop.f32.mrb[0].mxu0
  %v3416 = vpop.f32.mrb[0].mxu0
  %v3417 = vadd.f32 0.0, %v3416
  %v3418 = vpop.f32.mrb[0].mxu0
  %3419 = vmatprep.mubr.bf16.mxu0 0
  %3420 = vmatmul.mubr.bf16.gmra.mrb[0].mxu0 %v3123
  %v3421 = vpop.f32.mrb[0].mxu0
  %v3422 = vadd.f32 0.0, %v3421
  %v3423 = vpop.f32.mrb[0].mxu0
  %v3424 = vpop.f32.mrb[0].mxu0
  %v3425 = vadd.f32 0.0, %v3424
  %v3426 = vpop.f32.mrb[0].mxu0
  %3427 = vmatprep.mubr.bf16.mxu0 0
  %3428 = vmatmul.mubr.bf16.gmra.mrb[0].mxu0 %v3124
  %v3429 = vpop.f32.mrb[0].mxu0
  %v3430 = vadd.f32 0.0, %v3429
  %v3431 = vpop.f32.mrb[0].mxu0
  %v3432 = vpop.f32.mrb[0].mxu0
  %v3433 = vadd.f32 0.0, %v3432
  %v3434 = vpop.f32.mrb[0].mxu0
  %3435 = vmatprep.mubr.bf16.mxu0 0
  %3436 = vmatmul.mubr.bf16.gmra.mrb[0].mxu0 %v3125
  %v3437 = vpop.f32.mrb[0].mxu0
  %v3438 = vadd.f32 0.0, %v3437
  %v3439 = vpop.f32.mrb[0].mxu0
  %v3440 = vpop.f32.mrb[0].mxu0
  %v3441 = vadd.f32 0.0, %v3440
  %v3442 = vpop.f32.mrb[0].mxu0
  %3443 = vmatprep.mubr.bf16.mxu0 0
  %3444 = vmatmul.mubr.bf16.gmra.mrb[0].mxu0 %v3126
  %v3445 = vpop.f32.mrb[0].mxu0
  %v3446 = vadd.f32 0.0, %v3445
  %v3447 = vpop.f32.mrb[0].mxu0
  %v3448 = vpop.f32.mrb[0].mxu0
  %v3449 = vadd.f32 0.0, %v3448
  %v3450 = vpop.f32.mrb[0].mxu0
  %3451 = vmatprep.mubr.bf16.mxu0 0
  %3452 = vmatmul.mubr.bf16.gmra.mrb[0].mxu0 %v3127
  %v3453 = vpop.f32.mrb[0].mxu0
  %v3454 = vadd.f32 0.0, %v3453
  %v3455 = vpop.f32.mrb[0].mxu0
  %v3456 = vpop.f32.mrb[0].mxu0
  %v3457 = vadd.f32 0.0, %v3456
  %v3458 = vpop.f32.mrb[0].mxu0
  %3459 = vmatprep.mubr.bf16.mxu0 0
  %3460 = vmatmul.mubr.bf16.gmra.mrb[0].mxu0 %v3128
  %v3461 = vpop.f32.mrb[0].mxu0
  %v3462 = vadd.f32 0.0, %v3461
  %v3463 = vpop.f32.mrb[0].mxu0
  %v3464 = vpop.f32.mrb[0].mxu0
  %v3465 = vadd.f32 0.0, %v3464
  %v3466 = vpop.f32.mrb[0].mxu0
  %3467 = vmatprep.mubr.bf16.mxu0 0
  %3468 = vmatmul.mubr.bf16.gmra.mrb[0].mxu0 %v3129
  %v3469 = vpop.f32.mrb[0].mxu0
  %v3470 = vadd.f32 0.0, %v3469
  %v3471 = vpop.f32.mrb[0].mxu0
  %v3472 = vpop.f32.mrb[0].mxu0
  %v3473 = vadd.f32 0.0, %v3472
  %v3474 = vpop.f32.mrb[0].mxu0
  %3475 = vmatprep.mubr.bf16.mxu0 0
  %3476 = vmatmul.mubr.bf16.gmra.mrb[0].mxu0 %v3130
  %v3477 = vpop.f32.mrb[0].mxu0
  %v3478 = vadd.f32 0.0, %v3477
  %v3479 = vpop.f32.mrb[0].mxu0
  %v3480 = vpop.f32.mrb[0].mxu0
  %v3481 = vadd.f32 0.0, %v3480
  %v3482 = vpop.f32.mrb[0].mxu0
  %3483 = vdwg.mxu0
  %v3484 = vadd.f32 %v1669, %v3230
  %v3485 = vadd.f32 %v1670, %v3233
  %v3486 = vadd.f32 %v1671, %v3238
  %v3487 = vadd.f32 %v1672, %v3241
  %v3488 = vadd.f32 %v1673, %v3246
  %v3489 = vadd.f32 %v1674, %v3249
  %v3490 = vadd.f32 %v1675, %v3254
  %v3491 = vadd.f32 %v1676, %v3257
  %v3492 = vadd.f32 %v1677, %v3262
  %v3493 = vadd.f32 %v1678, %v3265
  %v3494 = vadd.f32 %v1679, %v3270
  %v3495 = vadd.f32 %v1680, %v3273
  %v3496 = vadd.f32 %v1681, %v3278
  %v3497 = vadd.f32 %v1682, %v3281
  %v3498 = vadd.f32 %v1683, %v3286
  %v3499 = vadd.f32 %v1684, %v3289
  %v3500 = vadd.f32 %v1685, %v3294
  %v3501 = vadd.f32 %v1686, %v3297
  %v3502 = vadd.f32 %v1687, %v3302
  %v3503 = vadd.f32 %v1688, %v3305
  %v3504 = vadd.f32 %v1689, %v3310
  %v3505 = vadd.f32 %v1690, %v3313
  %v3506 = vadd.f32 %v1691, %v3318
  %v3507 = vadd.f32 %v1692, %v3321
  %v3508 = vadd.f32 %v1693, %v3326
  %v3509 = vadd.f32 %v1694, %v3329
  %v3510 = vadd.f32 %v1695, %v3334
  %v3511 = vadd.f32 %v1696, %v3337
  %v3512 = vadd.f32 %v1697, %v3342
  %v3513 = vadd.f32 %v1698, %v3345
  %v3514 = vadd.f32 %v1699, %v3350
  %v3515 = vadd.f32 %v1700, %v3353
  %v3516 = vadd.f32 %v1701, %v3358
  %v3517 = vadd.f32 %v1702, %v3361
  %v3518 = vadd.f32 %v1703, %v3366
  %v3519 = vadd.f32 %v1704, %v3369
  %v3520 = vadd.f32 %v1705, %v3374
  %v3521 = vadd.f32 %v1706, %v3377
  %v3522 = vadd.f32 %v1707, %v3382
  %v3523 = vadd.f32 %v1708, %v3385
  %v3524 = vadd.f32 %v1709, %v3390
  %v3525 = vadd.f32 %v1710, %v3393
  %v3526 = vadd.f32 %v1711, %v3398
  %v3527 = vadd.f32 %v1712, %v3401
  %v3528 = vadd.f32 %v1713, %v3406
  %v3529 = vadd.f32 %v1714, %v3409
  %v3530 = vadd.f32 %v1715, %v3414
  %v3531 = vadd.f32 %v1716, %v3417
  %v3532 = vadd.f32 %v1717, %v3422
  %v3533 = vadd.f32 %v1718, %v3425
  %v3534 = vadd.f32 %v1719, %v3430
  %v3535 = vadd.f32 %v1720, %v3433
  %v3536 = vadd.f32 %v1721, %v3438
  %v3537 = vadd.f32 %v1722, %v3441
  %v3538 = vadd.f32 %v1723, %v3446
  %v3539 = vadd.f32 %v1724, %v3449
  %v3540 = vadd.f32 %v1725, %v3454
  %v3541 = vadd.f32 %v1726, %v3457
  %v3542 = vadd.f32 %v1727, %v3462
  %v3543 = vadd.f32 %v1728, %v3465
  %v3544 = vadd.f32 %v1729, %v3470
  %v3545 = vadd.f32 %v1730, %v3473
  %v3546 = vadd.f32 %v1731, %v3478
  %v3547 = vadd.f32 %v1732, %v3481
  %v3548 = vld [vmem:[%s11] sm:$0x1]
  %v3550 = vlaneseq
  %v3551 = vshrl.u32 %v3550, 7
  %v3552 = vsub.s32 0, %v3551
  %v3553 = vrot.slane %v3548, %v3552
  %v3555 = vadd.f32 %v3484, %v3553
  %v3556 = vadd.f32 %v3485, %v3553
  %v3557 = vadd.f32 %v3486, %v3553
  %v3558 = vadd.f32 %v3487, %v3553
  %v3559 = vadd.f32 %v3488, %v3553
  %v3560 = vadd.f32 %v3489, %v3553
  %v3561 = vadd.f32 %v3490, %v3553
  %v3562 = vadd.f32 %v3491, %v3553
  %v3563 = vadd.f32 %v3492, %v3553
  %v3564 = vadd.f32 %v3493, %v3553
  %v3565 = vadd.f32 %v3494, %v3553
  %v3566 = vadd.f32 %v3495, %v3553
  %v3567 = vadd.f32 %v3496, %v3553
  %v3568 = vadd.f32 %v3497, %v3553
  %v3569 = vadd.f32 %v3498, %v3553
  %v3570 = vadd.f32 %v3499, %v3553
  %v3571 = vadd.f32 %v3500, %v3553
  %v3572 = vadd.f32 %v3501, %v3553
  %v3573 = vadd.f32 %v3502, %v3553
  %v3574 = vadd.f32 %v3503, %v3553
  %v3575 = vadd.f32 %v3504, %v3553
  %v3576 = vadd.f32 %v3505, %v3553
  %v3577 = vadd.f32 %v3506, %v3553
  %v3578 = vadd.f32 %v3507, %v3553
  %v3579 = vadd.f32 %v3508, %v3553
  %v3580 = vadd.f32 %v3509, %v3553
  %v3581 = vadd.f32 %v3510, %v3553
  %v3582 = vadd.f32 %v3511, %v3553
  %v3583 = vadd.f32 %v3512, %v3553
  %v3584 = vadd.f32 %v3513, %v3553
  %v3585 = vadd.f32 %v3514, %v3553
  %v3586 = vadd.f32 %v3515, %v3553
  %v3587 = vadd.f32 %v3516, %v3553
  %v3588 = vadd.f32 %v3517, %v3553
  %v3589 = vadd.f32 %v3518, %v3553
  %v3590 = vadd.f32 %v3519, %v3553
  %v3591 = vadd.f32 %v3520, %v3553
  %v3592 = vadd.f32 %v3521, %v3553
  %v3593 = vadd.f32 %v3522, %v3553
  %v3594 = vadd.f32 %v3523, %v3553
  %v3595 = vadd.f32 %v3524, %v3553
  %v3596 = vadd.f32 %v3525, %v3553
  %v3597 = vadd.f32 %v3526, %v3553
  %v3598 = vadd.f32 %v3527, %v3553
  %v3599 = vadd.f32 %v3528, %v3553
  %v3600 = vadd.f32 %v3529, %v3553
  %v3601 = vadd.f32 %v3530, %v3553
  %v3602 = vadd.f32 %v3531, %v3553
  %v3603 = vadd.f32 %v3532, %v3553
  %v3604 = vadd.f32 %v3533, %v3553
  %v3605 = vadd.f32 %v3534, %v3553
  %v3606 = vadd.f32 %v3535, %v3553
  %v3607 = vadd.f32 %v3536, %v3553
  %v3608 = vadd.f32 %v3537, %v3553
  %v3609 = vadd.f32 %v3538, %v3553
  %v3610 = vadd.f32 %v3539, %v3553
  %v3611 = vadd.f32 %v3540, %v3553
  %v3612 = vadd.f32 %v3541, %v3553
  %v3613 = vadd.f32 %v3542, %v3553
  %v3614 = vadd.f32 %v3543, %v3553
  %v3615 = vadd.f32 %v3544, %v3553
  %v3616 = vadd.f32 %v3545, %v3553
  %v3617 = vadd.f32 %v3546, %v3553
  %v3618 = vadd.f32 %v3547, %v3553
  %3619 = vst [vmem:[%s12] sm:$0xff] %v3555
  %3620 = vst [vmem:[%s12 + $0x8] sm:$0xff] %v3556
  %3621 = vst [vmem:[%s12 + $0x10] sm:$0xff] %v3557
  %3622 = vst [vmem:[%s12 + $0x18] sm:$0xff] %v3558
  %3623 = vst [vmem:[%s12 + $0x20] sm:$0xff] %v3559
  %3624 = vst [vmem:[%s12 + $0x28] sm:$0xff] %v3560
  %3625 = vst [vmem:[%s12 + $0x30] sm:$0xff] %v3561
  %3626 = vst [vmem:[%s12 + $0x38] sm:$0xff] %v3562
  %3627 = vst [vmem:[%s12 + $0x40] sm:$0xff] %v3563
  %3628 = vst [vmem:[%s12 + $0x48] sm:$0xff] %v3564
  %3629 = vst [vmem:[%s12 + $0x50] sm:$0xff] %v3565
  %3630 = vst [vmem:[%s12 + $0x58] sm:$0xff] %v3566
  %3631 = vst [vmem:[%s12 + $0x60] sm:$0xff] %v3567
  %3632 = vst [vmem:[%s12 + $0x68] sm:$0xff] %v3568
  %3633 = vst [vmem:[%s12 + $0x70] sm:$0xff] %v3569
  %3634 = vst [vmem:[%s12 + $0x78] sm:$0xff] %v3570
  %3635 = vst [vmem:[%s12 + $0x80] sm:$0xff] %v3571
  %3636 = vst [vmem:[%s12 + $0x88] sm:$0xff] %v3572
  %3637 = vst [vmem:[%s12 + $0x90] sm:$0xff] %v3573
  %3638 = vst [vmem:[%s12 + $0x98] sm:$0xff] %v3574
  %3639 = vst [vmem:[%s12 + $0xa0] sm:$0xff] %v3575
  %3640 = vst [vmem:[%s12 + $0xa8] sm:$0xff] %v3576
  %3641 = vst [vmem:[%s12 + $0xb0] sm:$0xff] %v3577
  %3642 = vst [vmem:[%s12 + $0xb8] sm:$0xff] %v3578
  %3643 = vst [vmem:[%s12 + $0xc0] sm:$0xff] %v3579
  %3644 = vst [vmem:[%s12 + $0xc8] sm:$0xff] %v3580
  %3645 = vst [vmem:[%s12 + $0xd0] sm:$0xff] %v3581
  %3646 = vst [vmem:[%s12 + $0xd8] sm:$0xff] %v3582
  %3647 = vst [vmem:[%s12 + $0xe0] sm:$0xff] %v3583
  %3648 = vst [vmem:[%s12 + $0xe8] sm:$0xff] %v3584
  %3649 = vst [vmem:[%s12 + $0xf0] sm:$0xff] %v3585
  %3650 = vst [vmem:[%s12 + $0xf8] sm:$0xff] %v3586
  %3651 = vst [vmem:[%s12 + $0x100] sm:$0xff] %v3587
  %3652 = vst [vmem:[%s12 + $0x108] sm:$0xff] %v3588
  %3653 = vst [vmem:[%s12 + $0x110] sm:$0xff] %v3589
  %3654 = vst [vmem:[%s12 + $0x118] sm:$0xff] %v3590
  %3655 = vst [vmem:[%s12 + $0x120] sm:$0xff] %v3591
  %3656 = vst [vmem:[%s12 + $0x128] sm:$0xff] %v3592
  %3657 = vst [vmem:[%s12 + $0x130] sm:$0xff] %v3593
  %3658 = vst [vmem:[%s12 + $0x138] sm:$0xff] %v3594
  %3659 = vst [vmem:[%s12 + $0x140] sm:$0xff] %v3595
  %3660 = vst [vmem:[%s12 + $0x148] sm:$0xff] %v3596
  %3661 = vst [vmem:[%s12 + $0x150] sm:$0xff] %v3597
  %3662 = vst [vmem:[%s12 + $0x158] sm:$0xff] %v3598
  %3663 = vst [vmem:[%s12 + $0x160] sm:$0xff] %v3599
  %3664 = vst [vmem:[%s12 + $0x168] sm:$0xff] %v3600
  %3665 = vst [vmem:[%s12 + $0x170] sm:$0xff] %v3601
  %3666 = vst [vmem:[%s12 + $0x178] sm:$0xff] %v3602
  %3667 = vst [vmem:[%s12 + $0x180] sm:$0xff] %v3603
  %3668 = vst [vmem:[%s12 + $0x188] sm:$0xff] %v3604
  %3669 = vst [vmem:[%s12 + $0x190] sm:$0xff] %v3605
  %3670 = vst [vmem:[%s12 + $0x198] sm:$0xff] %v3606
  %3671 = vst [vmem:[%s12 + $0x1a0] sm:$0xff] %v3607
  %3672 = vst [vmem:[%s12 + $0x1a8] sm:$0xff] %v3608
  %3673 = vst [vmem:[%s12 + $0x1b0] sm:$0xff] %v3609
  %3674 = vst [vmem:[%s12 + $0x1b8] sm:$0xff] %v3610
  %3675 = vst [vmem:[%s12 + $0x1c0] sm:$0xff] %v3611
  %3676 = vst [vmem:[%s12 + $0x1c8] sm:$0xff] %v3612
  %3677 = vst [vmem:[%s12 + $0x1d0] sm:$0xff] %v3613
  %3678 = vst [vmem:[%s12 + $0x1d8] sm:$0xff] %v3614
  %3679 = vst [vmem:[%s12 + $0x1e0] sm:$0xff] %v3615
  %3680 = vst [vmem:[%s12 + $0x1e8] sm:$0xff] %v3616
  %3681 = vst [vmem:[%s12 + $0x1f0] sm:$0xff] %v3617
  %3682 = vst [vmem:[%s12 + $0x1f8] sm:$0xff] %v3618
  // Predicated region
  $region50: #{metaformer_no_block.3} parent=0 // pred_check
    _
  $region51: #{metaformer_no_block.3} parent=0 // pred_check_branch
    %3684 = sbr.rel (0) target = $region53
  $region52: #{metaformer_no_block.3} parent=0 // pred_region
    _
  $region53: #{metaformer_no_block.3} parent=0 // pred_fallthru
    _
  // Predicated region
  $region54: #{metaformer_no_block.3} parent=0 // pred_check
    _
  $region55: #{metaformer_no_block.3} parent=0 // pred_check_branch
    %3686 = sbr.rel (0) target = $region57
  $region56: #{metaformer_no_block.3} parent=0 // pred_region
    _
  $region57: #{metaformer_no_block.3} parent=0 // pred_fallthru
    _

</llo_original>
